<compile_context>
chip_gen: v7x
topology: tpu7x:2x2x1
jax: 0.10.0
libtpu: 0.0.40
codegen_flags: <defaults>
</compile_context>

<pallas_src>
import functools

import jax
import jax.numpy as jnp
from jax.experimental import pallas as pl
from jax.experimental.pallas import tpu as pltpu


# ------------------------------ small helpers -------------------------------

def _silu(x):
    return x * jax.nn.sigmoid(x)


def _full_spec(arr):
    """BlockSpec covering the whole (small) array; block index constant across the grid."""
    zeros = (0,) * arr.ndim
    return pl.BlockSpec(arr.shape, lambda i, _z=zeros: _z)


# ------------------------------ fused Pallas kernel -------------------------------

def _effnet_fused_kernel(x_ref, stem_w_ref, stem_b_ref,
                         exp_w_ref, exp_b_ref, dw_w_ref, dw_b_ref,
                         se_rw_ref, se_rb_ref, se_ew_ref, se_eb_ref,
                         pj_w_ref, pj_b_ref, head_w_ref, head_b_ref,
                         fc_w_ref, fc_b_ref, o_ref,
                         pad_ref, h_ref, *, H, W, RB, LPAD, WPAD):
    """stem -> MBConv(expand/dw3x3/SE/project/residual) -> head -> GAP -> fc -> sigmoid, one image."""
    m = H * W
    cexp = exp_w_ref.shape[-1]
    npad = fc_w_ref.shape[-1]

    # ---- stem: single K=48 MXU matmul (im2col'd space-to-depth input) + folded BN + SiLU ----
    x2d = x_ref[...].reshape(m, x_ref.shape[-1])                         # bf16 (m, 48)
    x0 = _silu(jnp.dot(x2d, stem_w_ref[...],
                       preferred_element_type=jnp.float32) + stem_b_ref[...])   # (m, 32) f32

    # ---- MBConv expand 1x1 + SiLU -------------------------------------------------------
    hexp = _silu(jnp.dot(x0.astype(jnp.bfloat16), exp_w_ref[...],
                         preferred_element_type=jnp.float32) + exp_b_ref[...])  # (m, cexp) f32

    # ---- depthwise 3x3 (stride 1, pad 1) via halo scratch --------------------------------
    # Zero only the halo border (2 full rows + two aligned 8-wide column strips), not the whole
    # scratch; the interior is fully overwritten every grid step. All stores are sublane-aligned.
    zrow = jnp.zeros((1, 1, WPAD, cexp), jnp.float32)
    pad_ref[:, 0:1, :, :] = zrow
    pad_ref[:, H + 1:H + 2, :, :] = zrow
    zcol = jnp.zeros((1, H + 2, 8, cexp), jnp.float32)
    pad_ref[:, :, LPAD - 8:LPAD, :] = zcol                               # covers left halo col LPAD-1
    pad_ref[:, :, LPAD + W:LPAD + W + 8, :] = zcol                       # covers right halo col LPAD+W
    pad_ref[:, 1:H + 1, LPAD:LPAD + W, :] = hexp.reshape(1, H, W, cexp)  # aligned interior store

    w9 = dw_w_ref[...]                                                   # (9, cexp) f32, loaded once
    wtaps = [w9[k].reshape(1, 1, 1, cexp) for k in range(9)]             # hoisted broadcasts
    dwb = dw_b_ref[...].reshape(1, 1, 1, cexp)
    gap = jnp.zeros((1, cexp), jnp.float32)
    # Row-block accumulation: per-block acc (1,RB,W,cexp) = 16 vregs stays in registers,
    # 9-tap loop innermost, each output block stored exactly once (as bf16 for the project matmul).
    for r0 in range(0, H, RB):
        acc = jnp.zeros((1, RB, W, cexp), jnp.float32)
        for dx in range(3):
            colv = pad_ref[:, r0:r0 + RB + 2, LPAD - 1 + dx:LPAD - 1 + dx + W, :]
            for dy in range(3):
                acc = acc + colv[:, dy:dy + RB, :, :] * wtaps[dy * 3 + dx]
        blk = _silu(acc + dwb)                                           # (1, RB, W, cexp) f32
        h_ref[:, r0:r0 + RB, :, :] = blk.astype(jnp.bfloat16)
        gap = gap + jnp.sum(blk.reshape(RB * W, cexp), axis=0, keepdims=True)
    gap = gap * (1.0 / float(m))                                         # (1, cexp) SE squeeze

    # ---- Squeeze-Excite: reduce(SiLU) -> expand(sigmoid) -> channel gate ------------------
    s1 = _silu(jnp.dot(gap.astype(jnp.bfloat16), se_rw_ref[...],
                       preferred_element_type=jnp.float32) + se_rb_ref[...])
    gate = jax.nn.sigmoid(jnp.dot(s1.astype(jnp.bfloat16), se_ew_ref[...],
                                  preferred_element_type=jnp.float32) + se_eb_ref[...])   # (1, cexp)

    # ---- channel gate -> project 1x1 (no activation) -> residual add ----------------------
    hs = (h_ref[...].reshape(m, cexp) * gate).astype(jnp.bfloat16)
    xb = jnp.dot(hs, pj_w_ref[...],
                 preferred_element_type=jnp.float32) + pj_b_ref[...] + x0                 # (m, 32)

    # ---- head 1x1 + SiLU -> global average pool -> fc (lane-padded) -> sigmoid ------------
    z = _silu(jnp.dot(xb.astype(jnp.bfloat16), head_w_ref[...],
                      preferred_element_type=jnp.float32) + head_b_ref[...])              # (m, nf)
    feat = jnp.sum(z, axis=0, keepdims=True) * (1.0 / float(m))                           # (1, nf)
    # Dropout(p=0.5) is identity in eval/inference mode.
    logits = jnp.dot(feat.astype(jnp.bfloat16), fc_w_ref[...],
                     preferred_element_type=jnp.float32) + fc_b_ref[...]                  # (1, npad)
    o_ref[...] = jax.nn.sigmoid(logits).reshape(1, 1, npad)


# ------------------------------ kernel wrapper -------------------------------

_WKEYS = ["stem_w", "stem_b", "exp_w", "exp_b", "dw_w", "dw_b",
          "se_r_w", "se_r_b", "se_e_w", "se_e_b", "proj_w", "proj_b",
          "head_w", "head_b", "fc_w", "fc_b"]


def fused_effnet(xi, p):
    """xi: (B, H, W, 16*Cin) bf16 im2col'd space-to-depth stem input -> (B, 1, NPAD) f32 probs."""
    B, H, W, K = xi.shape
    cin = p["proj_w"].shape[-1]
    cexp = p["exp_w"].shape[-1]
    cse = p["se_r_w"].shape[-1]
    nf = p["head_w"].shape[-1]
    npad = p["fc_w"].shape[-1]
    RB, LPAD = 8, 8
    WPAD = LPAD + W + 8
    assert H % RB == 0 and W % 8 == 0
    m = H * W

    flops = B * (2 * m * K * cin + 2 * m * cin * cexp + 2 * m * 9 * cexp
                 + 4 * cexp * cse + m * cexp + 2 * m * cexp * cin
                 + 2 * m * cin * nf + 2 * nf * npad)
    transc = B * (m * (cin + 2 * cexp + nf) + cse + cexp + npad)
    bytes_acc = (int(xi.size) * 2
                 + sum(int(p[k].size) * (2 if p[k].dtype == jnp.bfloat16 else 4) for k in _WKEYS)
                 + B * npad * 4)

    return pl.pallas_call(
        functools.partial(_effnet_fused_kernel, H=H, W=W, RB=RB, LPAD=LPAD, WPAD=WPAD),
        out_shape=jax.ShapeDtypeStruct((B, 1, npad), jnp.float32),
        grid=(B,),                                                   # one image per step; megacore on v7x
        in_specs=[pl.BlockSpec((1, H, W, K), lambda i: (i, 0, 0, 0))]
                 + [_full_spec(p[k]) for k in _WKEYS],
        out_specs=pl.BlockSpec((1, 1, npad), lambda i: (i, 0, 0)),
        scratch_shapes=[
            pltpu.VMEM((1, H + 2, WPAD, cexp), jnp.float32),         # dw halo scratch (~288 KiB)
            pltpu.VMEM((1, H, W, cexp), jnp.bfloat16),               # dw output cache (~64 KiB)
        ],
        compiler_params=pltpu.CompilerParams(
            dimension_semantics=("parallel",),
            vmem_limit_bytes=32 * 1024 * 1024,
        ),
        cost_estimate=pl.CostEstimate(flops=int(flops), transcendentals=int(transc),
                                      bytes_accessed=int(bytes_acc)),
    )(xi, *[p[k] for k in _WKEYS])


# ------------------------------- glue helpers --------------------------------

def fold_bn(w, gamma, beta, mean, var, eps=1e-5):
    """Fold eval-mode BatchNorm into a conv whose output channel is the last weight dim."""
    scale = gamma / jnp.sqrt(var + eps)
    return w * scale, beta - mean * scale


def remap_stem_weight_s2d(w_hwio):
    """Remap a (3,3,Cin,Cout) stride-2/pad-1 conv weight to the space-to-depth 2x2 form (4, 4*Cin, Cout).

    With xs2d[b, I, J, (py*2+px)*Cin + c] = x[b, 2I+py, 2J+px, c] and a top/left zero halo,
    the stride-2 3x3 conv becomes a 2x2 stride-1 conv over xs2d with this remapped weight.
    """
    kh, kw, cin, cout = w_hwio.shape
    assert (kh, kw) == (3, 3)
    ws = jnp.zeros((2, 2, 2, 2, cin, cout), w_hwio.dtype)   # (tI, tJ, py, px, cin, cout)
    for tI in range(2):
        for py in range(2):
            ky = 0 if (tI == 0 and py == 1) else (1 + py if tI == 1 else None)
            if ky is None:
                continue
            for tJ in range(2):
                for px in range(2):
                    kx = 0 if (tJ == 0 and px == 1) else (1 + px if tJ == 1 else None)
                    if kx is None:
                        continue
                    ws = ws.at[tI, tJ, py, px].set(w_hwio[ky, kx])
    return ws.reshape(4, 4 * cin, cout)


# ------------------------------ parameter setup -------------------------------

def init_params(target_size=5):
    # scaled-down channel plan
    C_IN, C_STEM, C_EXP, C_SE, N_FEAT = 3, 32, 128, 8, 64
    NPAD = 128                                          # lane-dense classifier width
    ks = jax.random.split(jax.random.PRNGKey(0), 32)
    ki = iter(range(32))

    def nrm(shape, scale=0.1):
        return scale * jax.random.normal(ks[next(ki)], shape, jnp.float32)

    def bn(c):
        return 1.0 + nrm((c,)), nrm((c,)), nrm((c,)), 1.0 + jnp.abs(nrm((c,)))

    p = {}
    # stem conv 3x3 s2 + BN, remapped to s2d 2x2 form and flattened to one K=48 matmul weight
    w, b = fold_bn(nrm((3, 3, C_IN, C_STEM)), *bn(C_STEM))
    p["stem_w"] = remap_stem_weight_s2d(w).reshape(4 * 4 * C_IN, C_STEM).astype(jnp.bfloat16)  # (48, 32)
    p["stem_b"] = b.reshape(1, C_STEM)
    # MBConv expand 1x1 + BN
    w, b = fold_bn(nrm((C_STEM, C_EXP)), *bn(C_EXP))
    p["exp_w"] = w.astype(jnp.bfloat16)
    p["exp_b"] = b.reshape(1, C_EXP)
    # depthwise 3x3 ([9, C_EXP], index = dy*3+dx) + BN (VPU path stays f32)
    w, b = fold_bn(nrm((9, C_EXP)), *bn(C_EXP))
    p["dw_w"] = w
    p["dw_b"] = b.reshape(1, C_EXP)
    # Squeeze-Excite
    p["se_r_w"] = nrm((C_EXP, C_SE)).astype(jnp.bfloat16)
    p["se_r_b"] = nrm((C_SE,)).reshape(1, C_SE)
    p["se_e_w"] = nrm((C_SE, C_EXP)).astype(jnp.bfloat16)
    p["se_e_b"] = nrm((C_EXP,)).reshape(1, C_EXP)
    # project 1x1 + BN (no activation)
    w, b = fold_bn(nrm((C_EXP, C_STEM)), *bn(C_STEM))
    p["proj_w"] = w.astype(jnp.bfloat16)
    p["proj_b"] = b.reshape(1, C_STEM)
    # head conv 1x1 + BN + SiLU
    w, b = fold_bn(nrm((C_STEM, N_FEAT)), *bn(N_FEAT))
    p["head_w"] = w.astype(jnp.bfloat16)
    p["head_b"] = b.reshape(1, N_FEAT)
    # classifier fc, lane-padded to 128 outputs (wrapper slices [:, :target_size])
    fw = nrm((N_FEAT, target_size))
    fb = nrm((target_size,))
    p["fc_w"] = jnp.zeros((N_FEAT, NPAD), jnp.float32).at[:, :target_size].set(fw).astype(jnp.bfloat16)
    p["fc_b"] = jnp.zeros((1, NPAD), jnp.float32).at[0, :target_size].set(fb)
    return p


# -------------------------------- forward pass --------------------------------

def efficientnet_forward(x_nchw, params, target_size=5):
    x = jnp.transpose(x_nchw, (0, 2, 3, 1)).astype(jnp.float32)     # NCHW -> NHWC
    B, H, W, C = x.shape
    Ho, Wo = H // 2, W // 2

    # Space-to-depth (single pass), top/left halo only (bottom/right never read at stride 2),
    # then a 2x2 im2col so the stem becomes one K=16*C matmul inside the fused kernel.
    xs = x.reshape(B, Ho, 2, Wo, 2, C).transpose(0, 1, 3, 2, 4, 5).reshape(B, Ho, Wo, 4 * C)
    xs = jnp.pad(xs, ((0, 0), (1, 0), (1, 0), (0, 0)))
    taps = [xs[:, ti:ti + Ho, tj:tj + Wo, :] for ti in range(2) for tj in range(2)]
    xi = jnp.concatenate(taps, axis=-1).astype(jnp.bfloat16)        # (B, Ho, Wo, 16*C)

    out = fused_effnet(xi, params)                                   # (B, 1, 128) lane-dense probs
    return out[:, 0, :target_size]


# ----------------------------------- main --------------------------------------

if __name__ == "__main__":
    cfg = {"TARGET_SIZE": 5}
    params = init_params(cfg["TARGET_SIZE"])
    x = jax.random.normal(jax.random.PRNGKey(0), (2, 3, 32, 32), jnp.float32)   # NCHW like PyTorch
    fwd = jax.jit(functools.partial(efficientnet_forward, target_size=cfg["TARGET_SIZE"]))
    y = jax.block_until_ready(fwd(x, params))
    assert y.shape == (2, cfg["TARGET_SIZE"])
    assert bool(jnp.all(jnp.isfinite(y))) and bool(jnp.all((y >= 0.0) & (y <= 1.0)))
    print("KERNEL_OK")
</pallas_src>

<mosaic_0001>
module attributes {stable_mosaic.version = 11 : i64} {
  func.func @_effnet_fused_kernel(%arg0: i32, %arg1: memref<1x16x16x48xbf16, #tpu.memory_space<vmem>>, %arg2: memref<48x32xbf16, #tpu.memory_space<vmem>>, %arg3: memref<1x32xf32, #tpu.memory_space<vmem>>, %arg4: memref<32x128xbf16, #tpu.memory_space<vmem>>, %arg5: memref<1x128xf32, #tpu.memory_space<vmem>>, %arg6: memref<9x128xf32, #tpu.memory_space<vmem>>, %arg7: memref<1x128xf32, #tpu.memory_space<vmem>>, %arg8: memref<128x8xbf16, #tpu.memory_space<vmem>>, %arg9: memref<1x8xf32, #tpu.memory_space<vmem>>, %arg10: memref<8x128xbf16, #tpu.memory_space<vmem>>, %arg11: memref<1x128xf32, #tpu.memory_space<vmem>>, %arg12: memref<128x32xbf16, #tpu.memory_space<vmem>>, %arg13: memref<1x32xf32, #tpu.memory_space<vmem>>, %arg14: memref<32x64xbf16, #tpu.memory_space<vmem>>, %arg15: memref<1x64xf32, #tpu.memory_space<vmem>>, %arg16: memref<64x128xbf16, #tpu.memory_space<vmem>>, %arg17: memref<1x128xf32, #tpu.memory_space<vmem>>, %arg18: memref<1x1x128xf32, #tpu.memory_space<vmem>>, %arg19: memref<1x18x32x128xf32, #tpu.memory_space<vmem>>, %arg20: memref<1x16x16x128xbf16, #tpu.memory_space<vmem>>) attributes {dimension_semantics = [#tpu.dimension_semantics<parallel>], iteration_bounds = array<i64: 2>, scalar_prefetch = 0 : i64, scratch_operands = 2 : i64, tpu.core_type = #tpu.core_type<tc>, window_params = [{transform_indices = @transform_0, window_bounds = array<i64: 1, 16, 16, 48>}, {pipeline_mode = #tpu.pipeline_mode<synchronous>, transform_indices = @transform_1, window_bounds = array<i64: 48, 32>}, {pipeline_mode = #tpu.pipeline_mode<synchronous>, transform_indices = @transform_2, window_bounds = array<i64: 1, 32>}, {pipeline_mode = #tpu.pipeline_mode<synchronous>, transform_indices = @transform_3, window_bounds = array<i64: 32, 128>}, {pipeline_mode = #tpu.pipeline_mode<synchronous>, transform_indices = @transform_4, window_bounds = array<i64: 1, 128>}, {pipeline_mode = #tpu.pipeline_mode<synchronous>, transform_indices = @transform_5, window_bounds = array<i64: 9, 128>}, {pipeline_mode = #tpu.pipeline_mode<synchronous>, transform_indices = @transform_6, window_bounds = array<i64: 1, 128>}, {pipeline_mode = #tpu.pipeline_mode<synchronous>, transform_indices = @transform_7, window_bounds = array<i64: 128, 8>}, {pipeline_mode = #tpu.pipeline_mode<synchronous>, transform_indices = @transform_8, window_bounds = array<i64: 1, 8>}, {pipeline_mode = #tpu.pipeline_mode<synchronous>, transform_indices = @transform_9, window_bounds = array<i64: 8, 128>}, {pipeline_mode = #tpu.pipeline_mode<synchronous>, transform_indices = @transform_10, window_bounds = array<i64: 1, 128>}, {pipeline_mode = #tpu.pipeline_mode<synchronous>, transform_indices = @transform_11, window_bounds = array<i64: 128, 32>}, {pipeline_mode = #tpu.pipeline_mode<synchronous>, transform_indices = @transform_12, window_bounds = array<i64: 1, 32>}, {pipeline_mode = #tpu.pipeline_mode<synchronous>, transform_indices = @transform_13, window_bounds = array<i64: 32, 64>}, {pipeline_mode = #tpu.pipeline_mode<synchronous>, transform_indices = @transform_14, window_bounds = array<i64: 1, 64>}, {pipeline_mode = #tpu.pipeline_mode<synchronous>, transform_indices = @transform_15, window_bounds = array<i64: 64, 128>}, {pipeline_mode = #tpu.pipeline_mode<synchronous>, transform_indices = @transform_16, window_bounds = array<i64: 1, 128>}, {transform_indices = @transform_17, window_bounds = array<i64: 1, 1, 128>}]} {
    %c0 = arith.constant 0 : index
    %c0_0 = arith.constant 0 : index
    %c0_1 = arith.constant 0 : index
    %c0_2 = arith.constant 0 : index
    %0 = vector.load %arg1[%c0, %c0_0, %c0_1, %c0_2] : memref<1x16x16x48xbf16, #tpu.memory_space<vmem>>, vector<1x16x16x48xbf16>
    %1 = vector.shape_cast %0 : vector<1x16x16x48xbf16> to vector<256x48xbf16>
    %c0_3 = arith.constant 0 : index
    %c0_4 = arith.constant 0 : index
    %2 = vector.load %arg2[%c0_3, %c0_4] : memref<48x32xbf16, #tpu.memory_space<vmem>>, vector<48x32xbf16>
    %cst = arith.constant dense<0.000000e+00> : vector<256x32xf32>
    %3 = tpu.matmul %1, %2, %cst {dimension_numbers = #tpu.dot_dimension_numbers<[1], [0], [0], [1], [0, 0, 1, 1], [], []>} : vector<256x48xbf16>, vector<48x32xbf16>, vector<256x32xf32> -> vector<256x32xf32>
    %c0_5 = arith.constant 0 : index
    %c0_6 = arith.constant 0 : index
    %4 = vector.load %arg3[%c0_5, %c0_6] : memref<1x32xf32, #tpu.memory_space<vmem>>, vector<1x32xf32>
    %5 = vector.broadcast %4 : vector<1x32xf32> to vector<256x32xf32>
    %6 = arith.addf %3, %5 : vector<256x32xf32>
    %7 = arith.negf %6 : vector<256x32xf32>
    %8 = math.exp %7 : vector<256x32xf32>
    %cst_7 = arith.constant 1.000000e+00 : f32
    %9 = vector.broadcast %cst_7 : f32 to vector<256x32xf32>
    %10 = arith.addf %9, %8 : vector<256x32xf32>
    %11 = arith.divf %9, %10 : vector<256x32xf32>
    %12 = arith.mulf %6, %11 : vector<256x32xf32>
    %13 = arith.truncf %12 : vector<256x32xf32> to vector<256x32xbf16>
    %c0_8 = arith.constant 0 : index
    %c0_9 = arith.constant 0 : index
    %14 = vector.load %arg4[%c0_8, %c0_9] : memref<32x128xbf16, #tpu.memory_space<vmem>>, vector<32x128xbf16>
    %cst_10 = arith.constant dense<0.000000e+00> : vector<256x128xf32>
    %15 = tpu.matmul %13, %14, %cst_10 {dimension_numbers = #tpu.dot_dimension_numbers<[1], [0], [0], [1], [0, 0, 1, 1], [], []>} : vector<256x32xbf16>, vector<32x128xbf16>, vector<256x128xf32> -> vector<256x128xf32>
    %c0_11 = arith.constant 0 : index
    %c0_12 = arith.constant 0 : index
    %16 = vector.load %arg5[%c0_11, %c0_12] : memref<1x128xf32, #tpu.memory_space<vmem>>, vector<1x128xf32>
    %17 = vector.broadcast %16 : vector<1x128xf32> to vector<256x128xf32>
    %18 = arith.addf %15, %17 : vector<256x128xf32>
    %19 = arith.negf %18 : vector<256x128xf32>
    %20 = math.exp %19 : vector<256x128xf32>
    %cst_13 = arith.constant 1.000000e+00 : f32
    %21 = vector.broadcast %cst_13 : f32 to vector<256x128xf32>
    %22 = arith.addf %21, %20 : vector<256x128xf32>
    %23 = arith.divf %21, %22 : vector<256x128xf32>
    %24 = arith.mulf %18, %23 : vector<256x128xf32>
    %cst_14 = arith.constant 0.000000e+00 : f32
    %25 = vector.broadcast %cst_14 : f32 to vector<1x1x32x128xf32>
    %c0_15 = arith.constant 0 : index
    %c0_16 = arith.constant 0 : index
    %c0_17 = arith.constant 0 : index
    %c0_18 = arith.constant 0 : index
    %26 = vector.load %arg19[%c0_15, %c0_16, %c0_17, %c0_18] : memref<1x18x32x128xf32, #tpu.memory_space<vmem>>, vector<1x1x32x128xf32>
    tpu.vector_store %arg19[%c0_15, %c0_16, %c0_17, %c0_18], %25 {strides = array<i32>} : memref<1x18x32x128xf32, #tpu.memory_space<vmem>>, vector<1x1x32x128xf32>,
    %c0_19 = arith.constant 0 : index
    %c17 = arith.constant 17 : index
    %c0_20 = arith.constant 0 : index
    %c0_21 = arith.constant 0 : index
    %27 = vector.load %arg19[%c0_19, %c17, %c0_20, %c0_21] : memref<1x18x32x128xf32, #tpu.memory_space<vmem>>, vector<1x1x32x128xf32>
    tpu.vector_store %arg19[%c0_19, %c17, %c0_20, %c0_21], %25 {strides = array<i32>} : memref<1x18x32x128xf32, #tpu.memory_space<vmem>>, vector<1x1x32x128xf32>,
    %cst_22 = arith.constant 0.000000e+00 : f32
    %28 = vector.broadcast %cst_22 : f32 to vector<1x18x8x128xf32>
    %c0_23 = arith.constant 0 : index
    %c0_24 = arith.constant 0 : index
    %c0_25 = arith.constant 0 : index
    %c0_26 = arith.constant 0 : index
    %29 = vector.load %arg19[%c0_23, %c0_24, %c0_25, %c0_26] : memref<1x18x32x128xf32, #tpu.memory_space<vmem>>, vector<1x18x8x128xf32>
    tpu.vector_store %arg19[%c0_23, %c0_24, %c0_25, %c0_26], %28 {strides = array<i32>} : memref<1x18x32x128xf32, #tpu.memory_space<vmem>>, vector<1x18x8x128xf32>,
    %c0_27 = arith.constant 0 : index
    %c0_28 = arith.constant 0 : index
    %c24 = arith.constant 24 : index
    %c0_29 = arith.constant 0 : index
    %30 = vector.load %arg19[%c0_27, %c0_28, %c24, %c0_29] : memref<1x18x32x128xf32, #tpu.memory_space<vmem>>, vector<1x18x8x128xf32>
    tpu.vector_store %arg19[%c0_27, %c0_28, %c24, %c0_29], %28 {strides = array<i32>} : memref<1x18x32x128xf32, #tpu.memory_space<vmem>>, vector<1x18x8x128xf32>,
    %31 = vector.shape_cast %24 : vector<256x128xf32> to vector<1x16x16x128xf32>
    %c0_30 = arith.constant 0 : index
    %c1 = arith.constant 1 : index
    %c8 = arith.constant 8 : index
    %c0_31 = arith.constant 0 : index
    %32 = vector.load %arg19[%c0_30, %c1, %c8, %c0_31] : memref<1x18x32x128xf32, #tpu.memory_space<vmem>>, vector<1x16x16x128xf32>
    tpu.vector_store %arg19[%c0_30, %c1, %c8, %c0_31], %31 {strides = array<i32>} : memref<1x18x32x128xf32, #tpu.memory_space<vmem>>, vector<1x16x16x128xf32>,
    %c0_32 = arith.constant 0 : index
    %c0_33 = arith.constant 0 : index
    %33 = vector.load %arg6[%c0_32, %c0_33] : memref<9x128xf32, #tpu.memory_space<vmem>>, vector<9x128xf32>
    %34 = vector.extract_strided_slice %33 {offsets = [0, 0], sizes = [1, 128], strides = [1, 1]} : vector<9x128xf32> to vector<1x128xf32>
    %35 = vector.shape_cast %34 : vector<1x128xf32> to vector<128xf32>
    %36 = vector.shape_cast %35 : vector<128xf32> to vector<1x1x1x128xf32>
    %37 = vector.extract_strided_slice %33 {offsets = [1, 0], sizes = [1, 128], strides = [1, 1]} : vector<9x128xf32> to vector<1x128xf32>
    %38 = vector.shape_cast %37 : vector<1x128xf32> to vector<128xf32>
    %39 = vector.shape_cast %38 : vector<128xf32> to vector<1x1x1x128xf32>
    %40 = vector.extract_strided_slice %33 {offsets = [2, 0], sizes = [1, 128], strides = [1, 1]} : vector<9x128xf32> to vector<1x128xf32>
    %41 = vector.shape_cast %40 : vector<1x128xf32> to vector<128xf32>
    %42 = vector.shape_cast %41 : vector<128xf32> to vector<1x1x1x128xf32>
    %43 = vector.extract_strided_slice %33 {offsets = [3, 0], sizes = [1, 128], strides = [1, 1]} : vector<9x128xf32> to vector<1x128xf32>
    %44 = vector.shape_cast %43 : vector<1x128xf32> to vector<128xf32>
    %45 = vector.shape_cast %44 : vector<128xf32> to vector<1x1x1x128xf32>
    %46 = vector.extract_strided_slice %33 {offsets = [4, 0], sizes = [1, 128], strides = [1, 1]} : vector<9x128xf32> to vector<1x128xf32>
    %47 = vector.shape_cast %46 : vector<1x128xf32> to vector<128xf32>
    %48 = vector.shape_cast %47 : vector<128xf32> to vector<1x1x1x128xf32>
    %49 = vector.extract_strided_slice %33 {offsets = [5, 0], sizes = [1, 128], strides = [1, 1]} : vector<9x128xf32> to vector<1x128xf32>
    %50 = vector.shape_cast %49 : vector<1x128xf32> to vector<128xf32>
    %51 = vector.shape_cast %50 : vector<128xf32> to vector<1x1x1x128xf32>
    %52 = vector.extract_strided_slice %33 {offsets = [6, 0], sizes = [1, 128], strides = [1, 1]} : vector<9x128xf32> to vector<1x128xf32>
    %53 = vector.shape_cast %52 : vector<1x128xf32> to vector<128xf32>
    %54 = vector.shape_cast %53 : vector<128xf32> to vector<1x1x1x128xf32>
    %55 = vector.extract_strided_slice %33 {offsets = [7, 0], sizes = [1, 128], strides = [1, 1]} : vector<9x128xf32> to vector<1x128xf32>
    %56 = vector.shape_cast %55 : vector<1x128xf32> to vector<128xf32>
    %57 = vector.shape_cast %56 : vector<128xf32> to vector<1x1x1x128xf32>
    %58 = vector.extract_strided_slice %33 {offsets = [8, 0], sizes = [1, 128], strides = [1, 1]} : vector<9x128xf32> to vector<1x128xf32>
    %59 = vector.shape_cast %58 : vector<1x128xf32> to vector<128xf32>
    %60 = vector.shape_cast %59 : vector<128xf32> to vector<1x1x1x128xf32>
    %c0_34 = arith.constant 0 : index
    %c0_35 = arith.constant 0 : index
    %61 = vector.load %arg7[%c0_34, %c0_35] : memref<1x128xf32, #tpu.memory_space<vmem>>, vector<1x128xf32>
    %62 = vector.shape_cast %61 : vector<1x128xf32> to vector<1x1x1x128xf32>
    %cst_36 = arith.constant 0.000000e+00 : f32
    %63 = vector.broadcast %cst_36 : f32 to vector<1x128xf32>
    %cst_37 = arith.constant 0.000000e+00 : f32
    %64 = vector.broadcast %cst_37 : f32 to vector<1x8x16x128xf32>
    %c0_38 = arith.constant 0 : index
    %c0_39 = arith.constant 0 : index
    %c7 = arith.constant 7 : index
    %c0_40 = arith.constant 0 : index
    %65 = vector.load %arg19[%c0_38, %c0_39, %c7, %c0_40] : memref<1x18x32x128xf32, #tpu.memory_space<vmem>>, vector<1x10x16x128xf32>
    %66 = vector.extract_strided_slice %65 {offsets = [0, 0, 0, 0], sizes = [1, 8, 16, 128], strides = [1, 1, 1, 1]} : vector<1x10x16x128xf32> to vector<1x8x16x128xf32>
    %67 = vector.broadcast %36 : vector<1x1x1x128xf32> to vector<1x8x16x128xf32>
    %68 = arith.mulf %66, %67 : vector<1x8x16x128xf32>
    %69 = arith.addf %64, %68 : vector<1x8x16x128xf32>
    %70 = vector.extract_strided_slice %65 {offsets = [0, 1, 0, 0], sizes = [1, 8, 16, 128], strides = [1, 1, 1, 1]} : vector<1x10x16x128xf32> to vector<1x8x16x128xf32>
    %71 = vector.broadcast %45 : vector<1x1x1x128xf32> to vector<1x8x16x128xf32>
    %72 = arith.mulf %70, %71 : vector<1x8x16x128xf32>
    %73 = arith.addf %69, %72 : vector<1x8x16x128xf32>
    %74 = vector.extract_strided_slice %65 {offsets = [0, 2, 0, 0], sizes = [1, 8, 16, 128], strides = [1, 1, 1, 1]} : vector<1x10x16x128xf32> to vector<1x8x16x128xf32>
    %75 = vector.broadcast %54 : vector<1x1x1x128xf32> to vector<1x8x16x128xf32>
    %76 = arith.mulf %74, %75 : vector<1x8x16x128xf32>
    %77 = arith.addf %73, %76 : vector<1x8x16x128xf32>
    %c0_41 = arith.constant 0 : index
    %c0_42 = arith.constant 0 : index
    %c8_43 = arith.constant 8 : index
    %c0_44 = arith.constant 0 : index
    %78 = vector.load %arg19[%c0_41, %c0_42, %c8_43, %c0_44] : memref<1x18x32x128xf32, #tpu.memory_space<vmem>>, vector<1x10x16x128xf32>
    %79 = vector.extract_strided_slice %78 {offsets = [0, 0, 0, 0], sizes = [1, 8, 16, 128], strides = [1, 1, 1, 1]} : vector<1x10x16x128xf32> to vector<1x8x16x128xf32>
    %80 = vector.broadcast %39 : vector<1x1x1x128xf32> to vector<1x8x16x128xf32>
    %81 = arith.mulf %79, %80 : vector<1x8x16x128xf32>
    %82 = arith.addf %77, %81 : vector<1x8x16x128xf32>
    %83 = vector.extract_strided_slice %78 {offsets = [0, 1, 0, 0], sizes = [1, 8, 16, 128], strides = [1, 1, 1, 1]} : vector<1x10x16x128xf32> to vector<1x8x16x128xf32>
    %84 = vector.broadcast %48 : vector<1x1x1x128xf32> to vector<1x8x16x128xf32>
    %85 = arith.mulf %83, %84 : vector<1x8x16x128xf32>
    %86 = arith.addf %82, %85 : vector<1x8x16x128xf32>
    %87 = vector.extract_strided_slice %78 {offsets = [0, 2, 0, 0], sizes = [1, 8, 16, 128], strides = [1, 1, 1, 1]} : vector<1x10x16x128xf32> to vector<1x8x16x128xf32>
    %88 = vector.broadcast %57 : vector<1x1x1x128xf32> to vector<1x8x16x128xf32>
    %89 = arith.mulf %87, %88 : vector<1x8x16x128xf32>
    %90 = arith.addf %86, %89 : vector<1x8x16x128xf32>
    %c0_45 = arith.constant 0 : index
    %c0_46 = arith.constant 0 : index
    %c9 = arith.constant 9 : index
    %c0_47 = arith.constant 0 : index
    %91 = vector.load %arg19[%c0_45, %c0_46, %c9, %c0_47] : memref<1x18x32x128xf32, #tpu.memory_space<vmem>>, vector<1x10x16x128xf32>
    %92 = vector.extract_strided_slice %91 {offsets = [0, 0, 0, 0], sizes = [1, 8, 16, 128], strides = [1, 1, 1, 1]} : vector<1x10x16x128xf32> to vector<1x8x16x128xf32>
    %93 = vector.broadcast %42 : vector<1x1x1x128xf32> to vector<1x8x16x128xf32>
    %94 = arith.mulf %92, %93 : vector<1x8x16x128xf32>
    %95 = arith.addf %90, %94 : vector<1x8x16x128xf32>
    %96 = vector.extract_strided_slice %91 {offsets = [0, 1, 0, 0], sizes = [1, 8, 16, 128], strides = [1, 1, 1, 1]} : vector<1x10x16x128xf32> to vector<1x8x16x128xf32>
    %97 = vector.broadcast %51 : vector<1x1x1x128xf32> to vector<1x8x16x128xf32>
    %98 = arith.mulf %96, %97 : vector<1x8x16x128xf32>
    %99 = arith.addf %95, %98 : vector<1x8x16x128xf32>
    %100 = vector.extract_strided_slice %91 {offsets = [0, 2, 0, 0], sizes = [1, 8, 16, 128], strides = [1, 1, 1, 1]} : vector<1x10x16x128xf32> to vector<1x8x16x128xf32>
    %101 = vector.broadcast %60 : vector<1x1x1x128xf32> to vector<1x8x16x128xf32>
    %102 = arith.mulf %100, %101 : vector<1x8x16x128xf32>
    %103 = arith.addf %99, %102 : vector<1x8x16x128xf32>
    %104 = vector.broadcast %62 : vector<1x1x1x128xf32> to vector<1x8x16x128xf32>
    %105 = arith.addf %103, %104 : vector<1x8x16x128xf32>
    %106 = arith.negf %105 : vector<1x8x16x128xf32>
    %107 = math.exp %106 : vector<1x8x16x128xf32>
    %cst_48 = arith.constant 1.000000e+00 : f32
    %108 = vector.broadcast %cst_48 : f32 to vector<1x8x16x128xf32>
    %109 = arith.addf %108, %107 : vector<1x8x16x128xf32>
    %110 = arith.divf %108, %109 : vector<1x8x16x128xf32>
    %111 = arith.mulf %105, %110 : vector<1x8x16x128xf32>
    %112 = arith.truncf %111 : vector<1x8x16x128xf32> to vector<1x8x16x128xbf16>
    %c0_49 = arith.constant 0 : index
    %c0_50 = arith.constant 0 : index
    %c0_51 = arith.constant 0 : index
    %c0_52 = arith.constant 0 : index
    %113 = vector.load %arg20[%c0_49, %c0_50, %c0_51, %c0_52] : memref<1x16x16x128xbf16, #tpu.memory_space<vmem>>, vector<1x8x16x128xbf16>
    tpu.vector_store %arg20[%c0_49, %c0_50, %c0_51, %c0_52], %112 {strides = array<i32>} : memref<1x16x16x128xbf16, #tpu.memory_space<vmem>>, vector<1x8x16x128xbf16>,
    %114 = vector.shape_cast %111 : vector<1x8x16x128xf32> to vector<128x128xf32>
    %cst_53 = arith.constant dense<0.000000e+00> : vector<128xf32>
    %115 = vector.multi_reduction <add>, %114, %cst_53 [0] : vector<128x128xf32> to vector<128xf32>
    %116 = vector.shape_cast %115 : vector<128xf32> to vector<1x128xf32>
    %117 = arith.addf %63, %116 : vector<1x128xf32>
    %cst_54 = arith.constant 0.000000e+00 : f32
    %118 = vector.broadcast %cst_54 : f32 to vector<1x8x16x128xf32>
    %c0_55 = arith.constant 0 : index
    %c8_56 = arith.constant 8 : index
    %c7_57 = arith.constant 7 : index
    %c0_58 = arith.constant 0 : index
    %119 = vector.load %arg19[%c0_55, %c8_56, %c7_57, %c0_58] : memref<1x18x32x128xf32, #tpu.memory_space<vmem>>, vector<1x10x16x128xf32>
    %120 = vector.extract_strided_slice %119 {offsets = [0, 0, 0, 0], sizes = [1, 8, 16, 128], strides = [1, 1, 1, 1]} : vector<1x10x16x128xf32> to vector<1x8x16x128xf32>
    %121 = vector.broadcast %36 : vector<1x1x1x128xf32> to vector<1x8x16x128xf32>
    %122 = arith.mulf %120, %121 : vector<1x8x16x128xf32>
    %123 = arith.addf %118, %122 : vector<1x8x16x128xf32>
    %124 = vector.extract_strided_slice %119 {offsets = [0, 1, 0, 0], sizes = [1, 8, 16, 128], strides = [1, 1, 1, 1]} : vector<1x10x16x128xf32> to vector<1x8x16x128xf32>
    %125 = vector.broadcast %45 : vector<1x1x1x128xf32> to vector<1x8x16x128xf32>
    %126 = arith.mulf %124, %125 : vector<1x8x16x128xf32>
    %127 = arith.addf %123, %126 : vector<1x8x16x128xf32>
    %128 = vector.extract_strided_slice %119 {offsets = [0, 2, 0, 0], sizes = [1, 8, 16, 128], strides = [1, 1, 1, 1]} : vector<1x10x16x128xf32> to vector<1x8x16x128xf32>
    %129 = vector.broadcast %54 : vector<1x1x1x128xf32> to vector<1x8x16x128xf32>
    %130 = arith.mulf %128, %129 : vector<1x8x16x128xf32>
    %131 = arith.addf %127, %130 : vector<1x8x16x128xf32>
    %c0_59 = arith.constant 0 : index
    %c8_60 = arith.constant 8 : index
    %c8_61 = arith.constant 8 : index
    %c0_62 = arith.constant 0 : index
    %132 = vector.load %arg19[%c0_59, %c8_60, %c8_61, %c0_62] : memref<1x18x32x128xf32, #tpu.memory_space<vmem>>, vector<1x10x16x128xf32>
    %133 = vector.extract_strided_slice %132 {offsets = [0, 0, 0, 0], sizes = [1, 8, 16, 128], strides = [1, 1, 1, 1]} : vector<1x10x16x128xf32> to vector<1x8x16x128xf32>
    %134 = vector.broadcast %39 : vector<1x1x1x128xf32> to vector<1x8x16x128xf32>
    %135 = arith.mulf %133, %134 : vector<1x8x16x128xf32>
    %136 = arith.addf %131, %135 : vector<1x8x16x128xf32>
    %137 = vector.extract_strided_slice %132 {offsets = [0, 1, 0, 0], sizes = [1, 8, 16, 128], strides = [1, 1, 1, 1]} : vector<1x10x16x128xf32> to vector<1x8x16x128xf32>
    %138 = vector.broadcast %48 : vector<1x1x1x128xf32> to vector<1x8x16x128xf32>
    %139 = arith.mulf %137, %138 : vector<1x8x16x128xf32>
    %140 = arith.addf %136, %139 : vector<1x8x16x128xf32>
    %141 = vector.extract_strided_slice %132 {offsets = [0, 2, 0, 0], sizes = [1, 8, 16, 128], strides = [1, 1, 1, 1]} : vector<1x10x16x128xf32> to vector<1x8x16x128xf32>
    %142 = vector.broadcast %57 : vector<1x1x1x128xf32> to vector<1x8x16x128xf32>
    %143 = arith.mulf %141, %142 : vector<1x8x16x128xf32>
    %144 = arith.addf %140, %143 : vector<1x8x16x128xf32>
    %c0_63 = arith.constant 0 : index
    %c8_64 = arith.constant 8 : index
    %c9_65 = arith.constant 9 : index
    %c0_66 = arith.constant 0 : index
    %145 = vector.load %arg19[%c0_63, %c8_64, %c9_65, %c0_66] : memref<1x18x32x128xf32, #tpu.memory_space<vmem>>, vector<1x10x16x128xf32>
    %146 = vector.extract_strided_slice %145 {offsets = [0, 0, 0, 0], sizes = [1, 8, 16, 128], strides = [1, 1, 1, 1]} : vector<1x10x16x128xf32> to vector<1x8x16x128xf32>
    %147 = vector.broadcast %42 : vector<1x1x1x128xf32> to vector<1x8x16x128xf32>
    %148 = arith.mulf %146, %147 : vector<1x8x16x128xf32>
    %149 = arith.addf %144, %148 : vector<1x8x16x128xf32>
    %150 = vector.extract_strided_slice %145 {offsets = [0, 1, 0, 0], sizes = [1, 8, 16, 128], strides = [1, 1, 1, 1]} : vector<1x10x16x128xf32> to vector<1x8x16x128xf32>
    %151 = vector.broadcast %51 : vector<1x1x1x128xf32> to vector<1x8x16x128xf32>
    %152 = arith.mulf %150, %151 : vector<1x8x16x128xf32>
    %153 = arith.addf %149, %152 : vector<1x8x16x128xf32>
    %154 = vector.extract_strided_slice %145 {offsets = [0, 2, 0, 0], sizes = [1, 8, 16, 128], strides = [1, 1, 1, 1]} : vector<1x10x16x128xf32> to vector<1x8x16x128xf32>
    %155 = vector.broadcast %60 : vector<1x1x1x128xf32> to vector<1x8x16x128xf32>
    %156 = arith.mulf %154, %155 : vector<1x8x16x128xf32>
    %157 = arith.addf %153, %156 : vector<1x8x16x128xf32>
    %158 = vector.broadcast %62 : vector<1x1x1x128xf32> to vector<1x8x16x128xf32>
    %159 = arith.addf %157, %158 : vector<1x8x16x128xf32>
    %160 = arith.negf %159 : vector<1x8x16x128xf32>
    %161 = math.exp %160 : vector<1x8x16x128xf32>
    %cst_67 = arith.constant 1.000000e+00 : f32
    %162 = vector.broadcast %cst_67 : f32 to vector<1x8x16x128xf32>
    %163 = arith.addf %162, %161 : vector<1x8x16x128xf32>
    %164 = arith.divf %162, %163 : vector<1x8x16x128xf32>
    %165 = arith.mulf %159, %164 : vector<1x8x16x128xf32>
    %166 = arith.truncf %165 : vector<1x8x16x128xf32> to vector<1x8x16x128xbf16>
    %c0_68 = arith.constant 0 : index
    %c8_69 = arith.constant 8 : index
    %c0_70 = arith.constant 0 : index
    %c0_71 = arith.constant 0 : index
    %167 = vector.load %arg20[%c0_68, %c8_69, %c0_70, %c0_71] : memref<1x16x16x128xbf16, #tpu.memory_space<vmem>>, vector<1x8x16x128xbf16>
    tpu.vector_store %arg20[%c0_68, %c8_69, %c0_70, %c0_71], %166 {strides = array<i32>} : memref<1x16x16x128xbf16, #tpu.memory_space<vmem>>, vector<1x8x16x128xbf16>,
    %168 = vector.shape_cast %165 : vector<1x8x16x128xf32> to vector<128x128xf32>
    %cst_72 = arith.constant dense<0.000000e+00> : vector<128xf32>
    %169 = vector.multi_reduction <add>, %168, %cst_72 [0] : vector<128x128xf32> to vector<128xf32>
    %170 = vector.shape_cast %169 : vector<128xf32> to vector<1x128xf32>
    %171 = arith.addf %117, %170 : vector<1x128xf32>
    %cst_73 = arith.constant 3.906250e-03 : f32
    %172 = vector.broadcast %cst_73 : f32 to vector<1x128xf32>
    %173 = arith.mulf %171, %172 : vector<1x128xf32>
    %174 = arith.truncf %173 : vector<1x128xf32> to vector<1x128xbf16>
    %c0_74 = arith.constant 0 : index
    %c0_75 = arith.constant 0 : index
    %175 = vector.load %arg8[%c0_74, %c0_75] : memref<128x8xbf16, #tpu.memory_space<vmem>>, vector<128x8xbf16>
    %cst_76 = arith.constant dense<0.000000e+00> : vector<1x8xf32>
    %176 = tpu.matmul %174, %175, %cst_76 {dimension_numbers = #tpu.dot_dimension_numbers<[1], [0], [0], [1], [0, 0, 1, 1], [], []>} : vector<1x128xbf16>, vector<128x8xbf16>, vector<1x8xf32> -> vector<1x8xf32>
    %c0_77 = arith.constant 0 : index
    %c0_78 = arith.constant 0 : index
    %177 = vector.load %arg9[%c0_77, %c0_78] : memref<1x8xf32, #tpu.memory_space<vmem>>, vector<1x8xf32>
    %178 = arith.addf %176, %177 : vector<1x8xf32>
    %179 = arith.negf %178 : vector<1x8xf32>
    %180 = math.exp %179 : vector<1x8xf32>
    %cst_79 = arith.constant 1.000000e+00 : f32
    %181 = vector.broadcast %cst_79 : f32 to vector<1x8xf32>
    %182 = arith.addf %181, %180 : vector<1x8xf32>
    %183 = arith.divf %181, %182 : vector<1x8xf32>
    %184 = arith.mulf %178, %183 : vector<1x8xf32>
    %185 = arith.truncf %184 : vector<1x8xf32> to vector<1x8xbf16>
    %c0_80 = arith.constant 0 : index
    %c0_81 = arith.constant 0 : index
    %186 = vector.load %arg10[%c0_80, %c0_81] : memref<8x128xbf16, #tpu.memory_space<vmem>>, vector<8x128xbf16>
    %cst_82 = arith.constant dense<0.000000e+00> : vector<1x128xf32>
    %187 = tpu.matmul %185, %186, %cst_82 {dimension_numbers = #tpu.dot_dimension_numbers<[1], [0], [0], [1], [0, 0, 1, 1], [], []>} : vector<1x8xbf16>, vector<8x128xbf16>, vector<1x128xf32> -> vector<1x128xf32>
    %c0_83 = arith.constant 0 : index
    %c0_84 = arith.constant 0 : index
    %188 = vector.load %arg11[%c0_83, %c0_84] : memref<1x128xf32, #tpu.memory_space<vmem>>, vector<1x128xf32>
    %189 = arith.addf %187, %188 : vector<1x128xf32>
    %190 = arith.negf %189 : vector<1x128xf32>
    %191 = math.exp %190 : vector<1x128xf32>
    %cst_85 = arith.constant 1.000000e+00 : f32
    %192 = vector.broadcast %cst_85 : f32 to vector<1x128xf32>
    %193 = arith.addf %192, %191 : vector<1x128xf32>
    %194 = arith.divf %192, %193 : vector<1x128xf32>
    %c0_86 = arith.constant 0 : index
    %c0_87 = arith.constant 0 : index
    %c0_88 = arith.constant 0 : index
    %c0_89 = arith.constant 0 : index
    %195 = vector.load %arg20[%c0_86, %c0_87, %c0_88, %c0_89] : memref<1x16x16x128xbf16, #tpu.memory_space<vmem>>, vector<1x16x16x128xbf16>
    %196 = vector.shape_cast %195 : vector<1x16x16x128xbf16> to vector<256x128xbf16>
    %197 = arith.extf %196 : vector<256x128xbf16> to vector<256x128xf32>
    %198 = vector.broadcast %194 : vector<1x128xf32> to vector<256x128xf32>
    %199 = arith.mulf %197, %198 : vector<256x128xf32>
    %200 = arith.truncf %199 : vector<256x128xf32> to vector<256x128xbf16>
    %c0_90 = arith.constant 0 : index
    %c0_91 = arith.constant 0 : index
    %201 = vector.load %arg12[%c0_90, %c0_91] : memref<128x32xbf16, #tpu.memory_space<vmem>>, vector<128x32xbf16>
    %cst_92 = arith.constant dense<0.000000e+00> : vector<256x32xf32>
    %202 = tpu.matmul %200, %201, %cst_92 {dimension_numbers = #tpu.dot_dimension_numbers<[1], [0], [0], [1], [0, 0, 1, 1], [], []>} : vector<256x128xbf16>, vector<128x32xbf16>, vector<256x32xf32> -> vector<256x32xf32>
    %c0_93 = arith.constant 0 : index
    %c0_94 = arith.constant 0 : index
    %203 = vector.load %arg13[%c0_93, %c0_94] : memref<1x32xf32, #tpu.memory_space<vmem>>, vector<1x32xf32>
    %204 = vector.broadcast %203 : vector<1x32xf32> to vector<256x32xf32>
    %205 = arith.addf %202, %204 : vector<256x32xf32>
    %206 = arith.addf %205, %12 : vector<256x32xf32>
    %207 = arith.truncf %206 : vector<256x32xf32> to vector<256x32xbf16>
    %c0_95 = arith.constant 0 : index
    %c0_96 = arith.constant 0 : index
    %208 = vector.load %arg14[%c0_95, %c0_96] : memref<32x64xbf16, #tpu.memory_space<vmem>>, vector<32x64xbf16>
    %cst_97 = arith.constant dense<0.000000e+00> : vector<256x64xf32>
    %209 = tpu.matmul %207, %208, %cst_97 {dimension_numbers = #tpu.dot_dimension_numbers<[1], [0], [0], [1], [0, 0, 1, 1], [], []>} : vector<256x32xbf16>, vector<32x64xbf16>, vector<256x64xf32> -> vector<256x64xf32>
    %c0_98 = arith.constant 0 : index
    %c0_99 = arith.constant 0 : index
    %210 = vector.load %arg15[%c0_98, %c0_99] : memref<1x64xf32, #tpu.memory_space<vmem>>, vector<1x64xf32>
    %211 = vector.broadcast %210 : vector<1x64xf32> to vector<256x64xf32>
    %212 = arith.addf %209, %211 : vector<256x64xf32>
    %213 = arith.negf %212 : vector<256x64xf32>
    %214 = math.exp %213 : vector<256x64xf32>
    %cst_100 = arith.constant 1.000000e+00 : f32
    %215 = vector.broadcast %cst_100 : f32 to vector<256x64xf32>
    %216 = arith.addf %215, %214 : vector<256x64xf32>
    %217 = arith.divf %215, %216 : vector<256x64xf32>
    %218 = arith.mulf %212, %217 : vector<256x64xf32>
    %cst_101 = arith.constant dense<0.000000e+00> : vector<64xf32>
    %219 = vector.multi_reduction <add>, %218, %cst_101 [0] : vector<256x64xf32> to vector<64xf32>
    %220 = vector.shape_cast %219 : vector<64xf32> to vector<1x64xf32>
    %cst_102 = arith.constant 3.906250e-03 : f32
    %221 = vector.broadcast %cst_102 : f32 to vector<1x64xf32>
    %222 = arith.mulf %220, %221 : vector<1x64xf32>
    %223 = arith.truncf %222 : vector<1x64xf32> to vector<1x64xbf16>
    %c0_103 = arith.constant 0 : index
    %c0_104 = arith.constant 0 : index
    %224 = vector.load %arg16[%c0_103, %c0_104] : memref<64x128xbf16, #tpu.memory_space<vmem>>, vector<64x128xbf16>
    %cst_105 = arith.constant dense<0.000000e+00> : vector<1x128xf32>
    %225 = tpu.matmul %223, %224, %cst_105 {dimension_numbers = #tpu.dot_dimension_numbers<[1], [0], [0], [1], [0, 0, 1, 1], [], []>} : vector<1x64xbf16>, vector<64x128xbf16>, vector<1x128xf32> -> vector<1x128xf32>
    %c0_106 = arith.constant 0 : index
    %c0_107 = arith.constant 0 : index
    %226 = vector.load %arg17[%c0_106, %c0_107] : memref<1x128xf32, #tpu.memory_space<vmem>>, vector<1x128xf32>
    %227 = arith.addf %225, %226 : vector<1x128xf32>
    %228 = arith.negf %227 : vector<1x128xf32>
    %229 = math.exp %228 : vector<1x128xf32>
    %cst_108 = arith.constant 1.000000e+00 : f32
    %230 = vector.broadcast %cst_108 : f32 to vector<1x128xf32>
    %231 = arith.addf %230, %229 : vector<1x128xf32>
    %232 = arith.divf %230, %231 : vector<1x128xf32>
    %233 = vector.shape_cast %232 : vector<1x128xf32> to vector<1x1x128xf32>
    %c0_109 = arith.constant 0 : index
    %c0_110 = arith.constant 0 : index
    %c0_111 = arith.constant 0 : index
    %234 = vector.load %arg18[%c0_109, %c0_110, %c0_111] : memref<1x1x128xf32, #tpu.memory_space<vmem>>, vector<1x1x128xf32>
    tpu.vector_store %arg18[%c0_109, %c0_110, %c0_111], %233 {strides = array<i32>} : memref<1x1x128xf32, #tpu.memory_space<vmem>>, vector<1x1x128xf32>,
    return
  }
  func.func @transform_0(%arg0: i32) -> (i32, i32, i32, i32) {
    %c0_i32 = arith.constant 0 : i32
    %c0_i32_0 = arith.constant 0 : i32
    %c0_i32_1 = arith.constant 0 : i32
    %c0_i32_2 = arith.constant 0 : i32
    return %arg0, %c0_i32, %c0_i32_0, %c0_i32_1 : i32, i32, i32, i32
  }
  func.func @transform_1(%arg0: i32) -> (i32, i32) {
    %c0_i32 = arith.constant 0 : i32
    %c0_i32_0 = arith.constant 0 : i32
    %c0_i32_1 = arith.constant 0 : i32
    return %c0_i32, %c0_i32_0 : i32, i32
  }
  func.func @transform_2(%arg0: i32) -> (i32, i32) {
    %c0_i32 = arith.constant 0 : i32
    %c0_i32_0 = arith.constant 0 : i32
    %c0_i32_1 = arith.constant 0 : i32
    return %c0_i32, %c0_i32_0 : i32, i32
  }
  func.func @transform_3(%arg0: i32) -> (i32, i32) {
    %c0_i32 = arith.constant 0 : i32
    %c0_i32_0 = arith.constant 0 : i32
    %c0_i32_1 = arith.constant 0 : i32
    return %c0_i32, %c0_i32_0 : i32, i32
  }
  func.func @transform_4(%arg0: i32) -> (i32, i32) {
    %c0_i32 = arith.constant 0 : i32
    %c0_i32_0 = arith.constant 0 : i32
    %c0_i32_1 = arith.constant 0 : i32
    return %c0_i32, %c0_i32_0 : i32, i32
  }
  func.func @transform_5(%arg0: i32) -> (i32, i32) {
    %c0_i32 = arith.constant 0 : i32
    %c0_i32_0 = arith.constant 0 : i32
    %c0_i32_1 = arith.constant 0 : i32
    return %c0_i32, %c0_i32_0 : i32, i32
  }
  func.func @transform_6(%arg0: i32) -> (i32, i32) {
    %c0_i32 = arith.constant 0 : i32
    %c0_i32_0 = arith.constant 0 : i32
    %c0_i32_1 = arith.constant 0 : i32
    return %c0_i32, %c0_i32_0 : i32, i32
  }
  func.func @transform_7(%arg0: i32) -> (i32, i32) {
    %c0_i32 = arith.constant 0 : i32
    %c0_i32_0 = arith.constant 0 : i32
    %c0_i32_1 = arith.constant 0 : i32
    return %c0_i32, %c0_i32_0 : i32, i32
  }
  func.func @transform_8(%arg0: i32) -> (i32, i32) {
    %c0_i32 = arith.constant 0 : i32
    %c0_i32_0 = arith.constant 0 : i32
    %c0_i32_1 = arith.constant 0 : i32
    return %c0_i32, %c0_i32_0 : i32, i32
  }
  func.func @transform_9(%arg0: i32) -> (i32, i32) {
    %c0_i32 = arith.constant 0 : i32
    %c0_i32_0 = arith.constant 0 : i32
    %c0_i32_1 = arith.constant 0 : i32
    return %c0_i32, %c0_i32_0 : i32, i32
  }
  func.func @transform_10(%arg0: i32) -> (i32, i32) {
    %c0_i32 = arith.constant 0 : i32
    %c0_i32_0 = arith.constant 0 : i32
    %c0_i32_1 = arith.constant 0 : i32
    return %c0_i32, %c0_i32_0 : i32, i32
  }
  func.func @transform_11(%arg0: i32) -> (i32, i32) {
    %c0_i32 = arith.constant 0 : i32
    %c0_i32_0 = arith.constant 0 : i32
    %c0_i32_1 = arith.constant 0 : i32
    return %c0_i32, %c0_i32_0 : i32, i32
  }
  func.func @transform_12(%arg0: i32) -> (i32, i32) {
    %c0_i32 = arith.constant 0 : i32
    %c0_i32_0 = arith.constant 0 : i32
    %c0_i32_1 = arith.constant 0 : i32
    return %c0_i32, %c0_i32_0 : i32, i32
  }
  func.func @transform_13(%arg0: i32) -> (i32, i32) {
    %c0_i32 = arith.constant 0 : i32
    %c0_i32_0 = arith.constant 0 : i32
    %c0_i32_1 = arith.constant 0 : i32
    return %c0_i32, %c0_i32_0 : i32, i32
  }
  func.func @transform_14(%arg0: i32) -> (i32, i32) {
    %c0_i32 = arith.constant 0 : i32
    %c0_i32_0 = arith.constant 0 : i32
    %c0_i32_1 = arith.constant 0 : i32
    return %c0_i32, %c0_i32_0 : i32, i32
  }
  func.func @transform_15(%arg0: i32) -> (i32, i32) {
    %c0_i32 = arith.constant 0 : i32
    %c0_i32_0 = arith.constant 0 : i32
    %c0_i32_1 = arith.constant 0 : i32
    return %c0_i32, %c0_i32_0 : i32, i32
  }
  func.func @transform_16(%arg0: i32) -> (i32, i32) {
    %c0_i32 = arith.constant 0 : i32
    %c0_i32_0 = arith.constant 0 : i32
    %c0_i32_1 = arith.constant 0 : i32
    return %c0_i32, %c0_i32_0 : i32, i32
  }
  func.func @transform_17(%arg0: i32) -> (i32, i32, i32) {
    %c0_i32 = arith.constant 0 : i32
    %c0_i32_0 = arith.constant 0 : i32
    %c0_i32_1 = arith.constant 0 : i32
    return %arg0, %c0_i32, %c0_i32_0 : i32, i32, i32
  }
}

</mosaic_0001>

<llo_original>
// kernel: efficientnet_forward.1
$region0: #{efficientnet_forward.1}
  #allocation0 [shape = 'u32[]', space=smem, size = 0x4, offset = 0x4, fixed_abs, tag = 'smem constant byte address 0x4 - core index']
  #allocation1 [shape = 'u32[144,128]{1,0:T(1,128)}', space=vmem, size = 0x12000, scoped, tag = 'internal scratch']
  #allocation2 [shape = 'f32[1,18,32,128]{3,2,1,0:T(8,128)}', space=vmem, size = 0x48000, scoped, tag = 'scratch operand']
  #allocation3 [shape = 'bf16[1,16,16,128]{3,2,1,0:T(16,128)(2,1)}', space=vmem, size = 0x10000, scoped, tag = 'scratch operand']
  %s0 = inlined_call_operand.vmem [shape: bf16[2,16,16,48], index: 0, kind: input, shape index: {}]
  %s1 = inlined_call_operand.vmem [shape: bf16[48,32], index: 1, kind: input, shape index: {}]
  %s2 = inlined_call_operand.vmem [shape: f32[1,32], index: 2, kind: input, shape index: {}]
  %s3 = inlined_call_operand.vmem [shape: bf16[32,128], index: 3, kind: input, shape index: {}]
  %s4 = inlined_call_operand.vmem [shape: f32[1,128], index: 4, kind: input, shape index: {}]
  %s5 = inlined_call_operand.vmem [shape: f32[9,128], index: 5, kind: input, shape index: {}]
  %s6 = inlined_call_operand.vmem [shape: f32[1,128], index: 6, kind: input, shape index: {}]
  %s7 = inlined_call_operand.vmem [shape: bf16[128,8], index: 7, kind: input, shape index: {}]
  %s8 = inlined_call_operand.vmem [shape: f32[1,8], index: 8, kind: input, shape index: {}]
  %s9 = inlined_call_operand.vmem [shape: bf16[8,128], index: 9, kind: input, shape index: {}]
  %s10 = inlined_call_operand.vmem [shape: f32[1,128], index: 10, kind: input, shape index: {}]
  %s11 = inlined_call_operand.vmem [shape: bf16[128,32], index: 11, kind: input, shape index: {}]
  %s12 = inlined_call_operand.vmem [shape: f32[1,32], index: 12, kind: input, shape index: {}]
  %s13 = inlined_call_operand.vmem [shape: bf16[32,64], index: 13, kind: input, shape index: {}]
  %s14 = inlined_call_operand.vmem [shape: f32[1,64], index: 14, kind: input, shape index: {}]
  %s15 = inlined_call_operand.vmem [shape: bf16[64,128], index: 15, kind: input, shape index: {}]
  %s16 = inlined_call_operand.vmem [shape: f32[1,128], index: 16, kind: input, shape index: {}]
  %s17 = inlined_call_operand.hbm [shape: f32[2,1,128], index: 17, kind: output, shape index: {}]
  %s18 = sld [smem:[#allocation0]]
  $region101: #{efficientnet_forward.1} parent=0
    _
  %s20 = ssub.s32 1, %s18
  %s21 = scalar_select 0, %s20, %s18
  $region1: #{efficientnet_forward.1} parent=0
    #allocation4 [shape = 'u8[1024]{0}', space=vmem, size = 0x400, scoped, tag = 'output window, operand 0']
    #allocation5 [shape = 's32[2]{0}', space=sflag, size = 0x8, scoped, tag = 'scoped memory for efficientnet_forward.1']
    %22 = vsyncpa [#allocation5], 0
    %s23 = scalar_lea.sflag [#allocation5], 1
    %24 = vsyncpa %s23, 0
    loop: start=0, step=1, limit=4
    $region2: #{efficientnet_forward.1} parent=1 // loop_pre_header
      _
    $region3: #{efficientnet_forward.1} parent=1 // loop_header
      %s26 = sphi 0, %s30
      %p27 = scmp.ge.s32.totalorder %s26, 4
      %s36 = sphi 0, %s38
      %s39 = sphi 0, %s36
      %s40 = sphi 0, %s39
      %s56 = sphi 0, %s40
      %s60 = sphi 0, %s60
      %s62 = sphi 0, %s60
      %s63 = sphi 0, %s62
      %s77 = sphi 0, %s63
      %s81 = sphi 0, %s81
      %s83 = sphi 0, %s81
      %s84 = sphi 0, %s83
      %s98 = sphi 0, %s84
      %s102 = sphi 0, %s102
      %s104 = sphi 0, %s102
      %s105 = sphi 0, %s104
      %s119 = sphi 0, %s105
      %s123 = sphi 0, %s123
      %s125 = sphi 0, %s123
      %s126 = sphi 0, %s125
      %s140 = sphi 0, %s126
      %s144 = sphi 0, %s144
      %s146 = sphi 0, %s144
      %s147 = sphi 0, %s146
      %s161 = sphi 0, %s147
      %s165 = sphi 0, %s165
      %s167 = sphi 0, %s165
      %s168 = sphi 0, %s167
      %s182 = sphi 0, %s168
      %s186 = sphi 0, %s186
      %s188 = sphi 0, %s186
      %s189 = sphi 0, %s188
      %s203 = sphi 0, %s189
      %s207 = sphi 0, %s207
      %s209 = sphi 0, %s207
      %s210 = sphi 0, %s209
      %s224 = sphi 0, %s210
      %s228 = sphi 0, %s228
      %s230 = sphi 0, %s228
      %s231 = sphi 0, %s230
      %s245 = sphi 0, %s231
      %s249 = sphi 0, %s249
      %s251 = sphi 0, %s249
      %s252 = sphi 0, %s251
      %s266 = sphi 0, %s252
      %s270 = sphi 0, %s270
      %s272 = sphi 0, %s270
      %s273 = sphi 0, %s272
      %s287 = sphi 0, %s273
      %s291 = sphi 0, %s291
      %s293 = sphi 0, %s291
      %s294 = sphi 0, %s293
      %s308 = sphi 0, %s294
      %s312 = sphi 0, %s312
      %s314 = sphi 0, %s312
      %s315 = sphi 0, %s314
      %s329 = sphi 0, %s315
      %s333 = sphi 0, %s333
      %s335 = sphi 0, %s333
      %s336 = sphi 0, %s335
      %s350 = sphi 0, %s336
      %s354 = sphi 0, %s354
      %s356 = sphi 0, %s354
      %s357 = sphi 0, %s356
      %s371 = sphi 0, %s357
      %s375 = sphi 0, %s375
      %s377 = sphi 0, %s375
      %s378 = sphi 0, %s377
      %s392 = sphi 0, %s378
      %s398 = sphi 0, %s400
      %s401 = sphi 0, %s398
      %s402 = sphi 0, %s401
      %s418 = sphi 0, %s402
    $region4: #{efficientnet_forward.1} parent=1 // loop_header_branch
      %29 = sbr.rel (%p27) target = $region8
    $region5: #{efficientnet_forward.1} parent=1 // loop_body
      %s31 = ssub.s32 %s26, 1
      %s32 = ssub.s32 %s26, 2
      %s33 = sadd.s32 %s26, 1
      %s34 = ssub.s32 %s26, %s33
      %p35 = scmp.eq.s32.totalorder %s34, 0
      %s37 = sadd.s32 %s36, 1
      %s38 = scalar_select %p35, %s36, %s37
      %p41 = pneg %p35
      %p42 = scmp.eq.s32.totalorder %s26, 1
      %p43 = por %p41, %p42
      %p44 = scmp.ne.s32.totalorder %s36, %s39
      %p45 = scmp.eq.s32.totalorder %s26, 0
      %p46 = por %p44, %p45
      %p47 = scmp.ne.s32.totalorder %s36, %s39
      %p48 = scmp.eq.s32.totalorder %s31, 1
      %p49 = por %p47, %p48
      %p50 = scmp.ne.s32.totalorder %s39, %s40
      %p51 = scmp.eq.s32.totalorder %s31, 0
      %p52 = por %p50, %p51
      %p53 = scmp.ne.s32.totalorder %s39, %s40
      %p54 = scmp.eq.s32.totalorder %s32, 1
      %p55 = por %p53, %p54
      %p57 = scmp.ne.s32.totalorder %s40, %s56
      %p58 = scmp.eq.s32.totalorder %s32, 0
      %p59 = por %p57, %p58
      %s61 = sadd.s32 %s60, 1
      %p64 = scmp.eq.s32.totalorder %s26, 1
      %p65 = scmp.ne.s32.totalorder %s60, %s62
      %p66 = scmp.eq.s32.totalorder %s26, 0
      %p67 = por %p65, %p66
      %p68 = scmp.ne.s32.totalorder %s60, %s62
      %p69 = scmp.eq.s32.totalorder %s31, 1
      %p70 = por %p68, %p69
      %p71 = scmp.ne.s32.totalorder %s62, %s63
      %p72 = scmp.eq.s32.totalorder %s31, 0
      %p73 = por %p71, %p72
      %p74 = scmp.ne.s32.totalorder %s62, %s63
      %p75 = scmp.eq.s32.totalorder %s32, 1
      %p76 = por %p74, %p75
      %p78 = scmp.ne.s32.totalorder %s63, %s77
      %p79 = scmp.eq.s32.totalorder %s32, 0
      %p80 = por %p78, %p79
      %s82 = sadd.s32 %s81, 1
      %p85 = scmp.eq.s32.totalorder %s26, 1
      %p86 = scmp.ne.s32.totalorder %s81, %s83
      %p87 = scmp.eq.s32.totalorder %s26, 0
      %p88 = por %p86, %p87
      %p89 = scmp.ne.s32.totalorder %s81, %s83
      %p90 = scmp.eq.s32.totalorder %s31, 1
      %p91 = por %p89, %p90
      %p92 = scmp.ne.s32.totalorder %s83, %s84
      %p93 = scmp.eq.s32.totalorder %s31, 0
      %p94 = por %p92, %p93
      %p95 = scmp.ne.s32.totalorder %s83, %s84
      %p96 = scmp.eq.s32.totalorder %s32, 1
      %p97 = por %p95, %p96
      %p99 = scmp.ne.s32.totalorder %s84, %s98
      %p100 = scmp.eq.s32.totalorder %s32, 0
      %p101 = por %p99, %p100
      %s103 = sadd.s32 %s102, 1
      %p106 = scmp.eq.s32.totalorder %s26, 1
      %p107 = scmp.ne.s32.totalorder %s102, %s104
      %p108 = scmp.eq.s32.totalorder %s26, 0
      %p109 = por %p107, %p108
      %p110 = scmp.ne.s32.totalorder %s102, %s104
      %p111 = scmp.eq.s32.totalorder %s31, 1
      %p112 = por %p110, %p111
      %p113 = scmp.ne.s32.totalorder %s104, %s105
      %p114 = scmp.eq.s32.totalorder %s31, 0
      %p115 = por %p113, %p114
      %p116 = scmp.ne.s32.totalorder %s104, %s105
      %p117 = scmp.eq.s32.totalorder %s32, 1
      %p118 = por %p116, %p117
      %p120 = scmp.ne.s32.totalorder %s105, %s119
      %p121 = scmp.eq.s32.totalorder %s32, 0
      %p122 = por %p120, %p121
      %s124 = sadd.s32 %s123, 1
      %p127 = scmp.eq.s32.totalorder %s26, 1
      %p128 = scmp.ne.s32.totalorder %s123, %s125
      %p129 = scmp.eq.s32.totalorder %s26, 0
      %p130 = por %p128, %p129
      %p131 = scmp.ne.s32.totalorder %s123, %s125
      %p132 = scmp.eq.s32.totalorder %s31, 1
      %p133 = por %p131, %p132
      %p134 = scmp.ne.s32.totalorder %s125, %s126
      %p135 = scmp.eq.s32.totalorder %s31, 0
      %p136 = por %p134, %p135
      %p137 = scmp.ne.s32.totalorder %s125, %s126
      %p138 = scmp.eq.s32.totalorder %s32, 1
      %p139 = por %p137, %p138
      %p141 = scmp.ne.s32.totalorder %s126, %s140
      %p142 = scmp.eq.s32.totalorder %s32, 0
      %p143 = por %p141, %p142
      %s145 = sadd.s32 %s144, 1
      %p148 = scmp.eq.s32.totalorder %s26, 1
      %p149 = scmp.ne.s32.totalorder %s144, %s146
      %p150 = scmp.eq.s32.totalorder %s26, 0
      %p151 = por %p149, %p150
      %p152 = scmp.ne.s32.totalorder %s144, %s146
      %p153 = scmp.eq.s32.totalorder %s31, 1
      %p154 = por %p152, %p153
      %p155 = scmp.ne.s32.totalorder %s146, %s147
      %p156 = scmp.eq.s32.totalorder %s31, 0
      %p157 = por %p155, %p156
      %p158 = scmp.ne.s32.totalorder %s146, %s147
      %p159 = scmp.eq.s32.totalorder %s32, 1
      %p160 = por %p158, %p159
      %p162 = scmp.ne.s32.totalorder %s147, %s161
      %p163 = scmp.eq.s32.totalorder %s32, 0
      %p164 = por %p162, %p163
      %s166 = sadd.s32 %s165, 1
      %p169 = scmp.eq.s32.totalorder %s26, 1
      %p170 = scmp.ne.s32.totalorder %s165, %s167
      %p171 = scmp.eq.s32.totalorder %s26, 0
      %p172 = por %p170, %p171
      %p173 = scmp.ne.s32.totalorder %s165, %s167
      %p174 = scmp.eq.s32.totalorder %s31, 1
      %p175 = por %p173, %p174
      %p176 = scmp.ne.s32.totalorder %s167, %s168
      %p177 = scmp.eq.s32.totalorder %s31, 0
      %p178 = por %p176, %p177
      %p179 = scmp.ne.s32.totalorder %s167, %s168
      %p180 = scmp.eq.s32.totalorder %s32, 1
      %p181 = por %p179, %p180
      %p183 = scmp.ne.s32.totalorder %s168, %s182
      %p184 = scmp.eq.s32.totalorder %s32, 0
      %p185 = por %p183, %p184
      %s187 = sadd.s32 %s186, 1
      %p190 = scmp.eq.s32.totalorder %s26, 1
      %p191 = scmp.ne.s32.totalorder %s186, %s188
      %p192 = scmp.eq.s32.totalorder %s26, 0
      %p193 = por %p191, %p192
      %p194 = scmp.ne.s32.totalorder %s186, %s188
      %p195 = scmp.eq.s32.totalorder %s31, 1
      %p196 = por %p194, %p195
      %p197 = scmp.ne.s32.totalorder %s188, %s189
      %p198 = scmp.eq.s32.totalorder %s31, 0
      %p199 = por %p197, %p198
      %p200 = scmp.ne.s32.totalorder %s188, %s189
      %p201 = scmp.eq.s32.totalorder %s32, 1
      %p202 = por %p200, %p201
      %p204 = scmp.ne.s32.totalorder %s189, %s203
      %p205 = scmp.eq.s32.totalorder %s32, 0
      %p206 = por %p204, %p205
      %s208 = sadd.s32 %s207, 1
      %p211 = scmp.eq.s32.totalorder %s26, 1
      %p212 = scmp.ne.s32.totalorder %s207, %s209
      %p213 = scmp.eq.s32.totalorder %s26, 0
      %p214 = por %p212, %p213
      %p215 = scmp.ne.s32.totalorder %s207, %s209
      %p216 = scmp.eq.s32.totalorder %s31, 1
      %p217 = por %p215, %p216
      %p218 = scmp.ne.s32.totalorder %s209, %s210
      %p219 = scmp.eq.s32.totalorder %s31, 0
      %p220 = por %p218, %p219
      %p221 = scmp.ne.s32.totalorder %s209, %s210
      %p222 = scmp.eq.s32.totalorder %s32, 1
      %p223 = por %p221, %p222
      %p225 = scmp.ne.s32.totalorder %s210, %s224
      %p226 = scmp.eq.s32.totalorder %s32, 0
      %p227 = por %p225, %p226
      %s229 = sadd.s32 %s228, 1
      %p232 = scmp.eq.s32.totalorder %s26, 1
      %p233 = scmp.ne.s32.totalorder %s228, %s230
      %p234 = scmp.eq.s32.totalorder %s26, 0
      %p235 = por %p233, %p234
      %p236 = scmp.ne.s32.totalorder %s228, %s230
      %p237 = scmp.eq.s32.totalorder %s31, 1
      %p238 = por %p236, %p237
      %p239 = scmp.ne.s32.totalorder %s230, %s231
      %p240 = scmp.eq.s32.totalorder %s31, 0
      %p241 = por %p239, %p240
      %p242 = scmp.ne.s32.totalorder %s230, %s231
      %p243 = scmp.eq.s32.totalorder %s32, 1
      %p244 = por %p242, %p243
      %p246 = scmp.ne.s32.totalorder %s231, %s245
      %p247 = scmp.eq.s32.totalorder %s32, 0
      %p248 = por %p246, %p247
      %s250 = sadd.s32 %s249, 1
      %p253 = scmp.eq.s32.totalorder %s26, 1
      %p254 = scmp.ne.s32.totalorder %s249, %s251
      %p255 = scmp.eq.s32.totalorder %s26, 0
      %p256 = por %p254, %p255
      %p257 = scmp.ne.s32.totalorder %s249, %s251
      %p258 = scmp.eq.s32.totalorder %s31, 1
      %p259 = por %p257, %p258
      %p260 = scmp.ne.s32.totalorder %s251, %s252
      %p261 = scmp.eq.s32.totalorder %s31, 0
      %p262 = por %p260, %p261
      %p263 = scmp.ne.s32.totalorder %s251, %s252
      %p264 = scmp.eq.s32.totalorder %s32, 1
      %p265 = por %p263, %p264
      %p267 = scmp.ne.s32.totalorder %s252, %s266
      %p268 = scmp.eq.s32.totalorder %s32, 0
      %p269 = por %p267, %p268
      %s271 = sadd.s32 %s270, 1
      %p274 = scmp.eq.s32.totalorder %s26, 1
      %p275 = scmp.ne.s32.totalorder %s270, %s272
      %p276 = scmp.eq.s32.totalorder %s26, 0
      %p277 = por %p275, %p276
      %p278 = scmp.ne.s32.totalorder %s270, %s272
      %p279 = scmp.eq.s32.totalorder %s31, 1
      %p280 = por %p278, %p279
      %p281 = scmp.ne.s32.totalorder %s272, %s273
      %p282 = scmp.eq.s32.totalorder %s31, 0
      %p283 = por %p281, %p282
      %p284 = scmp.ne.s32.totalorder %s272, %s273
      %p285 = scmp.eq.s32.totalorder %s32, 1
      %p286 = por %p284, %p285
      %p288 = scmp.ne.s32.totalorder %s273, %s287
      %p289 = scmp.eq.s32.totalorder %s32, 0
      %p290 = por %p288, %p289
      %s292 = sadd.s32 %s291, 1
      %p295 = scmp.eq.s32.totalorder %s26, 1
      %p296 = scmp.ne.s32.totalorder %s291, %s293
      %p297 = scmp.eq.s32.totalorder %s26, 0
      %p298 = por %p296, %p297
      %p299 = scmp.ne.s32.totalorder %s291, %s293
      %p300 = scmp.eq.s32.totalorder %s31, 1
      %p301 = por %p299, %p300
      %p302 = scmp.ne.s32.totalorder %s293, %s294
      %p303 = scmp.eq.s32.totalorder %s31, 0
      %p304 = por %p302, %p303
      %p305 = scmp.ne.s32.totalorder %s293, %s294
      %p306 = scmp.eq.s32.totalorder %s32, 1
      %p307 = por %p305, %p306
      %p309 = scmp.ne.s32.totalorder %s294, %s308
      %p310 = scmp.eq.s32.totalorder %s32, 0
      %p311 = por %p309, %p310
      %s313 = sadd.s32 %s312, 1
      %p316 = scmp.eq.s32.totalorder %s26, 1
      %p317 = scmp.ne.s32.totalorder %s312, %s314
      %p318 = scmp.eq.s32.totalorder %s26, 0
      %p319 = por %p317, %p318
      %p320 = scmp.ne.s32.totalorder %s312, %s314
      %p321 = scmp.eq.s32.totalorder %s31, 1
      %p322 = por %p320, %p321
      %p323 = scmp.ne.s32.totalorder %s314, %s315
      %p324 = scmp.eq.s32.totalorder %s31, 0
      %p325 = por %p323, %p324
      %p326 = scmp.ne.s32.totalorder %s314, %s315
      %p327 = scmp.eq.s32.totalorder %s32, 1
      %p328 = por %p326, %p327
      %p330 = scmp.ne.s32.totalorder %s315, %s329
      %p331 = scmp.eq.s32.totalorder %s32, 0
      %p332 = por %p330, %p331
      %s334 = sadd.s32 %s333, 1
      %p337 = scmp.eq.s32.totalorder %s26, 1
      %p338 = scmp.ne.s32.totalorder %s333, %s335
      %p339 = scmp.eq.s32.totalorder %s26, 0
      %p340 = por %p338, %p339
      %p341 = scmp.ne.s32.totalorder %s333, %s335
      %p342 = scmp.eq.s32.totalorder %s31, 1
      %p343 = por %p341, %p342
      %p344 = scmp.ne.s32.totalorder %s335, %s336
      %p345 = scmp.eq.s32.totalorder %s31, 0
      %p346 = por %p344, %p345
      %p347 = scmp.ne.s32.totalorder %s335, %s336
      %p348 = scmp.eq.s32.totalorder %s32, 1
      %p349 = por %p347, %p348
      %p351 = scmp.ne.s32.totalorder %s336, %s350
      %p352 = scmp.eq.s32.totalorder %s32, 0
      %p353 = por %p351, %p352
      %s355 = sadd.s32 %s354, 1
      %p358 = scmp.eq.s32.totalorder %s26, 1
      %p359 = scmp.ne.s32.totalorder %s354, %s356
      %p360 = scmp.eq.s32.totalorder %s26, 0
      %p361 = por %p359, %p360
      %p362 = scmp.ne.s32.totalorder %s354, %s356
      %p363 = scmp.eq.s32.totalorder %s31, 1
      %p364 = por %p362, %p363
      %p365 = scmp.ne.s32.totalorder %s356, %s357
      %p366 = scmp.eq.s32.totalorder %s31, 0
      %p367 = por %p365, %p366
      %p368 = scmp.ne.s32.totalorder %s356, %s357
      %p369 = scmp.eq.s32.totalorder %s32, 1
      %p370 = por %p368, %p369
      %p372 = scmp.ne.s32.totalorder %s357, %s371
      %p373 = scmp.eq.s32.totalorder %s32, 0
      %p374 = por %p372, %p373
      %s376 = sadd.s32 %s375, 1
      %p379 = scmp.eq.s32.totalorder %s26, 1
      %p380 = scmp.ne.s32.totalorder %s375, %s377
      %p381 = scmp.eq.s32.totalorder %s26, 0
      %p382 = por %p380, %p381
      %p383 = scmp.ne.s32.totalorder %s375, %s377
      %p384 = scmp.eq.s32.totalorder %s31, 1
      %p385 = por %p383, %p384
      %p386 = scmp.ne.s32.totalorder %s377, %s378
      %p387 = scmp.eq.s32.totalorder %s31, 0
      %p388 = por %p386, %p387
      %p389 = scmp.ne.s32.totalorder %s377, %s378
      %p390 = scmp.eq.s32.totalorder %s32, 1
      %p391 = por %p389, %p390
      %p393 = scmp.ne.s32.totalorder %s378, %s392
      %p394 = scmp.eq.s32.totalorder %s32, 0
      %p395 = por %p393, %p394
      %s396 = ssub.s32 %s26, %s33
      %p397 = scmp.eq.s32.totalorder %s396, 0
      %s399 = sadd.s32 %s398, 1
      %s400 = scalar_select %p397, %s398, %s399
      %p403 = pneg %p397
      %p404 = scmp.eq.s32.totalorder %s26, 1
      %p405 = por %p403, %p404
      %p406 = scmp.ne.s32.totalorder %s398, %s401
      %p407 = scmp.eq.s32.totalorder %s26, 0
      %p408 = por %p406, %p407
      %p409 = scmp.ne.s32.totalorder %s398, %s401
      %p410 = scmp.eq.s32.totalorder %s31, 1
      %p411 = por %p409, %p410
      %p412 = scmp.ne.s32.totalorder %s401, %s402
      %p413 = scmp.eq.s32.totalorder %s31, 0
      %p414 = por %p412, %p413
      %p415 = scmp.ne.s32.totalorder %s401, %s402
      %p416 = scmp.eq.s32.totalorder %s32, 1
      %p417 = por %p415, %p416
      %p419 = scmp.ne.s32.totalorder %s402, %s418
      %p420 = scmp.eq.s32.totalorder %s32, 0
      %p421 = por %p419, %p420
      %p422 = scmp.le.s32.totalorder 1, %s26
      %p423 = scmp.lt.s32.totalorder %s26, 3
      %p424 = pnand %p422, %p423
      %p425 = pneg %p424
      // Predicated region
      $region9: #{efficientnet_forward.1} parent=5 // pred_check
        _
      $region10: #{efficientnet_forward.1} parent=5 // pred_check_branch
        %427 = sbr.rel (%p424) target = $region12
      $region11: #{efficientnet_forward.1} parent=5 // pred_region
        %s428 = ssub.s32 %s26, 1
        // Predicated region
        $region13: #{efficientnet_forward.1} parent=11 // pred_check
          %p429 = pneg %p73
        $region14: #{efficientnet_forward.1} parent=11 // pred_check_branch
          %431 = sbr.rel (%p429) target = $region16
        $region15: #{efficientnet_forward.1} parent=11 // pred_region
          _
        $region16: #{efficientnet_forward.1} parent=11 // pred_fallthru
          _
        // Predicated region
        $region17: #{efficientnet_forward.1} parent=11 // pred_check
          %p432 = pneg %p94
        $region18: #{efficientnet_forward.1} parent=11 // pred_check_branch
          %434 = sbr.rel (%p432) target = $region20
        $region19: #{efficientnet_forward.1} parent=11 // pred_region
          _
        $region20: #{efficientnet_forward.1} parent=11 // pred_fallthru
          _
        // Predicated region
        $region21: #{efficientnet_forward.1} parent=11 // pred_check
          %p435 = pneg %p115
        $region22: #{efficientnet_forward.1} parent=11 // pred_check_branch
          %437 = sbr.rel (%p435) target = $region24
        $region23: #{efficientnet_forward.1} parent=11 // pred_region
          _
        $region24: #{efficientnet_forward.1} parent=11 // pred_fallthru
          _
        // Predicated region
        $region25: #{efficientnet_forward.1} parent=11 // pred_check
          %p438 = pneg %p136
        $region26: #{efficientnet_forward.1} parent=11 // pred_check_branch
          %440 = sbr.rel (%p438) target = $region28
        $region27: #{efficientnet_forward.1} parent=11 // pred_region
          _
        $region28: #{efficientnet_forward.1} parent=11 // pred_fallthru
          _
        // Predicated region
        $region29: #{efficientnet_forward.1} parent=11 // pred_check
          %p441 = pneg %p157
        $region30: #{efficientnet_forward.1} parent=11 // pred_check_branch
          %443 = sbr.rel (%p441) target = $region32
        $region31: #{efficientnet_forward.1} parent=11 // pred_region
          _
        $region32: #{efficientnet_forward.1} parent=11 // pred_fallthru
          _
        // Predicated region
        $region33: #{efficientnet_forward.1} parent=11 // pred_check
          %p444 = pneg %p178
        $region34: #{efficientnet_forward.1} parent=11 // pred_check_branch
          %446 = sbr.rel (%p444) target = $region36
        $region35: #{efficientnet_forward.1} parent=11 // pred_region
          _
        $region36: #{efficientnet_forward.1} parent=11 // pred_fallthru
          _
        // Predicated region
        $region37: #{efficientnet_forward.1} parent=11 // pred_check
          %p447 = pneg %p199
        $region38: #{efficientnet_forward.1} parent=11 // pred_check_branch
          %449 = sbr.rel (%p447) target = $region40
        $region39: #{efficientnet_forward.1} parent=11 // pred_region
          _
        $region40: #{efficientnet_forward.1} parent=11 // pred_fallthru
          _
        // Predicated region
        $region41: #{efficientnet_forward.1} parent=11 // pred_check
          %p450 = pneg %p220
        $region42: #{efficientnet_forward.1} parent=11 // pred_check_branch
          %452 = sbr.rel (%p450) target = $region44
        $region43: #{efficientnet_forward.1} parent=11 // pred_region
          _
        $region44: #{efficientnet_forward.1} parent=11 // pred_fallthru
          _
        // Predicated region
        $region45: #{efficientnet_forward.1} parent=11 // pred_check
          %p453 = pneg %p241
        $region46: #{efficientnet_forward.1} parent=11 // pred_check_branch
          %455 = sbr.rel (%p453) target = $region48
        $region47: #{efficientnet_forward.1} parent=11 // pred_region
          _
        $region48: #{efficientnet_forward.1} parent=11 // pred_fallthru
          _
        // Predicated region
        $region49: #{efficientnet_forward.1} parent=11 // pred_check
          %p456 = pneg %p262
        $region50: #{efficientnet_forward.1} parent=11 // pred_check_branch
          %458 = sbr.rel (%p456) target = $region52
        $region51: #{efficientnet_forward.1} parent=11 // pred_region
          _
        $region52: #{efficientnet_forward.1} parent=11 // pred_fallthru
          _
        // Predicated region
        $region53: #{efficientnet_forward.1} parent=11 // pred_check
          %p459 = pneg %p283
        $region54: #{efficientnet_forward.1} parent=11 // pred_check_branch
          %461 = sbr.rel (%p459) target = $region56
        $region55: #{efficientnet_forward.1} parent=11 // pred_region
          _
        $region56: #{efficientnet_forward.1} parent=11 // pred_fallthru
          _
        // Predicated region
        $region57: #{efficientnet_forward.1} parent=11 // pred_check
          %p462 = pneg %p304
        $region58: #{efficientnet_forward.1} parent=11 // pred_check_branch
          %464 = sbr.rel (%p462) target = $region60
        $region59: #{efficientnet_forward.1} parent=11 // pred_region
          _
        $region60: #{efficientnet_forward.1} parent=11 // pred_fallthru
          _
        // Predicated region
        $region61: #{efficientnet_forward.1} parent=11 // pred_check
          %p465 = pneg %p325
        $region62: #{efficientnet_forward.1} parent=11 // pred_check_branch
          %467 = sbr.rel (%p465) target = $region64
        $region63: #{efficientnet_forward.1} parent=11 // pred_region
          _
        $region64: #{efficientnet_forward.1} parent=11 // pred_fallthru
          _
        // Predicated region
        $region65: #{efficientnet_forward.1} parent=11 // pred_check
          %p468 = pneg %p346
        $region66: #{efficientnet_forward.1} parent=11 // pred_check_branch
          %470 = sbr.rel (%p468) target = $region68
        $region67: #{efficientnet_forward.1} parent=11 // pred_region
          _
        $region68: #{efficientnet_forward.1} parent=11 // pred_fallthru
          _
        // Predicated region
        $region69: #{efficientnet_forward.1} parent=11 // pred_check
          %p471 = pneg %p367
        $region70: #{efficientnet_forward.1} parent=11 // pred_check_branch
          %473 = sbr.rel (%p471) target = $region72
        $region71: #{efficientnet_forward.1} parent=11 // pred_region
          _
        $region72: #{efficientnet_forward.1} parent=11 // pred_fallthru
          _
        // Predicated region
        $region73: #{efficientnet_forward.1} parent=11 // pred_check
          %p474 = pneg %p388
        $region74: #{efficientnet_forward.1} parent=11 // pred_check_branch
          %476 = sbr.rel (%p474) target = $region76
        $region75: #{efficientnet_forward.1} parent=11 // pred_region
          _
        $region76: #{efficientnet_forward.1} parent=11 // pred_fallthru
          _
      $region12: #{efficientnet_forward.1} parent=5 // pred_fallthru
        _
      %p477 = scmp.lt.s32.totalorder %s26, 2
      // Predicated region
      $region77: #{efficientnet_forward.1} parent=5 // pred_check
        %p478 = pneg %p477
      $region78: #{efficientnet_forward.1} parent=5 // pred_check_branch
        %480 = sbr.rel (%p478) target = $region80
      $region79: #{efficientnet_forward.1} parent=5 // pred_region
        // Predicated region
        $region81: #{efficientnet_forward.1} parent=79 // pred_check
          %p481 = pneg %p46
        $region82: #{efficientnet_forward.1} parent=79 // pred_check_branch
          %483 = sbr.rel (%p481) target = $region84
        $region83: #{efficientnet_forward.1} parent=79 // pred_region
          %p484 = scmp.lt.s32.totalorder %s26, 1
          %s485 = scalar_select %p484, %s26, 1
          %s486 = smul.addr %s485, 32
          %s487 = smul.addr %s486, 4
          %s488 = scalar_lea.vmem %s0, %s487
        $region84: #{efficientnet_forward.1} parent=79 // pred_fallthru
          _
      $region80: #{efficientnet_forward.1} parent=5 // pred_fallthru
        _
      %p489 = scmp.le.s32.totalorder 1, %s26
      %p490 = scmp.lt.s32.totalorder %s26, 3
      %p491 = pnand %p489, %p490
      %p492 = pneg %p491
      // Predicated region
      $region85: #{efficientnet_forward.1} parent=5 // pred_check
        _
      $region86: #{efficientnet_forward.1} parent=5 // pred_check_branch
        %494 = sbr.rel (%p491) target = $region88
      $region87: #{efficientnet_forward.1} parent=5 // pred_region
        %s495 = ssub.s32 %s26, 1
        %p496 = scmp.lt.s32.totalorder %s31, 1
        %s497 = scalar_select %p496, %s31, 1
        %s498 = smul.addr %s497, 32
        %s499 = smul.addr %s498, 4
        %s500 = scalar_lea.vmem %s0, %s499
        %p501 = pneg %p52
        %p502 = pneg %p49
        %p503 = pneg %p73
        %p504 = pneg %p70
        %p505 = pneg %p94
        %p506 = pneg %p91
        %p507 = pneg %p115
        %p508 = pneg %p112
        %p509 = pneg %p136
        %p510 = pneg %p133
        %p511 = pneg %p157
        %p512 = pneg %p154
        %p513 = pneg %p178
        %p514 = pneg %p175
        %p515 = pneg %p199
        %p516 = pneg %p196
        %p517 = pneg %p220
        %p518 = pneg %p217
        %p519 = pneg %p241
        %p520 = pneg %p238
        %p521 = pneg %p262
        %p522 = pneg %p259
        %p523 = pneg %p283
        %p524 = pneg %p280
        %p525 = pneg %p304
        %p526 = pneg %p301
        %p527 = pneg %p325
        %p528 = pneg %p322
        %p529 = pneg %p346
        %p530 = pneg %p343
        %p531 = pneg %p367
        %p532 = pneg %p364
        %p533 = pneg %p388
        %p534 = pneg %p385
        %p535 = pneg %p414
        %p536 = pneg %p411
        %s537 = sand.u32 %s401, 1
        %s538 = scalar_lea.sflag [#allocation5], %s537
        %s539 = sand.u32 %s401, 1
        %s540 = scalar_lea.vmem [#allocation4], %s539
        %p541 = scmp.lt.s32.totalorder %s31, 1
        %s542 = scalar_select %p541, %s31, 1
        %s543 = smul.addr %s542, 32
        %s544 = smul.addr %s543, 4
        %s545 = scalar_lea.vmem %s0, %s544
        %v547 = vld [vmem:[%s545] sm:$0xf]
        %v548 = vld [vmem:[%s545 + $0x4] sm:$0xf]
        %v549 = vld [vmem:[%s545 + $0x8] sm:$0xf]
        %v550 = vld [vmem:[%s545 + $0xc] sm:$0xf]
        %v551 = vld [vmem:[%s545 + $0x10] sm:$0xf]
        %v552 = vld [vmem:[%s545 + $0x14] sm:$0xf]
        %v553 = vld [vmem:[%s545 + $0x18] sm:$0xf]
        %v554 = vld [vmem:[%s545 + $0x1c] sm:$0xf]
        %v555 = vld [vmem:[%s545 + $0x20] sm:$0xf]
        %v556 = vld [vmem:[%s545 + $0x24] sm:$0xf]
        %v557 = vld [vmem:[%s545 + $0x28] sm:$0xf]
        %v558 = vld [vmem:[%s545 + $0x2c] sm:$0xf]
        %v559 = vld [vmem:[%s545 + $0x30] sm:$0xf]
        %v560 = vld [vmem:[%s545 + $0x34] sm:$0xf]
        %v561 = vld [vmem:[%s545 + $0x38] sm:$0xf]
        %v562 = vld [vmem:[%s545 + $0x3c] sm:$0xf]
        %v563 = vld [vmem:[%s545 + $0x40] sm:$0xf]
        %v564 = vld [vmem:[%s545 + $0x44] sm:$0xf]
        %v565 = vld [vmem:[%s545 + $0x48] sm:$0xf]
        %v566 = vld [vmem:[%s545 + $0x4c] sm:$0xf]
        %v567 = vld [vmem:[%s545 + $0x50] sm:$0xf]
        %v568 = vld [vmem:[%s545 + $0x54] sm:$0xf]
        %v569 = vld [vmem:[%s545 + $0x58] sm:$0xf]
        %v570 = vld [vmem:[%s545 + $0x5c] sm:$0xf]
        %v571 = vld [vmem:[%s545 + $0x60] sm:$0xf]
        %v572 = vld [vmem:[%s545 + $0x64] sm:$0xf]
        %v573 = vld [vmem:[%s545 + $0x68] sm:$0xf]
        %v574 = vld [vmem:[%s545 + $0x6c] sm:$0xf]
        %v575 = vld [vmem:[%s545 + $0x70] sm:$0xf]
        %v576 = vld [vmem:[%s545 + $0x74] sm:$0xf]
        %v577 = vld [vmem:[%s545 + $0x78] sm:$0xf]
        %v578 = vld [vmem:[%s545 + $0x7c] sm:$0xf]
        %v579 = vld [vmem:[%s1] sm:$0xf]
        %v580 = vld [vmem:[%s1 + $0x4] sm:$0xf]
        %v581 = vld [vmem:[%s1 + $0x8] sm:$0xf]
        %v582 = vld [vmem:[%s1 + $0xc] sm:$0xf]
        %v583 = vld [vmem:[%s1 + $0x10] sm:$0xf]
        %v584 = vld [vmem:[%s1 + $0x14] sm:$0xf]
        %v585 = vld [vmem:[%s2] sm:$0x1]
        %v587 = vlaneseq
        %v588 = vshrl.u32 %v587, 7
        %v589 = vsub.s32 0, %v588
        %v590 = vrot.slane %v585, %v589
        %v624 = vunpack.c.l.b16 %v547
        %v625 = vunpack.c.l.b16 %v548
        %v626 = vunpack.c.l.b16 %v549
        %v627 = vunpack.c.l.b16 %v550
        %v628 = vunpack.c.l.b16 %v551
        %v629 = vunpack.c.l.b16 %v552
        %v630 = vunpack.c.l.b16 %v553
        %v631 = vunpack.c.l.b16 %v554
        %v632 = vunpack.c.l.b16 %v555
        %v633 = vunpack.c.l.b16 %v556
        %v634 = vunpack.c.l.b16 %v557
        %v635 = vunpack.c.l.b16 %v558
        %v636 = vunpack.c.l.b16 %v559
        %v637 = vunpack.c.l.b16 %v560
        %v638 = vunpack.c.l.b16 %v561
        %v639 = vunpack.c.l.b16 %v562
        %v640 = vunpack.c.l.b16 %v563
        %v641 = vunpack.c.l.b16 %v564
        %v642 = vunpack.c.l.b16 %v565
        %v643 = vunpack.c.l.b16 %v566
        %v644 = vunpack.c.l.b16 %v567
        %v645 = vunpack.c.l.b16 %v568
        %v646 = vunpack.c.l.b16 %v569
        %v647 = vunpack.c.l.b16 %v570
        %v648 = vunpack.c.l.b16 %v571
        %v649 = vunpack.c.l.b16 %v572
        %v650 = vunpack.c.l.b16 %v573
        %v651 = vunpack.c.l.b16 %v574
        %v652 = vunpack.c.l.b16 %v575
        %v653 = vunpack.c.l.b16 %v576
        %v654 = vunpack.c.l.b16 %v577
        %v655 = vunpack.c.l.b16 %v578
        %v656 = vpack.c.b16 %v625, %v624
        %v657 = vpack.c.b16 %v627, %v626
        %v658 = vpack.c.b16 %v629, %v628
        %v659 = vpack.c.b16 %v631, %v630
        %v660 = vpack.c.b16 %v633, %v632
        %v661 = vpack.c.b16 %v635, %v634
        %v662 = vpack.c.b16 %v637, %v636
        %v663 = vpack.c.b16 %v639, %v638
        %v664 = vpack.c.b16 %v641, %v640
        %v665 = vpack.c.b16 %v643, %v642
        %v666 = vpack.c.b16 %v645, %v644
        %v667 = vpack.c.b16 %v647, %v646
        %v668 = vpack.c.b16 %v649, %v648
        %v669 = vpack.c.b16 %v651, %v650
        %v670 = vpack.c.b16 %v653, %v652
        %v671 = vpack.c.b16 %v655, %v654
        %v678 = vunpack.c.l.b16 %v579
        %v679 = vunpack.c.l.b16 %v580
        %v680 = vunpack.c.l.b16 %v581
        %v681 = vunpack.c.l.b16 %v582
        %v682 = vunpack.c.l.b16 %v583
        %v683 = vunpack.c.l.b16 %v584
        %v684 = vpack.c.b16 %v679, %v678
        %v685 = vpack.c.b16 %v681, %v680
        %v686 = vpack.c.b16 %v683, %v682
        %vm690 = vcmask 392192
        %v692 = vsel %vm690, %v656, 0
        %v695 = vsel %vm690, %v657, 0
        %v698 = vsel %vm690, %v658, 0
        %v701 = vsel %vm690, %v659, 0
        %v704 = vsel %vm690, %v660, 0
        %v707 = vsel %vm690, %v661, 0
        %v710 = vsel %vm690, %v662, 0
        %v713 = vsel %vm690, %v663, 0
        %v716 = vsel %vm690, %v664, 0
        %v719 = vsel %vm690, %v665, 0
        %v722 = vsel %vm690, %v666, 0
        %v725 = vsel %vm690, %v667, 0
        %v728 = vsel %vm690, %v668, 0
        %v731 = vsel %vm690, %v669, 0
        %v734 = vsel %vm690, %v670, 0
        %v737 = vsel %vm690, %v671, 0
        %739 = vmatprep.subr.bf16.mxu0 0
        %740 = vmatpush1.bf16.msra.mxu0 %v684
        %741 = vmatprep.subr.bf16.mxu0 0
        %742 = vmatpush1.bf16.msra.mxu0 %v685
        %743 = vmatprep.subr.bf16.mxu0 0
        %744 = vmatpush1.bf16.msra.mxu0 %v686
        %745 = vmatprep.subr.bf16.mxu0 0
        %746 = vmatpush1.bf16.msra.mxu0 0
        %747 = vmatprep.subr.bf16.mxu0 0
        %748 = vmatpush1.bf16.msra.mxu0 0
        %749 = vmatprep.subr.bf16.mxu0 0
        %750 = vmatpush1.bf16.msra.mxu0 0
        %751 = vmatprep.subr.bf16.mxu0 0
        %752 = vmatpush1.bf16.msra.mxu0 0
        %753 = vmatprep.subr.bf16.mxu0 0
        %754 = vmatpush1.bf16.msra.mxu0 0
        %755 = vmatprep.subr.bf16.mxu0 0
        %756 = vmatpush1.bf16.msra.mxu0 0
        %757 = vmatprep.subr.bf16.mxu0 0
        %758 = vmatpush1.bf16.msra.mxu0 0
        %759 = vmatprep.subr.bf16.mxu0 0
        %760 = vmatpush1.bf16.msra.mxu0 0
        %761 = vmatprep.subr.bf16.mxu0 0
        %762 = vmatpush1.bf16.msra.mxu0 0
        %763 = vmatprep.subr.bf16.mxu0 0
        %764 = vmatpush1.bf16.msra.mxu0 0
        %765 = vmatprep.subr.bf16.mxu0 0
        %766 = vmatpush1.bf16.msra.mxu0 0
        %767 = vmatprep.subr.bf16.mxu0 0
        %768 = vmatpush1.bf16.msra.mxu0 0
        %769 = vmatprep.subr.bf16.mxu0 0
        %770 = vmatpush1.bf16.msra.mxu0 0
        %771 = vmatprep.mubr.bf16.mxu0 0
        %772 = vmatmul.mubr.bf16.gmra.mrb[0].mxu0 %v692
        %v773 = vpop.f32.mrb[0].mxu0
        %v774 = vadd.f32 %v590, %v773
        %v775 = vpop.f32.mrb[0].mxu0
        %v776 = vpop.f32.mrb[0].mxu0
        %v777 = vadd.f32 %v590, %v776
        %v778 = vpop.f32.mrb[0].mxu0
        %779 = vmatprep.mubr.bf16.mxu0 0
        %780 = vmatmul.mubr.bf16.gmra.mrb[0].mxu0 %v695
        %v781 = vpop.f32.mrb[0].mxu0
        %v782 = vadd.f32 %v590, %v781
        %v783 = vpop.f32.mrb[0].mxu0
        %v784 = vpop.f32.mrb[0].mxu0
        %v785 = vadd.f32 %v590, %v784
        %v786 = vpop.f32.mrb[0].mxu0
        %787 = vmatprep.mubr.bf16.mxu0 0
        %788 = vmatmul.mubr.bf16.gmra.mrb[0].mxu0 %v698
        %v789 = vpop.f32.mrb[0].mxu0
        %v790 = vadd.f32 %v590, %v789
        %v791 = vpop.f32.mrb[0].mxu0
        %v792 = vpop.f32.mrb[0].mxu0
        %v793 = vadd.f32 %v590, %v792
        %v794 = vpop.f32.mrb[0].mxu0
        %795 = vmatprep.mubr.bf16.mxu0 0
        %796 = vmatmul.mubr.bf16.gmra.mrb[0].mxu0 %v701
        %v797 = vpop.f32.mrb[0].mxu0
        %v798 = vadd.f32 %v590, %v797
        %v799 = vpop.f32.mrb[0].mxu0
        %v800 = vpop.f32.mrb[0].mxu0
        %v801 = vadd.f32 %v590, %v800
        %v802 = vpop.f32.mrb[0].mxu0
        %803 = vmatprep.mubr.bf16.mxu0 0
        %804 = vmatmul.mubr.bf16.gmra.mrb[0].mxu0 %v704
        %v805 = vpop.f32.mrb[0].mxu0
        %v806 = vadd.f32 %v590, %v805
        %v807 = vpop.f32.mrb[0].mxu0
        %v808 = vpop.f32.mrb[0].mxu0
        %v809 = vadd.f32 %v590, %v808
        %v810 = vpop.f32.mrb[0].mxu0
        %811 = vmatprep.mubr.bf16.mxu0 0
        %812 = vmatmul.mubr.bf16.gmra.mrb[0].mxu0 %v707
        %v813 = vpop.f32.mrb[0].mxu0
        %v814 = vadd.f32 %v590, %v813
        %v815 = vpop.f32.mrb[0].mxu0
        %v816 = vpop.f32.mrb[0].mxu0
        %v817 = vadd.f32 %v590, %v816
        %v818 = vpop.f32.mrb[0].mxu0
        %819 = vmatprep.mubr.bf16.mxu0 0
        %820 = vmatmul.mubr.bf16.gmra.mrb[0].mxu0 %v710
        %v821 = vpop.f32.mrb[0].mxu0
        %v822 = vadd.f32 %v590, %v821
        %v823 = vpop.f32.mrb[0].mxu0
        %v824 = vpop.f32.mrb[0].mxu0
        %v825 = vadd.f32 %v590, %v824
        %v826 = vpop.f32.mrb[0].mxu0
        %827 = vmatprep.mubr.bf16.mxu0 0
        %828 = vmatmul.mubr.bf16.gmra.mrb[0].mxu0 %v713
        %v829 = vpop.f32.mrb[0].mxu0
        %v830 = vadd.f32 %v590, %v829
        %v831 = vpop.f32.mrb[0].mxu0
        %v832 = vpop.f32.mrb[0].mxu0
        %v833 = vadd.f32 %v590, %v832
        %v834 = vpop.f32.mrb[0].mxu0
        %835 = vmatprep.mubr.bf16.mxu0 0
        %836 = vmatmul.mubr.bf16.gmra.mrb[0].mxu0 %v716
        %v837 = vpop.f32.mrb[0].mxu0
        %v838 = vadd.f32 %v590, %v837
        %v839 = vpop.f32.mrb[0].mxu0
        %v840 = vpop.f32.mrb[0].mxu0
        %v841 = vadd.f32 %v590, %v840
        %v842 = vpop.f32.mrb[0].mxu0
        %843 = vmatprep.mubr.bf16.mxu0 0
        %844 = vmatmul.mubr.bf16.gmra.mrb[0].mxu0 %v719
        %v845 = vpop.f32.mrb[0].mxu0
        %v846 = vadd.f32 %v590, %v845
        %v847 = vpop.f32.mrb[0].mxu0
        %v848 = vpop.f32.mrb[0].mxu0
        %v849 = vadd.f32 %v590, %v848
        %v850 = vpop.f32.mrb[0].mxu0
        %851 = vmatprep.mubr.bf16.mxu0 0
        %852 = vmatmul.mubr.bf16.gmra.mrb[0].mxu0 %v722
        %v853 = vpop.f32.mrb[0].mxu0
        %v854 = vadd.f32 %v590, %v853
        %v855 = vpop.f32.mrb[0].mxu0
        %v856 = vpop.f32.mrb[0].mxu0
        %v857 = vadd.f32 %v590, %v856
        %v858 = vpop.f32.mrb[0].mxu0
        %859 = vmatprep.mubr.bf16.mxu0 0
        %860 = vmatmul.mubr.bf16.gmra.mrb[0].mxu0 %v725
        %v861 = vpop.f32.mrb[0].mxu0
        %v862 = vadd.f32 %v590, %v861
        %v863 = vpop.f32.mrb[0].mxu0
        %v864 = vpop.f32.mrb[0].mxu0
        %v865 = vadd.f32 %v590, %v864
        %v866 = vpop.f32.mrb[0].mxu0
        %867 = vmatprep.mubr.bf16.mxu0 0
        %868 = vmatmul.mubr.bf16.gmra.mrb[0].mxu0 %v728
        %v869 = vpop.f32.mrb[0].mxu0
        %v870 = vadd.f32 %v590, %v869
        %v871 = vpop.f32.mrb[0].mxu0
        %v872 = vpop.f32.mrb[0].mxu0
        %v873 = vadd.f32 %v590, %v872
        %v874 = vpop.f32.mrb[0].mxu0
        %875 = vmatprep.mubr.bf16.mxu0 0
        %876 = vmatmul.mubr.bf16.gmra.mrb[0].mxu0 %v731
        %v877 = vpop.f32.mrb[0].mxu0
        %v878 = vadd.f32 %v590, %v877
        %v879 = vpop.f32.mrb[0].mxu0
        %v880 = vpop.f32.mrb[0].mxu0
        %v881 = vadd.f32 %v590, %v880
        %v882 = vpop.f32.mrb[0].mxu0
        %883 = vmatprep.mubr.bf16.mxu0 0
        %884 = vmatmul.mubr.bf16.gmra.mrb[0].mxu0 %v734
        %v885 = vpop.f32.mrb[0].mxu0
        %v886 = vadd.f32 %v590, %v885
        %v887 = vpop.f32.mrb[0].mxu0
        %v888 = vpop.f32.mrb[0].mxu0
        %v889 = vadd.f32 %v590, %v888
        %v890 = vpop.f32.mrb[0].mxu0
        %891 = vmatprep.mubr.bf16.mxu0 0
        %892 = vmatmul.mubr.bf16.gmra.mrb[0].mxu0 %v737
        %v893 = vpop.f32.mrb[0].mxu0
        %v894 = vadd.f32 %v590, %v893
        %v895 = vpop.f32.mrb[0].mxu0
        %v896 = vpop.f32.mrb[0].mxu0
        %v897 = vadd.f32 %v590, %v896
        %v898 = vpop.f32.mrb[0].mxu0
        %899 = vdwg.mxu0
        %v900 = vxor.u32 %v774, 2147483648
        %v901 = vxor.u32 %v777, 2147483648
        %v902 = vxor.u32 %v782, 2147483648
        %v903 = vxor.u32 %v785, 2147483648
        %v904 = vxor.u32 %v790, 2147483648
        %v905 = vxor.u32 %v793, 2147483648
        %v906 = vxor.u32 %v798, 2147483648
        %v907 = vxor.u32 %v801, 2147483648
        %v908 = vxor.u32 %v806, 2147483648
        %v909 = vxor.u32 %v809, 2147483648
        %v910 = vxor.u32 %v814, 2147483648
        %v911 = vxor.u32 %v817, 2147483648
        %v912 = vxor.u32 %v822, 2147483648
        %v913 = vxor.u32 %v825, 2147483648
        %v914 = vxor.u32 %v830, 2147483648
        %v915 = vxor.u32 %v833, 2147483648
        %v916 = vxor.u32 %v838, 2147483648
        %v917 = vxor.u32 %v841, 2147483648
        %v918 = vxor.u32 %v846, 2147483648
        %v919 = vxor.u32 %v849, 2147483648
        %v920 = vxor.u32 %v854, 2147483648
        %v921 = vxor.u32 %v857, 2147483648
        %v922 = vxor.u32 %v862, 2147483648
        %v923 = vxor.u32 %v865, 2147483648
        %v924 = vxor.u32 %v870, 2147483648
        %v925 = vxor.u32 %v873, 2147483648
        %v926 = vxor.u32 %v878, 2147483648
        %v927 = vxor.u32 %v881, 2147483648
        %v928 = vxor.u32 %v886, 2147483648
        %v929 = vxor.u32 %v889, 2147483648
        %v930 = vxor.u32 %v894, 2147483648
        %v931 = vxor.u32 %v897, 2147483648
        %v932 = vmul.f32 %v900, 1.442695
        %v933 = vpow.pop %v932
        %v934 = vmul.f32 %v901, 1.442695
        %v935 = vpow.pop %v934
        %v936 = vmul.f32 %v902, 1.442695
        %v937 = vpow.pop %v936
        %v938 = vmul.f32 %v903, 1.442695
        %v939 = vpow.pop %v938
        %v940 = vmul.f32 %v904, 1.442695
        %v941 = vpow.pop %v940
        %v942 = vmul.f32 %v905, 1.442695
        %v943 = vpow.pop %v942
        %v944 = vmul.f32 %v906, 1.442695
        %v945 = vpow.pop %v944
        %v946 = vmul.f32 %v907, 1.442695
        %v947 = vpow.pop %v946
        %v948 = vmul.f32 %v908, 1.442695
        %v949 = vpow.pop %v948
        %v950 = vmul.f32 %v909, 1.442695
        %v951 = vpow.pop %v950
        %v952 = vmul.f32 %v910, 1.442695
        %v953 = vpow.pop %v952
        %v954 = vmul.f32 %v911, 1.442695
        %v955 = vpow.pop %v954
        %v956 = vmul.f32 %v912, 1.442695
        %v957 = vpow.pop %v956
        %v958 = vmul.f32 %v913, 1.442695
        %v959 = vpow.pop %v958
        %v960 = vmul.f32 %v914, 1.442695
        %v961 = vpow.pop %v960
        %v962 = vmul.f32 %v915, 1.442695
        %v963 = vpow.pop %v962
        %v964 = vmul.f32 %v916, 1.442695
        %v965 = vpow.pop %v964
        %v966 = vmul.f32 %v917, 1.442695
        %v967 = vpow.pop %v966
        %v968 = vmul.f32 %v918, 1.442695
        %v969 = vpow.pop %v968
        %v970 = vmul.f32 %v919, 1.442695
        %v971 = vpow.pop %v970
        %v972 = vmul.f32 %v920, 1.442695
        %v973 = vpow.pop %v972
        %v974 = vmul.f32 %v921, 1.442695
        %v975 = vpow.pop %v974
        %v976 = vmul.f32 %v922, 1.442695
        %v977 = vpow.pop %v976
        %v978 = vmul.f32 %v923, 1.442695
        %v979 = vpow.pop %v978
        %v980 = vmul.f32 %v924, 1.442695
        %v981 = vpow.pop %v980
        %v982 = vmul.f32 %v925, 1.442695
        %v983 = vpow.pop %v982
        %v984 = vmul.f32 %v926, 1.442695
        %v985 = vpow.pop %v984
        %v986 = vmul.f32 %v927, 1.442695
        %v987 = vpow.pop %v986
        %v988 = vmul.f32 %v928, 1.442695
        %v989 = vpow.pop %v988
        %v990 = vmul.f32 %v929, 1.442695
        %v991 = vpow.pop %v990
        %v992 = vmul.f32 %v930, 1.442695
        %v993 = vpow.pop %v992
        %v994 = vmul.f32 %v931, 1.442695
        %v995 = vpow.pop %v994
        %v996 = vadd.f32 %v933, 1.0
        %v997 = vadd.f32 %v935, 1.0
        %v998 = vadd.f32 %v937, 1.0
        %v999 = vadd.f32 %v939, 1.0
        %v1000 = vadd.f32 %v941, 1.0
        %v1001 = vadd.f32 %v943, 1.0
        %v1002 = vadd.f32 %v945, 1.0
        %v1003 = vadd.f32 %v947, 1.0
        %v1004 = vadd.f32 %v949, 1.0
        %v1005 = vadd.f32 %v951, 1.0
        %v1006 = vadd.f32 %v953, 1.0
        %v1007 = vadd.f32 %v955, 1.0
        %v1008 = vadd.f32 %v957, 1.0
        %v1009 = vadd.f32 %v959, 1.0
        %v1010 = vadd.f32 %v961, 1.0
        %v1011 = vadd.f32 %v963, 1.0
        %v1012 = vadd.f32 %v965, 1.0
        %v1013 = vadd.f32 %v967, 1.0
        %v1014 = vadd.f32 %v969, 1.0
        %v1015 = vadd.f32 %v971, 1.0
        %v1016 = vadd.f32 %v973, 1.0
        %v1017 = vadd.f32 %v975, 1.0
        %v1018 = vadd.f32 %v977, 1.0
        %v1019 = vadd.f32 %v979, 1.0
        %v1020 = vadd.f32 %v981, 1.0
        %v1021 = vadd.f32 %v983, 1.0
        %v1022 = vadd.f32 %v985, 1.0
        %v1023 = vadd.f32 %v987, 1.0
        %v1024 = vadd.f32 %v989, 1.0
        %v1025 = vadd.f32 %v991, 1.0
        %v1026 = vadd.f32 %v993, 1.0
        %v1027 = vadd.f32 %v995, 1.0
        %v1028 = vrcp.pop %v996
        %v1029 = vmul.f32 1.0, %v1028
        %v1030 = vrcp.pop %v997
        %v1031 = vmul.f32 1.0, %v1030
        %v1032 = vrcp.pop %v998
        %v1033 = vmul.f32 1.0, %v1032
        %v1034 = vrcp.pop %v999
        %v1035 = vmul.f32 1.0, %v1034
        %v1036 = vrcp.pop %v1000
        %v1037 = vmul.f32 1.0, %v1036
        %v1038 = vrcp.pop %v1001
        %v1039 = vmul.f32 1.0, %v1038
        %v1040 = vrcp.pop %v1002
        %v1041 = vmul.f32 1.0, %v1040
        %v1042 = vrcp.pop %v1003
        %v1043 = vmul.f32 1.0, %v1042
        %v1044 = vrcp.pop %v1004
        %v1045 = vmul.f32 1.0, %v1044
        %v1046 = vrcp.pop %v1005
        %v1047 = vmul.f32 1.0, %v1046
        %v1048 = vrcp.pop %v1006
        %v1049 = vmul.f32 1.0, %v1048
        %v1050 = vrcp.pop %v1007
        %v1051 = vmul.f32 1.0, %v1050
        %v1052 = vrcp.pop %v1008
        %v1053 = vmul.f32 1.0, %v1052
        %v1054 = vrcp.pop %v1009
        %v1055 = vmul.f32 1.0, %v1054
        %v1056 = vrcp.pop %v1010
        %v1057 = vmul.f32 1.0, %v1056
        %v1058 = vrcp.pop %v1011
        %v1059 = vmul.f32 1.0, %v1058
        %v1060 = vrcp.pop %v1012
        %v1061 = vmul.f32 1.0, %v1060
        %v1062 = vrcp.pop %v1013
        %v1063 = vmul.f32 1.0, %v1062
        %v1064 = vrcp.pop %v1014
        %v1065 = vmul.f32 1.0, %v1064
        %v1066 = vrcp.pop %v1015
        %v1067 = vmul.f32 1.0, %v1066
        %v1068 = vrcp.pop %v1016
        %v1069 = vmul.f32 1.0, %v1068
        %v1070 = vrcp.pop %v1017
        %v1071 = vmul.f32 1.0, %v1070
        %v1072 = vrcp.pop %v1018
        %v1073 = vmul.f32 1.0, %v1072
        %v1074 = vrcp.pop %v1019
        %v1075 = vmul.f32 1.0, %v1074
        %v1076 = vrcp.pop %v1020
        %v1077 = vmul.f32 1.0, %v1076
        %v1078 = vrcp.pop %v1021
        %v1079 = vmul.f32 1.0, %v1078
        %v1080 = vrcp.pop %v1022
        %v1081 = vmul.f32 1.0, %v1080
        %v1082 = vrcp.pop %v1023
        %v1083 = vmul.f32 1.0, %v1082
        %v1084 = vrcp.pop %v1024
        %v1085 = vmul.f32 1.0, %v1084
        %v1086 = vrcp.pop %v1025
        %v1087 = vmul.f32 1.0, %v1086
        %v1088 = vrcp.pop %v1026
        %v1089 = vmul.f32 1.0, %v1088
        %v1090 = vrcp.pop %v1027
        %v1091 = vmul.f32 1.0, %v1090
        %v1092 = vmul.f32 %v774, %v1029
        %v1093 = vmul.f32 %v777, %v1031
        %v1094 = vmul.f32 %v782, %v1033
        %v1095 = vmul.f32 %v785, %v1035
        %v1096 = vmul.f32 %v790, %v1037
        %v1097 = vmul.f32 %v793, %v1039
        %v1098 = vmul.f32 %v798, %v1041
        %v1099 = vmul.f32 %v801, %v1043
        %v1100 = vmul.f32 %v806, %v1045
        %v1101 = vmul.f32 %v809, %v1047
        %v1102 = vmul.f32 %v814, %v1049
        %v1103 = vmul.f32 %v817, %v1051
        %v1104 = vmul.f32 %v822, %v1053
        %v1105 = vmul.f32 %v825, %v1055
        %v1106 = vmul.f32 %v830, %v1057
        %v1107 = vmul.f32 %v833, %v1059
        %v1108 = vmul.f32 %v838, %v1061
        %v1109 = vmul.f32 %v841, %v1063
        %v1110 = vmul.f32 %v846, %v1065
        %v1111 = vmul.f32 %v849, %v1067
        %v1112 = vmul.f32 %v854, %v1069
        %v1113 = vmul.f32 %v857, %v1071
        %v1114 = vmul.f32 %v862, %v1073
        %v1115 = vmul.f32 %v865, %v1075
        %v1116 = vmul.f32 %v870, %v1077
        %v1117 = vmul.f32 %v873, %v1079
        %v1118 = vmul.f32 %v878, %v1081
        %v1119 = vmul.f32 %v881, %v1083
        %v1120 = vmul.f32 %v886, %v1085
        %v1121 = vmul.f32 %v889, %v1087
        %v1122 = vmul.f32 %v894, %v1089
        %v1123 = vmul.f32 %v897, %v1091
        %v1124 = vpack.c.bf16 %v1093, %v1092
        %v1125 = vpack.c.bf16 %v1095, %v1094
        %v1126 = vpack.c.bf16 %v1097, %v1096
        %v1127 = vpack.c.bf16 %v1099, %v1098
        %v1128 = vpack.c.bf16 %v1101, %v1100
        %v1129 = vpack.c.bf16 %v1103, %v1102
        %v1130 = vpack.c.bf16 %v1105, %v1104
        %v1131 = vpack.c.bf16 %v1107, %v1106
        %v1132 = vpack.c.bf16 %v1109, %v1108
        %v1133 = vpack.c.bf16 %v1111, %v1110
        %v1134 = vpack.c.bf16 %v1113, %v1112
        %v1135 = vpack.c.bf16 %v1115, %v1114
        %v1136 = vpack.c.bf16 %v1117, %v1116
        %v1137 = vpack.c.bf16 %v1119, %v1118
        %v1138 = vpack.c.bf16 %v1121, %v1120
        %v1139 = vpack.c.bf16 %v1123, %v1122
        %v1140 = vld [vmem:[%s3] sm:$0xf]
        %v1141 = vld [vmem:[%s3 + $0x4] sm:$0xf]
        %v1142 = vld [vmem:[%s3 + $0x8] sm:$0xf]
        %v1143 = vld [vmem:[%s3 + $0xc] sm:$0xf]
        %v1144 = vld [vmem:[%s4] sm:$0x1]
        %v1146 = vlaneseq
        %v1147 = vshrl.u32 %v1146, 7
        %v1148 = vsub.s32 0, %v1147
        %v1149 = vrot.slane %v1144, %v1148
        %v1155 = vunpack.c.l.b16 %v1140
        %v1156 = vunpack.c.l.b16 %v1141
        %v1157 = vunpack.c.l.b16 %v1142
        %v1158 = vunpack.c.l.b16 %v1143
        %v1159 = vpack.c.b16 %v1156, %v1155
        %v1160 = vpack.c.b16 %v1158, %v1157
        %vm1163 = vcmask 261120
        %v1165 = vsel %vm1163, %v1124, 0
        %v1168 = vsel %vm1163, %v1125, 0
        %v1171 = vsel %vm1163, %v1126, 0
        %v1174 = vsel %vm1163, %v1127, 0
        %v1177 = vsel %vm1163, %v1128, 0
        %v1180 = vsel %vm1163, %v1129, 0
        %v1183 = vsel %vm1163, %v1130, 0
        %v1186 = vsel %vm1163, %v1131, 0
        %v1189 = vsel %vm1163, %v1132, 0
        %v1192 = vsel %vm1163, %v1133, 0
        %v1195 = vsel %vm1163, %v1134, 0
        %v1198 = vsel %vm1163, %v1135, 0
        %v1201 = vsel %vm1163, %v1136, 0
        %v1204 = vsel %vm1163, %v1137, 0
        %v1207 = vsel %vm1163, %v1138, 0
        %v1210 = vsel %vm1163, %v1139, 0
        %1212 = vmatprep.subr.bf16.mxu0 0
        %1213 = vmatpush1.bf16.msra.mxu0 %v1159
        %1214 = vmatprep.subr.bf16.mxu0 0
        %1215 = vmatpush1.bf16.msra.mxu0 %v1160
        %1216 = vmatprep.subr.bf16.mxu0 0
        %1217 = vmatpush1.bf16.msra.mxu0 0
        %1218 = vmatprep.subr.bf16.mxu0 0
        %1219 = vmatpush1.bf16.msra.mxu0 0
        %1220 = vmatprep.subr.bf16.mxu0 0
        %1221 = vmatpush1.bf16.msra.mxu0 0
        %1222 = vmatprep.subr.bf16.mxu0 0
        %1223 = vmatpush1.bf16.msra.mxu0 0
        %1224 = vmatprep.subr.bf16.mxu0 0
        %1225 = vmatpush1.bf16.msra.mxu0 0
        %1226 = vmatprep.subr.bf16.mxu0 0
        %1227 = vmatpush1.bf16.msra.mxu0 0
        %1228 = vmatprep.subr.bf16.mxu0 0
        %1229 = vmatpush1.bf16.msra.mxu0 0
        %1230 = vmatprep.subr.bf16.mxu0 0
        %1231 = vmatpush1.bf16.msra.mxu0 0
        %1232 = vmatprep.subr.bf16.mxu0 0
        %1233 = vmatpush1.bf16.msra.mxu0 0
        %1234 = vmatprep.subr.bf16.mxu0 0
        %1235 = vmatpush1.bf16.msra.mxu0 0
        %1236 = vmatprep.subr.bf16.mxu0 0
        %1237 = vmatpush1.bf16.msra.mxu0 0
        %1238 = vmatprep.subr.bf16.mxu0 0
        %1239 = vmatpush1.bf16.msra.mxu0 0
        %1240 = vmatprep.subr.bf16.mxu0 0
        %1241 = vmatpush1.bf16.msra.mxu0 0
        %1242 = vmatprep.subr.bf16.mxu0 0
        %1243 = vmatpush1.bf16.msra.mxu0 0
        %1244 = vmatprep.mubr.bf16.mxu0 0
        %1245 = vmatmul.mubr.bf16.gmra.mrb[0].mxu0 %v1165
        %v1246 = vpop.f32.mrb[0].mxu0
        %v1247 = vadd.f32 %v1149, %v1246
        %v1248 = vpop.f32.mrb[0].mxu0
        %v1249 = vpop.f32.mrb[0].mxu0
        %v1250 = vadd.f32 %v1149, %v1249
        %v1251 = vpop.f32.mrb[0].mxu0
        %1252 = vmatprep.mubr.bf16.mxu0 0
        %1253 = vmatmul.mubr.bf16.gmra.mrb[0].mxu0 %v1168
        %v1254 = vpop.f32.mrb[0].mxu0
        %v1255 = vadd.f32 %v1149, %v1254
        %v1256 = vpop.f32.mrb[0].mxu0
        %v1257 = vpop.f32.mrb[0].mxu0
        %v1258 = vadd.f32 %v1149, %v1257
        %v1259 = vpop.f32.mrb[0].mxu0
        %1260 = vmatprep.mubr.bf16.mxu0 0
        %1261 = vmatmul.mubr.bf16.gmra.mrb[0].mxu0 %v1171
        %v1262 = vpop.f32.mrb[0].mxu0
        %v1263 = vadd.f32 %v1149, %v1262
        %v1264 = vpop.f32.mrb[0].mxu0
        %v1265 = vpop.f32.mrb[0].mxu0
        %v1266 = vadd.f32 %v1149, %v1265
        %v1267 = vpop.f32.mrb[0].mxu0
        %1268 = vmatprep.mubr.bf16.mxu0 0
        %1269 = vmatmul.mubr.bf16.gmra.mrb[0].mxu0 %v1174
        %v1270 = vpop.f32.mrb[0].mxu0
        %v1271 = vadd.f32 %v1149, %v1270
        %v1272 = vpop.f32.mrb[0].mxu0
        %v1273 = vpop.f32.mrb[0].mxu0
        %v1274 = vadd.f32 %v1149, %v1273
        %v1275 = vpop.f32.mrb[0].mxu0
        %1276 = vmatprep.mubr.bf16.mxu0 0
        %1277 = vmatmul.mubr.bf16.gmra.mrb[0].mxu0 %v1177
        %v1278 = vpop.f32.mrb[0].mxu0
        %v1279 = vadd.f32 %v1149, %v1278
        %v1280 = vpop.f32.mrb[0].mxu0
        %v1281 = vpop.f32.mrb[0].mxu0
        %v1282 = vadd.f32 %v1149, %v1281
        %v1283 = vpop.f32.mrb[0].mxu0
        %1284 = vmatprep.mubr.bf16.mxu0 0
        %1285 = vmatmul.mubr.bf16.gmra.mrb[0].mxu0 %v1180
        %v1286 = vpop.f32.mrb[0].mxu0
        %v1287 = vadd.f32 %v1149, %v1286
        %v1288 = vpop.f32.mrb[0].mxu0
        %v1289 = vpop.f32.mrb[0].mxu0
        %v1290 = vadd.f32 %v1149, %v1289
        %v1291 = vpop.f32.mrb[0].mxu0
        %1292 = vmatprep.mubr.bf16.mxu0 0
        %1293 = vmatmul.mubr.bf16.gmra.mrb[0].mxu0 %v1183
        %v1294 = vpop.f32.mrb[0].mxu0
        %v1295 = vadd.f32 %v1149, %v1294
        %v1296 = vpop.f32.mrb[0].mxu0
        %v1297 = vpop.f32.mrb[0].mxu0
        %v1298 = vadd.f32 %v1149, %v1297
        %v1299 = vpop.f32.mrb[0].mxu0
        %1300 = vmatprep.mubr.bf16.mxu0 0
        %1301 = vmatmul.mubr.bf16.gmra.mrb[0].mxu0 %v1186
        %v1302 = vpop.f32.mrb[0].mxu0
        %v1303 = vadd.f32 %v1149, %v1302
        %v1304 = vpop.f32.mrb[0].mxu0
        %v1305 = vpop.f32.mrb[0].mxu0
        %v1306 = vadd.f32 %v1149, %v1305
        %v1307 = vpop.f32.mrb[0].mxu0
        %1308 = vmatprep.mubr.bf16.mxu0 0
        %1309 = vmatmul.mubr.bf16.gmra.mrb[0].mxu0 %v1189
        %v1310 = vpop.f32.mrb[0].mxu0
        %v1311 = vadd.f32 %v1149, %v1310
        %v1312 = vpop.f32.mrb[0].mxu0
        %v1313 = vpop.f32.mrb[0].mxu0
        %v1314 = vadd.f32 %v1149, %v1313
        %v1315 = vpop.f32.mrb[0].mxu0
        %1316 = vmatprep.mubr.bf16.mxu0 0
        %1317 = vmatmul.mubr.bf16.gmra.mrb[0].mxu0 %v1192
        %v1318 = vpop.f32.mrb[0].mxu0
        %v1319 = vadd.f32 %v1149, %v1318
        %v1320 = vpop.f32.mrb[0].mxu0
        %v1321 = vpop.f32.mrb[0].mxu0
        %v1322 = vadd.f32 %v1149, %v1321
        %v1323 = vpop.f32.mrb[0].mxu0
        %1324 = vmatprep.mubr.bf16.mxu0 0
        %1325 = vmatmul.mubr.bf16.gmra.mrb[0].mxu0 %v1195
        %v1326 = vpop.f32.mrb[0].mxu0
        %v1327 = vadd.f32 %v1149, %v1326
        %v1328 = vpop.f32.mrb[0].mxu0
        %v1329 = vpop.f32.mrb[0].mxu0
        %v1330 = vadd.f32 %v1149, %v1329
        %v1331 = vpop.f32.mrb[0].mxu0
        %1332 = vmatprep.mubr.bf16.mxu0 0
        %1333 = vmatmul.mubr.bf16.gmra.mrb[0].mxu0 %v1198
        %v1334 = vpop.f32.mrb[0].mxu0
        %v1335 = vadd.f32 %v1149, %v1334
        %v1336 = vpop.f32.mrb[0].mxu0
        %v1337 = vpop.f32.mrb[0].mxu0
        %v1338 = vadd.f32 %v1149, %v1337
        %v1339 = vpop.f32.mrb[0].mxu0
        %1340 = vmatprep.mubr.bf16.mxu0 0
        %1341 = vmatmul.mubr.bf16.gmra.mrb[0].mxu0 %v1201
        %v1342 = vpop.f32.mrb[0].mxu0
        %v1343 = vadd.f32 %v1149, %v1342
        %v1344 = vpop.f32.mrb[0].mxu0
        %v1345 = vpop.f32.mrb[0].mxu0
        %v1346 = vadd.f32 %v1149, %v1345
        %v1347 = vpop.f32.mrb[0].mxu0
        %1348 = vmatprep.mubr.bf16.mxu0 0
        %1349 = vmatmul.mubr.bf16.gmra.mrb[0].mxu0 %v1204
        %v1350 = vpop.f32.mrb[0].mxu0
        %v1351 = vadd.f32 %v1149, %v1350
        %v1352 = vpop.f32.mrb[0].mxu0
        %v1353 = vpop.f32.mrb[0].mxu0
        %v1354 = vadd.f32 %v1149, %v1353
        %v1355 = vpop.f32.mrb[0].mxu0
        %1356 = vmatprep.mubr.bf16.mxu0 0
        %1357 = vmatmul.mubr.bf16.gmra.mrb[0].mxu0 %v1207
        %v1358 = vpop.f32.mrb[0].mxu0
        %v1359 = vadd.f32 %v1149, %v1358
        %v1360 = vpop.f32.mrb[0].mxu0
        %v1361 = vpop.f32.mrb[0].mxu0
        %v1362 = vadd.f32 %v1149, %v1361
        %v1363 = vpop.f32.mrb[0].mxu0
        %1364 = vmatprep.mubr.bf16.mxu0 0
        %1365 = vmatmul.mubr.bf16.gmra.mrb[0].mxu0 %v1210
        %v1366 = vpop.f32.mrb[0].mxu0
        %v1367 = vadd.f32 %v1149, %v1366
        %v1368 = vpop.f32.mrb[0].mxu0
        %v1369 = vpop.f32.mrb[0].mxu0
        %v1370 = vadd.f32 %v1149, %v1369
        %v1371 = vpop.f32.mrb[0].mxu0
        %1372 = vdwg.mxu0
        %v1373 = vxor.u32 %v1247, 2147483648
        %v1374 = vxor.u32 %v1250, 2147483648
        %v1375 = vxor.u32 %v1255, 2147483648
        %v1376 = vxor.u32 %v1258, 2147483648
        %v1377 = vxor.u32 %v1263, 2147483648
        %v1378 = vxor.u32 %v1266, 2147483648
        %v1379 = vxor.u32 %v1271, 2147483648
        %v1380 = vxor.u32 %v1274, 2147483648
        %v1381 = vxor.u32 %v1279, 2147483648
        %v1382 = vxor.u32 %v1282, 2147483648
        %v1383 = vxor.u32 %v1287, 2147483648
        %v1384 = vxor.u32 %v1290, 2147483648
        %v1385 = vxor.u32 %v1295, 2147483648
        %v1386 = vxor.u32 %v1298, 2147483648
        %v1387 = vxor.u32 %v1303, 2147483648
        %v1388 = vxor.u32 %v1306, 2147483648
        %v1389 = vxor.u32 %v1311, 2147483648
        %v1390 = vxor.u32 %v1314, 2147483648
        %v1391 = vxor.u32 %v1319, 2147483648
        %v1392 = vxor.u32 %v1322, 2147483648
        %v1393 = vxor.u32 %v1327, 2147483648
        %v1394 = vxor.u32 %v1330, 2147483648
        %v1395 = vxor.u32 %v1335, 2147483648
        %v1396 = vxor.u32 %v1338, 2147483648
        %v1397 = vxor.u32 %v1343, 2147483648
        %v1398 = vxor.u32 %v1346, 2147483648
        %v1399 = vxor.u32 %v1351, 2147483648
        %v1400 = vxor.u32 %v1354, 2147483648
        %v1401 = vxor.u32 %v1359, 2147483648
        %v1402 = vxor.u32 %v1362, 2147483648
        %v1403 = vxor.u32 %v1367, 2147483648
        %v1404 = vxor.u32 %v1370, 2147483648
        %v1405 = vmul.f32 %v1373, 1.442695
        %v1406 = vpow.pop %v1405
        %v1407 = vmul.f32 %v1374, 1.442695
        %v1408 = vpow.pop %v1407
        %v1409 = vmul.f32 %v1375, 1.442695
        %v1410 = vpow.pop %v1409
        %v1411 = vmul.f32 %v1376, 1.442695
        %v1412 = vpow.pop %v1411
        %v1413 = vmul.f32 %v1377, 1.442695
        %v1414 = vpow.pop %v1413
        %v1415 = vmul.f32 %v1378, 1.442695
        %v1416 = vpow.pop %v1415
        %v1417 = vmul.f32 %v1379, 1.442695
        %v1418 = vpow.pop %v1417
        %v1419 = vmul.f32 %v1380, 1.442695
        %v1420 = vpow.pop %v1419
        %v1421 = vmul.f32 %v1381, 1.442695
        %v1422 = vpow.pop %v1421
        %v1423 = vmul.f32 %v1382, 1.442695
        %v1424 = vpow.pop %v1423
        %v1425 = vmul.f32 %v1383, 1.442695
        %v1426 = vpow.pop %v1425
        %v1427 = vmul.f32 %v1384, 1.442695
        %v1428 = vpow.pop %v1427
        %v1429 = vmul.f32 %v1385, 1.442695
        %v1430 = vpow.pop %v1429
        %v1431 = vmul.f32 %v1386, 1.442695
        %v1432 = vpow.pop %v1431
        %v1433 = vmul.f32 %v1387, 1.442695
        %v1434 = vpow.pop %v1433
        %v1435 = vmul.f32 %v1388, 1.442695
        %v1436 = vpow.pop %v1435
        %v1437 = vmul.f32 %v1389, 1.442695
        %v1438 = vpow.pop %v1437
        %v1439 = vmul.f32 %v1390, 1.442695
        %v1440 = vpow.pop %v1439
        %v1441 = vmul.f32 %v1391, 1.442695
        %v1442 = vpow.pop %v1441
        %v1443 = vmul.f32 %v1392, 1.442695
        %v1444 = vpow.pop %v1443
        %v1445 = vmul.f32 %v1393, 1.442695
        %v1446 = vpow.pop %v1445
        %v1447 = vmul.f32 %v1394, 1.442695
        %v1448 = vpow.pop %v1447
        %v1449 = vmul.f32 %v1395, 1.442695
        %v1450 = vpow.pop %v1449
        %v1451 = vmul.f32 %v1396, 1.442695
        %v1452 = vpow.pop %v1451
        %v1453 = vmul.f32 %v1397, 1.442695
        %v1454 = vpow.pop %v1453
        %v1455 = vmul.f32 %v1398, 1.442695
        %v1456 = vpow.pop %v1455
        %v1457 = vmul.f32 %v1399, 1.442695
        %v1458 = vpow.pop %v1457
        %v1459 = vmul.f32 %v1400, 1.442695
        %v1460 = vpow.pop %v1459
        %v1461 = vmul.f32 %v1401, 1.442695
        %v1462 = vpow.pop %v1461
        %v1463 = vmul.f32 %v1402, 1.442695
        %v1464 = vpow.pop %v1463
        %v1465 = vmul.f32 %v1403, 1.442695
        %v1466 = vpow.pop %v1465
        %v1467 = vmul.f32 %v1404, 1.442695
        %v1468 = vpow.pop %v1467
        %v1469 = vadd.f32 %v1406, 1.0
        %v1470 = vadd.f32 %v1408, 1.0
        %v1471 = vadd.f32 %v1410, 1.0
        %v1472 = vadd.f32 %v1412, 1.0
        %v1473 = vadd.f32 %v1414, 1.0
        %v1474 = vadd.f32 %v1416, 1.0
        %v1475 = vadd.f32 %v1418, 1.0
        %v1476 = vadd.f32 %v1420, 1.0
        %v1477 = vadd.f32 %v1422, 1.0
        %v1478 = vadd.f32 %v1424, 1.0
        %v1479 = vadd.f32 %v1426, 1.0
        %v1480 = vadd.f32 %v1428, 1.0
        %v1481 = vadd.f32 %v1430, 1.0
        %v1482 = vadd.f32 %v1432, 1.0
        %v1483 = vadd.f32 %v1434, 1.0
        %v1484 = vadd.f32 %v1436, 1.0
        %v1485 = vadd.f32 %v1438, 1.0
        %v1486 = vadd.f32 %v1440, 1.0
        %v1487 = vadd.f32 %v1442, 1.0
        %v1488 = vadd.f32 %v1444, 1.0
        %v1489 = vadd.f32 %v1446, 1.0
        %v1490 = vadd.f32 %v1448, 1.0
        %v1491 = vadd.f32 %v1450, 1.0
        %v1492 = vadd.f32 %v1452, 1.0
        %v1493 = vadd.f32 %v1454, 1.0
        %v1494 = vadd.f32 %v1456, 1.0
        %v1495 = vadd.f32 %v1458, 1.0
        %v1496 = vadd.f32 %v1460, 1.0
        %v1497 = vadd.f32 %v1462, 1.0
        %v1498 = vadd.f32 %v1464, 1.0
        %v1499 = vadd.f32 %v1466, 1.0
        %v1500 = vadd.f32 %v1468, 1.0
        %v1501 = vrcp.pop %v1469
        %v1502 = vmul.f32 1.0, %v1501
        %v1503 = vrcp.pop %v1470
        %v1504 = vmul.f32 1.0, %v1503
        %v1505 = vrcp.pop %v1471
        %v1506 = vmul.f32 1.0, %v1505
        %v1507 = vrcp.pop %v1472
        %v1508 = vmul.f32 1.0, %v1507
        %v1509 = vrcp.pop %v1473
        %v1510 = vmul.f32 1.0, %v1509
        %v1511 = vrcp.pop %v1474
        %v1512 = vmul.f32 1.0, %v1511
        %v1513 = vrcp.pop %v1475
        %v1514 = vmul.f32 1.0, %v1513
        %v1515 = vrcp.pop %v1476
        %v1516 = vmul.f32 1.0, %v1515
        %v1517 = vrcp.pop %v1477
        %v1518 = vmul.f32 1.0, %v1517
        %v1519 = vrcp.pop %v1478
        %v1520 = vmul.f32 1.0, %v1519
        %v1521 = vrcp.pop %v1479
        %v1522 = vmul.f32 1.0, %v1521
        %v1523 = vrcp.pop %v1480
        %v1524 = vmul.f32 1.0, %v1523
        %v1525 = vrcp.pop %v1481
        %v1526 = vmul.f32 1.0, %v1525
        %v1527 = vrcp.pop %v1482
        %v1528 = vmul.f32 1.0, %v1527
        %v1529 = vrcp.pop %v1483
        %v1530 = vmul.f32 1.0, %v1529
        %v1531 = vrcp.pop %v1484
        %v1532 = vmul.f32 1.0, %v1531
        %v1533 = vrcp.pop %v1485
        %v1534 = vmul.f32 1.0, %v1533
        %v1535 = vrcp.pop %v1486
        %v1536 = vmul.f32 1.0, %v1535
        %v1537 = vrcp.pop %v1487
        %v1538 = vmul.f32 1.0, %v1537
        %v1539 = vrcp.pop %v1488
        %v1540 = vmul.f32 1.0, %v1539
        %v1541 = vrcp.pop %v1489
        %v1542 = vmul.f32 1.0, %v1541
        %v1543 = vrcp.pop %v1490
        %v1544 = vmul.f32 1.0, %v1543
        %v1545 = vrcp.pop %v1491
        %v1546 = vmul.f32 1.0, %v1545
        %v1547 = vrcp.pop %v1492
        %v1548 = vmul.f32 1.0, %v1547
        %v1549 = vrcp.pop %v1493
        %v1550 = vmul.f32 1.0, %v1549
        %v1551 = vrcp.pop %v1494
        %v1552 = vmul.f32 1.0, %v1551
        %v1553 = vrcp.pop %v1495
        %v1554 = vmul.f32 1.0, %v1553
        %v1555 = vrcp.pop %v1496
        %v1556 = vmul.f32 1.0, %v1555
        %v1557 = vrcp.pop %v1497
        %v1558 = vmul.f32 1.0, %v1557
        %v1559 = vrcp.pop %v1498
        %v1560 = vmul.f32 1.0, %v1559
        %v1561 = vrcp.pop %v1499
        %v1562 = vmul.f32 1.0, %v1561
        %v1563 = vrcp.pop %v1500
        %v1564 = vmul.f32 1.0, %v1563
        %v1565 = vmul.f32 %v1247, %v1502
        %v1566 = vmul.f32 %v1250, %v1504
        %v1567 = vmul.f32 %v1255, %v1506
        %v1568 = vmul.f32 %v1258, %v1508
        %v1569 = vmul.f32 %v1263, %v1510
        %v1570 = vmul.f32 %v1266, %v1512
        %v1571 = vmul.f32 %v1271, %v1514
        %v1572 = vmul.f32 %v1274, %v1516
        %v1573 = vmul.f32 %v1279, %v1518
        %v1574 = vmul.f32 %v1282, %v1520
        %v1575 = vmul.f32 %v1287, %v1522
        %v1576 = vmul.f32 %v1290, %v1524
        %v1577 = vmul.f32 %v1295, %v1526
        %v1578 = vmul.f32 %v1298, %v1528
        %v1579 = vmul.f32 %v1303, %v1530
        %v1580 = vmul.f32 %v1306, %v1532
        %v1581 = vmul.f32 %v1311, %v1534
        %v1582 = vmul.f32 %v1314, %v1536
        %v1583 = vmul.f32 %v1319, %v1538
        %v1584 = vmul.f32 %v1322, %v1540
        %v1585 = vmul.f32 %v1327, %v1542
        %v1586 = vmul.f32 %v1330, %v1544
        %v1587 = vmul.f32 %v1335, %v1546
        %v1588 = vmul.f32 %v1338, %v1548
        %v1589 = vmul.f32 %v1343, %v1550
        %v1590 = vmul.f32 %v1346, %v1552
        %v1591 = vmul.f32 %v1351, %v1554
        %v1592 = vmul.f32 %v1354, %v1556
        %v1593 = vmul.f32 %v1359, %v1558
        %v1594 = vmul.f32 %v1362, %v1560
        %v1595 = vmul.f32 %v1367, %v1562
        %v1596 = vmul.f32 %v1370, %v1564
        %1597 = vst [vmem:[#allocation2] sm:$0xff] 0.0
        %1598 = vst [vmem:[#allocation2 + $0x8] sm:$0xff] 0.0
        %1599 = vst [vmem:[#allocation2 + $0x10] sm:$0xff] 0.0
        %1600 = vst [vmem:[#allocation2 + $0x18] sm:$0xff] 0.0
        %s1601 = scalar_lea.vmem [#allocation2], 544
        %1602 = vst [vmem:[%s1601] sm:$0xff] 0.0
        %1603 = vst [vmem:[%s1601 + $0x8] sm:$0xff] 0.0
        %1604 = vst [vmem:[%s1601 + $0x10] sm:$0xff] 0.0
        %1605 = vst [vmem:[%s1601 + $0x18] sm:$0xff] 0.0
        %1606 = vst [vmem:[#allocation2] sm:$0xff] 0.0
        %1607 = vst [vmem:[#allocation2 + $0x20] sm:$0xff] 0.0
        %1608 = vst [vmem:[#allocation2 + $0x40] sm:$0xff] 0.0
        %1609 = vst [vmem:[#allocation2 + $0x60] sm:$0xff] 0.0
        %1610 = vst [vmem:[#allocation2 + $0x80] sm:$0xff] 0.0
        %1611 = vst [vmem:[#allocation2 + $0xa0] sm:$0xff] 0.0
        %1612 = vst [vmem:[#allocation2 + $0xc0] sm:$0xff] 0.0
        %1613 = vst [vmem:[#allocation2 + $0xe0] sm:$0xff] 0.0
        %1614 = vst [vmem:[#allocation2 + $0x100] sm:$0xff] 0.0
        %1615 = vst [vmem:[#allocation2 + $0x120] sm:$0xff] 0.0
        %1616 = vst [vmem:[#allocation2 + $0x140] sm:$0xff] 0.0
        %1617 = vst [vmem:[#allocation2 + $0x160] sm:$0xff] 0.0
        %1618 = vst [vmem:[#allocation2 + $0x180] sm:$0xff] 0.0
        %1619 = vst [vmem:[#allocation2 + $0x1a0] sm:$0xff] 0.0
        %1620 = vst [vmem:[#allocation2 + $0x1c0] sm:$0xff] 0.0
        %1621 = vst [vmem:[#allocation2 + $0x1e0] sm:$0xff] 0.0
        %1622 = vst [vmem:[#allocation2 + $0x200] sm:$0xff] 0.0
        %1623 = vst [vmem:[#allocation2 + $0x220] sm:$0xff] 0.0
        %1624 = vst [vmem:[#allocation2 + $0x18] sm:$0xff] 0.0
        %1625 = vst [vmem:[#allocation2 + $0x38] sm:$0xff] 0.0
        %1626 = vst [vmem:[#allocation2 + $0x58] sm:$0xff] 0.0
        %1627 = vst [vmem:[#allocation2 + $0x78] sm:$0xff] 0.0
        %1628 = vst [vmem:[#allocation2 + $0x98] sm:$0xff] 0.0
        %1629 = vst [vmem:[#allocation2 + $0xb8] sm:$0xff] 0.0
        %1630 = vst [vmem:[#allocation2 + $0xd8] sm:$0xff] 0.0
        %1631 = vst [vmem:[#allocation2 + $0xf8] sm:$0xff] 0.0
        %1632 = vst [vmem:[#allocation2 + $0x118] sm:$0xff] 0.0
        %1633 = vst [vmem:[#allocation2 + $0x138] sm:$0xff] 0.0
        %1634 = vst [vmem:[#allocation2 + $0x158] sm:$0xff] 0.0
        %1635 = vst [vmem:[#allocation2 + $0x178] sm:$0xff] 0.0
        %1636 = vst [vmem:[#allocation2 + $0x198] sm:$0xff] 0.0
        %1637 = vst [vmem:[#allocation2 + $0x1b8] sm:$0xff] 0.0
        %1638 = vst [vmem:[#allocation2 + $0x1d8] sm:$0xff] 0.0
        %1639 = vst [vmem:[#allocation2 + $0x1f8] sm:$0xff] 0.0
        %1640 = vst [vmem:[#allocation2 + $0x218] sm:$0xff] 0.0
        %1641 = vst [vmem:[#allocation2 + $0x238] sm:$0xff] 0.0
        %s1642 = scalar_lea.vmem [#allocation2], 32
        %1643 = vst [vmem:[%s1642 + $0x8] sm:$0xff] %v1565
        %1644 = vst [vmem:[%s1642 + $0x10] sm:$0xff] %v1566
        %1645 = vst [vmem:[%s1642 + $0x28] sm:$0xff] %v1567
        %1646 = vst [vmem:[%s1642 + $0x30] sm:$0xff] %v1568
        %1647 = vst [vmem:[%s1642 + $0x48] sm:$0xff] %v1569
        %1648 = vst [vmem:[%s1642 + $0x50] sm:$0xff] %v1570
        %1649 = vst [vmem:[%s1642 + $0x68] sm:$0xff] %v1571
        %1650 = vst [vmem:[%s1642 + $0x70] sm:$0xff] %v1572
        %1651 = vst [vmem:[%s1642 + $0x88] sm:$0xff] %v1573
        %1652 = vst [vmem:[%s1642 + $0x90] sm:$0xff] %v1574
        %1653 = vst [vmem:[%s1642 + $0xa8] sm:$0xff] %v1575
        %1654 = vst [vmem:[%s1642 + $0xb0] sm:$0xff] %v1576
        %1655 = vst [vmem:[%s1642 + $0xc8] sm:$0xff] %v1577
        %1656 = vst [vmem:[%s1642 + $0xd0] sm:$0xff] %v1578
        %1657 = vst [vmem:[%s1642 + $0xe8] sm:$0xff] %v1579
        %1658 = vst [vmem:[%s1642 + $0xf0] sm:$0xff] %v1580
        %1659 = vst [vmem:[%s1642 + $0x108] sm:$0xff] %v1581
        %1660 = vst [vmem:[%s1642 + $0x110] sm:$0xff] %v1582
        %1661 = vst [vmem:[%s1642 + $0x128] sm:$0xff] %v1583
        %1662 = vst [vmem:[%s1642 + $0x130] sm:$0xff] %v1584
        %1663 = vst [vmem:[%s1642 + $0x148] sm:$0xff] %v1585
        %1664 = vst [vmem:[%s1642 + $0x150] sm:$0xff] %v1586
        %1665 = vst [vmem:[%s1642 + $0x168] sm:$0xff] %v1587
        %1666 = vst [vmem:[%s1642 + $0x170] sm:$0xff] %v1588
        %1667 = vst [vmem:[%s1642 + $0x188] sm:$0xff] %v1589
        %1668 = vst [vmem:[%s1642 + $0x190] sm:$0xff] %v1590
        %1669 = vst [vmem:[%s1642 + $0x1a8] sm:$0xff] %v1591
        %1670 = vst [vmem:[%s1642 + $0x1b0] sm:$0xff] %v1592
        %1671 = vst [vmem:[%s1642 + $0x1c8] sm:$0xff] %v1593
        %1672 = vst [vmem:[%s1642 + $0x1d0] sm:$0xff] %v1594
        %1673 = vst [vmem:[%s1642 + $0x1e8] sm:$0xff] %v1595
        %1674 = vst [vmem:[%s1642 + $0x1f0] sm:$0xff] %v1596
        %v1675 = vld [vmem:[%s5] sm:$0xff]
        %v1676 = vld [vmem:[%s5 + $0x8] sm:$0x1]
        %v1677 = vld [vmem:[%s6] sm:$0x1]
        %v1678 = vld [vmem:[#allocation2 + $0x7] sm:$0xff]
        %v1679 = vld [vmem:[#allocation2 + $0xf] sm:$0xff]
        %v1680 = vld [vmem:[#allocation2 + $0x27] sm:$0xff]
        %v1681 = vld [vmem:[#allocation2 + $0x2f] sm:$0xff]
        %v1682 = vld [vmem:[#allocation2 + $0x47] sm:$0xff]
        %v1683 = vld [vmem:[#allocation2 + $0x4f] sm:$0xff]
        %v1684 = vld [vmem:[#allocation2 + $0x67] sm:$0xff]
        %v1685 = vld [vmem:[#allocation2 + $0x6f] sm:$0xff]
        %v1686 = vld [vmem:[#allocation2 + $0x87] sm:$0xff]
        %v1687 = vld [vmem:[#allocation2 + $0x8f] sm:$0xff]
        %v1688 = vld [vmem:[#allocation2 + $0xa7] sm:$0xff]
        %v1689 = vld [vmem:[#allocation2 + $0xaf] sm:$0xff]
        %v1690 = vld [vmem:[#allocation2 + $0xc7] sm:$0xff]
        %v1691 = vld [vmem:[#allocation2 + $0xcf] sm:$0xff]
        %v1692 = vld [vmem:[#allocation2 + $0xe7] sm:$0xff]
        %v1693 = vld [vmem:[#allocation2 + $0xef] sm:$0xff]
        %v1694 = vld [vmem:[#allocation2 + $0x107] sm:$0xff]
        %v1695 = vld [vmem:[#allocation2 + $0x10f] sm:$0xff]
        %v1696 = vld [vmem:[#allocation2 + $0x127] sm:$0xff]
        %v1697 = vld [vmem:[#allocation2 + $0x12f] sm:$0xff]
        %v1698 = vlaneseq
        %v1699 = vshrl.u32 %v1698, 7
        %v1700 = vsub.s32 0, %v1699
        %v1701 = vrot.slane %v1675, %v1700
        %v1702 = vmul.f32 %v1678, %v1701
        %v1703 = vmul.f32 %v1679, %v1701
        %v1704 = vmul.f32 %v1680, %v1701
        %v1705 = vmul.f32 %v1681, %v1701
        %v1706 = vmul.f32 %v1682, %v1701
        %v1707 = vmul.f32 %v1683, %v1701
        %v1708 = vmul.f32 %v1684, %v1701
        %v1709 = vmul.f32 %v1685, %v1701
        %v1710 = vmul.f32 %v1686, %v1701
        %v1711 = vmul.f32 %v1687, %v1701
        %v1712 = vmul.f32 %v1688, %v1701
        %v1713 = vmul.f32 %v1689, %v1701
        %v1714 = vmul.f32 %v1690, %v1701
        %v1715 = vmul.f32 %v1691, %v1701
        %v1716 = vmul.f32 %v1692, %v1701
        %v1717 = vmul.f32 %v1693, %v1701
        %v1718 = vadd.f32 %v1702, 0.0
        %v1719 = vadd.f32 %v1703, 0.0
        %v1720 = vadd.f32 %v1704, 0.0
        %v1721 = vadd.f32 %v1705, 0.0
        %v1722 = vadd.f32 %v1706, 0.0
        %v1723 = vadd.f32 %v1707, 0.0
        %v1724 = vadd.f32 %v1708, 0.0
        %v1725 = vadd.f32 %v1709, 0.0
        %v1726 = vadd.f32 %v1710, 0.0
        %v1727 = vadd.f32 %v1711, 0.0
        %v1728 = vadd.f32 %v1712, 0.0
        %v1729 = vadd.f32 %v1713, 0.0
        %v1730 = vadd.f32 %v1714, 0.0
        %v1731 = vadd.f32 %v1715, 0.0
        %v1732 = vadd.f32 %v1716, 0.0
        %v1733 = vadd.f32 %v1717, 0.0
        %v1734 = vlaneseq
        %v1735 = vshrl.u32 %v1734, 7
        %v1736 = vsub.s32 3, %v1735
        %v1737 = vrot.slane %v1675, %v1736
        %v1738 = vmul.f32 %v1680, %v1737
        %v1739 = vmul.f32 %v1681, %v1737
        %v1740 = vmul.f32 %v1682, %v1737
        %v1741 = vmul.f32 %v1683, %v1737
        %v1742 = vmul.f32 %v1684, %v1737
        %v1743 = vmul.f32 %v1685, %v1737
        %v1744 = vmul.f32 %v1686, %v1737
        %v1745 = vmul.f32 %v1687, %v1737
        %v1746 = vmul.f32 %v1688, %v1737
        %v1747 = vmul.f32 %v1689, %v1737
        %v1748 = vmul.f32 %v1690, %v1737
        %v1749 = vmul.f32 %v1691, %v1737
        %v1750 = vmul.f32 %v1692, %v1737
        %v1751 = vmul.f32 %v1693, %v1737
        %v1752 = vmul.f32 %v1694, %v1737
        %v1753 = vmul.f32 %v1695, %v1737
        %v1754 = vadd.f32 %v1718, %v1738
        %v1755 = vadd.f32 %v1719, %v1739
        %v1756 = vadd.f32 %v1720, %v1740
        %v1757 = vadd.f32 %v1721, %v1741
        %v1758 = vadd.f32 %v1722, %v1742
        %v1759 = vadd.f32 %v1723, %v1743
        %v1760 = vadd.f32 %v1724, %v1744
        %v1761 = vadd.f32 %v1725, %v1745
        %v1762 = vadd.f32 %v1726, %v1746
        %v1763 = vadd.f32 %v1727, %v1747
        %v1764 = vadd.f32 %v1728, %v1748
        %v1765 = vadd.f32 %v1729, %v1749
        %v1766 = vadd.f32 %v1730, %v1750
        %v1767 = vadd.f32 %v1731, %v1751
        %v1768 = vadd.f32 %v1732, %v1752
        %v1769 = vadd.f32 %v1733, %v1753
        %v1770 = vlaneseq
        %v1771 = vshrl.u32 %v1770, 7
        %v1772 = vsub.s32 6, %v1771
        %v1773 = vrot.slane %v1675, %v1772
        %v1774 = vmul.f32 %v1682, %v1773
        %v1775 = vmul.f32 %v1683, %v1773
        %v1776 = vmul.f32 %v1684, %v1773
        %v1777 = vmul.f32 %v1685, %v1773
        %v1778 = vmul.f32 %v1686, %v1773
        %v1779 = vmul.f32 %v1687, %v1773
        %v1780 = vmul.f32 %v1688, %v1773
        %v1781 = vmul.f32 %v1689, %v1773
        %v1782 = vmul.f32 %v1690, %v1773
        %v1783 = vmul.f32 %v1691, %v1773
        %v1784 = vmul.f32 %v1692, %v1773
        %v1785 = vmul.f32 %v1693, %v1773
        %v1786 = vmul.f32 %v1694, %v1773
        %v1787 = vmul.f32 %v1695, %v1773
        %v1788 = vmul.f32 %v1696, %v1773
        %v1789 = vmul.f32 %v1697, %v1773
        %v1790 = vadd.f32 %v1754, %v1774
        %v1791 = vadd.f32 %v1755, %v1775
        %v1792 = vadd.f32 %v1756, %v1776
        %v1793 = vadd.f32 %v1757, %v1777
        %v1794 = vadd.f32 %v1758, %v1778
        %v1795 = vadd.f32 %v1759, %v1779
        %v1796 = vadd.f32 %v1760, %v1780
        %v1797 = vadd.f32 %v1761, %v1781
        %v1798 = vadd.f32 %v1762, %v1782
        %v1799 = vadd.f32 %v1763, %v1783
        %v1800 = vadd.f32 %v1764, %v1784
        %v1801 = vadd.f32 %v1765, %v1785
        %v1802 = vadd.f32 %v1766, %v1786
        %v1803 = vadd.f32 %v1767, %v1787
        %v1804 = vadd.f32 %v1768, %v1788
        %v1805 = vadd.f32 %v1769, %v1789
        %v1806 = vld [vmem:[#allocation2 + $0x8] sm:$0xff]
        %v1807 = vld [vmem:[#allocation2 + $0x10] sm:$0xff]
        %v1808 = vld [vmem:[#allocation2 + $0x28] sm:$0xff]
        %v1809 = vld [vmem:[#allocation2 + $0x30] sm:$0xff]
        %v1810 = vld [vmem:[#allocation2 + $0x48] sm:$0xff]
        %v1811 = vld [vmem:[#allocation2 + $0x50] sm:$0xff]
        %v1812 = vld [vmem:[#allocation2 + $0x68] sm:$0xff]
        %v1813 = vld [vmem:[#allocation2 + $0x70] sm:$0xff]
        %v1814 = vld [vmem:[#allocation2 + $0x88] sm:$0xff]
        %v1815 = vld [vmem:[#allocation2 + $0x90] sm:$0xff]
        %v1816 = vld [vmem:[#allocation2 + $0xa8] sm:$0xff]
        %v1817 = vld [vmem:[#allocation2 + $0xb0] sm:$0xff]
        %v1818 = vld [vmem:[#allocation2 + $0xc8] sm:$0xff]
        %v1819 = vld [vmem:[#allocation2 + $0xd0] sm:$0xff]
        %v1820 = vld [vmem:[#allocation2 + $0xe8] sm:$0xff]
        %v1821 = vld [vmem:[#allocation2 + $0xf0] sm:$0xff]
        %v1822 = vld [vmem:[#allocation2 + $0x108] sm:$0xff]
        %v1823 = vld [vmem:[#allocation2 + $0x110] sm:$0xff]
        %v1824 = vld [vmem:[#allocation2 + $0x128] sm:$0xff]
        %v1825 = vld [vmem:[#allocation2 + $0x130] sm:$0xff]
        %v1826 = vlaneseq
        %v1827 = vshrl.u32 %v1826, 7
        %v1828 = vsub.s32 1, %v1827
        %v1829 = vrot.slane %v1675, %v1828
        %v1830 = vmul.f32 %v1806, %v1829
        %v1831 = vmul.f32 %v1807, %v1829
        %v1832 = vmul.f32 %v1808, %v1829
        %v1833 = vmul.f32 %v1809, %v1829
        %v1834 = vmul.f32 %v1810, %v1829
        %v1835 = vmul.f32 %v1811, %v1829
        %v1836 = vmul.f32 %v1812, %v1829
        %v1837 = vmul.f32 %v1813, %v1829
        %v1838 = vmul.f32 %v1814, %v1829
        %v1839 = vmul.f32 %v1815, %v1829
        %v1840 = vmul.f32 %v1816, %v1829
        %v1841 = vmul.f32 %v1817, %v1829
        %v1842 = vmul.f32 %v1818, %v1829
        %v1843 = vmul.f32 %v1819, %v1829
        %v1844 = vmul.f32 %v1820, %v1829
        %v1845 = vmul.f32 %v1821, %v1829
        %v1846 = vadd.f32 %v1790, %v1830
        %v1847 = vadd.f32 %v1791, %v1831
        %v1848 = vadd.f32 %v1792, %v1832
        %v1849 = vadd.f32 %v1793, %v1833
        %v1850 = vadd.f32 %v1794, %v1834
        %v1851 = vadd.f32 %v1795, %v1835
        %v1852 = vadd.f32 %v1796, %v1836
        %v1853 = vadd.f32 %v1797, %v1837
        %v1854 = vadd.f32 %v1798, %v1838
        %v1855 = vadd.f32 %v1799, %v1839
        %v1856 = vadd.f32 %v1800, %v1840
        %v1857 = vadd.f32 %v1801, %v1841
        %v1858 = vadd.f32 %v1802, %v1842
        %v1859 = vadd.f32 %v1803, %v1843
        %v1860 = vadd.f32 %v1804, %v1844
        %v1861 = vadd.f32 %v1805, %v1845
        %v1862 = vlaneseq
        %v1863 = vshrl.u32 %v1862, 7
        %v1864 = vsub.s32 4, %v1863
        %v1865 = vrot.slane %v1675, %v1864
        %v1866 = vmul.f32 %v1808, %v1865
        %v1867 = vmul.f32 %v1809, %v1865
        %v1868 = vmul.f32 %v1810, %v1865
        %v1869 = vmul.f32 %v1811, %v1865
        %v1870 = vmul.f32 %v1812, %v1865
        %v1871 = vmul.f32 %v1813, %v1865
        %v1872 = vmul.f32 %v1814, %v1865
        %v1873 = vmul.f32 %v1815, %v1865
        %v1874 = vmul.f32 %v1816, %v1865
        %v1875 = vmul.f32 %v1817, %v1865
        %v1876 = vmul.f32 %v1818, %v1865
        %v1877 = vmul.f32 %v1819, %v1865
        %v1878 = vmul.f32 %v1820, %v1865
        %v1879 = vmul.f32 %v1821, %v1865
        %v1880 = vmul.f32 %v1822, %v1865
        %v1881 = vmul.f32 %v1823, %v1865
        %v1882 = vadd.f32 %v1846, %v1866
        %v1883 = vadd.f32 %v1847, %v1867
        %v1884 = vadd.f32 %v1848, %v1868
        %v1885 = vadd.f32 %v1849, %v1869
        %v1886 = vadd.f32 %v1850, %v1870
        %v1887 = vadd.f32 %v1851, %v1871
        %v1888 = vadd.f32 %v1852, %v1872
        %v1889 = vadd.f32 %v1853, %v1873
        %v1890 = vadd.f32 %v1854, %v1874
        %v1891 = vadd.f32 %v1855, %v1875
        %v1892 = vadd.f32 %v1856, %v1876
        %v1893 = vadd.f32 %v1857, %v1877
        %v1894 = vadd.f32 %v1858, %v1878
        %v1895 = vadd.f32 %v1859, %v1879
        %v1896 = vadd.f32 %v1860, %v1880
        %v1897 = vadd.f32 %v1861, %v1881
        %v1898 = vlaneseq
        %v1899 = vshrl.u32 %v1898, 7
        %v1900 = vsub.s32 7, %v1899
        %v1901 = vrot.slane %v1675, %v1900
        %v1902 = vmul.f32 %v1810, %v1901
        %v1903 = vmul.f32 %v1811, %v1901
        %v1904 = vmul.f32 %v1812, %v1901
        %v1905 = vmul.f32 %v1813, %v1901
        %v1906 = vmul.f32 %v1814, %v1901
        %v1907 = vmul.f32 %v1815, %v1901
        %v1908 = vmul.f32 %v1816, %v1901
        %v1909 = vmul.f32 %v1817, %v1901
        %v1910 = vmul.f32 %v1818, %v1901
        %v1911 = vmul.f32 %v1819, %v1901
        %v1912 = vmul.f32 %v1820, %v1901
        %v1913 = vmul.f32 %v1821, %v1901
        %v1914 = vmul.f32 %v1822, %v1901
        %v1915 = vmul.f32 %v1823, %v1901
        %v1916 = vmul.f32 %v1824, %v1901
        %v1917 = vmul.f32 %v1825, %v1901
        %v1918 = vadd.f32 %v1882, %v1902
        %v1919 = vadd.f32 %v1883, %v1903
        %v1920 = vadd.f32 %v1884, %v1904
        %v1921 = vadd.f32 %v1885, %v1905
        %v1922 = vadd.f32 %v1886, %v1906
        %v1923 = vadd.f32 %v1887, %v1907
        %v1924 = vadd.f32 %v1888, %v1908
        %v1925 = vadd.f32 %v1889, %v1909
        %v1926 = vadd.f32 %v1890, %v1910
        %v1927 = vadd.f32 %v1891, %v1911
        %v1928 = vadd.f32 %v1892, %v1912
        %v1929 = vadd.f32 %v1893, %v1913
        %v1930 = vadd.f32 %v1894, %v1914
        %v1931 = vadd.f32 %v1895, %v1915
        %v1932 = vadd.f32 %v1896, %v1916
        %v1933 = vadd.f32 %v1897, %v1917
        %v1934 = vld [vmem:[#allocation2 + $0x9] sm:$0xff]
        %v1935 = vld [vmem:[#allocation2 + $0x11] sm:$0xff]
        %v1936 = vld [vmem:[#allocation2 + $0x29] sm:$0xff]
        %v1937 = vld [vmem:[#allocation2 + $0x31] sm:$0xff]
        %v1938 = vld [vmem:[#allocation2 + $0x49] sm:$0xff]
        %v1939 = vld [vmem:[#allocation2 + $0x51] sm:$0xff]
        %v1940 = vld [vmem:[#allocation2 + $0x69] sm:$0xff]
        %v1941 = vld [vmem:[#allocation2 + $0x71] sm:$0xff]
        %v1942 = vld [vmem:[#allocation2 + $0x89] sm:$0xff]
        %v1943 = vld [vmem:[#allocation2 + $0x91] sm:$0xff]
        %v1944 = vld [vmem:[#allocation2 + $0xa9] sm:$0xff]
        %v1945 = vld [vmem:[#allocation2 + $0xb1] sm:$0xff]
        %v1946 = vld [vmem:[#allocation2 + $0xc9] sm:$0xff]
        %v1947 = vld [vmem:[#allocation2 + $0xd1] sm:$0xff]
        %v1948 = vld [vmem:[#allocation2 + $0xe9] sm:$0xff]
        %v1949 = vld [vmem:[#allocation2 + $0xf1] sm:$0xff]
        %v1950 = vld [vmem:[#allocation2 + $0x109] sm:$0xff]
        %v1951 = vld [vmem:[#allocation2 + $0x111] sm:$0xff]
        %v1952 = vld [vmem:[#allocation2 + $0x129] sm:$0xff]
        %v1953 = vld [vmem:[#allocation2 + $0x131] sm:$0xff]
        %v1954 = vlaneseq
        %v1955 = vshrl.u32 %v1954, 7
        %v1956 = vsub.s32 2, %v1955
        %v1957 = vrot.slane %v1675, %v1956
        %v1958 = vmul.f32 %v1934, %v1957
        %v1959 = vmul.f32 %v1935, %v1957
        %v1960 = vmul.f32 %v1936, %v1957
        %v1961 = vmul.f32 %v1937, %v1957
        %v1962 = vmul.f32 %v1938, %v1957
        %v1963 = vmul.f32 %v1939, %v1957
        %v1964 = vmul.f32 %v1940, %v1957
        %v1965 = vmul.f32 %v1941, %v1957
        %v1966 = vmul.f32 %v1942, %v1957
        %v1967 = vmul.f32 %v1943, %v1957
        %v1968 = vmul.f32 %v1944, %v1957
        %v1969 = vmul.f32 %v1945, %v1957
        %v1970 = vmul.f32 %v1946, %v1957
        %v1971 = vmul.f32 %v1947, %v1957
        %v1972 = vmul.f32 %v1948, %v1957
        %v1973 = vmul.f32 %v1949, %v1957
        %v1974 = vadd.f32 %v1918, %v1958
        %v1975 = vadd.f32 %v1919, %v1959
        %v1976 = vadd.f32 %v1920, %v1960
        %v1977 = vadd.f32 %v1921, %v1961
        %v1978 = vadd.f32 %v1922, %v1962
        %v1979 = vadd.f32 %v1923, %v1963
        %v1980 = vadd.f32 %v1924, %v1964
        %v1981 = vadd.f32 %v1925, %v1965
        %v1982 = vadd.f32 %v1926, %v1966
        %v1983 = vadd.f32 %v1927, %v1967
        %v1984 = vadd.f32 %v1928, %v1968
        %v1985 = vadd.f32 %v1929, %v1969
        %v1986 = vadd.f32 %v1930, %v1970
        %v1987 = vadd.f32 %v1931, %v1971
        %v1988 = vadd.f32 %v1932, %v1972
        %v1989 = vadd.f32 %v1933, %v1973
        %v1990 = vlaneseq
        %v1991 = vshrl.u32 %v1990, 7
        %v1992 = vsub.s32 5, %v1991
        %v1993 = vrot.slane %v1675, %v1992
        %v1994 = vmul.f32 %v1936, %v1993
        %v1995 = vmul.f32 %v1937, %v1993
        %v1996 = vmul.f32 %v1938, %v1993
        %v1997 = vmul.f32 %v1939, %v1993
        %v1998 = vmul.f32 %v1940, %v1993
        %v1999 = vmul.f32 %v1941, %v1993
        %v2000 = vmul.f32 %v1942, %v1993
        %v2001 = vmul.f32 %v1943, %v1993
        %v2002 = vmul.f32 %v1944, %v1993
        %v2003 = vmul.f32 %v1945, %v1993
        %v2004 = vmul.f32 %v1946, %v1993
        %v2005 = vmul.f32 %v1947, %v1993
        %v2006 = vmul.f32 %v1948, %v1993
        %v2007 = vmul.f32 %v1949, %v1993
        %v2008 = vmul.f32 %v1950, %v1993
        %v2009 = vmul.f32 %v1951, %v1993
        %v2010 = vadd.f32 %v1974, %v1994
        %v2011 = vadd.f32 %v1975, %v1995
        %v2012 = vadd.f32 %v1976, %v1996
        %v2013 = vadd.f32 %v1977, %v1997
        %v2014 = vadd.f32 %v1978, %v1998
        %v2015 = vadd.f32 %v1979, %v1999
        %v2016 = vadd.f32 %v1980, %v2000
        %v2017 = vadd.f32 %v1981, %v2001
        %v2018 = vadd.f32 %v1982, %v2002
        %v2019 = vadd.f32 %v1983, %v2003
        %v2020 = vadd.f32 %v1984, %v2004
        %v2021 = vadd.f32 %v1985, %v2005
        %v2022 = vadd.f32 %v1986, %v2006
        %v2023 = vadd.f32 %v1987, %v2007
        %v2024 = vadd.f32 %v1988, %v2008
        %v2025 = vadd.f32 %v1989, %v2009
        %v2026 = vlaneseq
        %v2027 = vshrl.u32 %v2026, 7
        %v2028 = vsub.s32 0, %v2027
        %v2029 = vrot.slane %v1676, %v2028
        %v2030 = vmul.f32 %v1938, %v2029
        %v2031 = vmul.f32 %v1939, %v2029
        %v2032 = vmul.f32 %v1940, %v2029
        %v2033 = vmul.f32 %v1941, %v2029
        %v2034 = vmul.f32 %v1942, %v2029
        %v2035 = vmul.f32 %v1943, %v2029
        %v2036 = vmul.f32 %v1944, %v2029
        %v2037 = vmul.f32 %v1945, %v2029
        %v2038 = vmul.f32 %v1946, %v2029
        %v2039 = vmul.f32 %v1947, %v2029
        %v2040 = vmul.f32 %v1948, %v2029
        %v2041 = vmul.f32 %v1949, %v2029
        %v2042 = vmul.f32 %v1950, %v2029
        %v2043 = vmul.f32 %v1951, %v2029
        %v2044 = vmul.f32 %v1952, %v2029
        %v2045 = vmul.f32 %v1953, %v2029
        %v2046 = vadd.f32 %v2010, %v2030
        %v2047 = vadd.f32 %v2011, %v2031
        %v2048 = vadd.f32 %v2012, %v2032
        %v2049 = vadd.f32 %v2013, %v2033
        %v2050 = vadd.f32 %v2014, %v2034
        %v2051 = vadd.f32 %v2015, %v2035
        %v2052 = vadd.f32 %v2016, %v2036
        %v2053 = vadd.f32 %v2017, %v2037
        %v2054 = vadd.f32 %v2018, %v2038
        %v2055 = vadd.f32 %v2019, %v2039
        %v2056 = vadd.f32 %v2020, %v2040
        %v2057 = vadd.f32 %v2021, %v2041
        %v2058 = vadd.f32 %v2022, %v2042
        %v2059 = vadd.f32 %v2023, %v2043
        %v2060 = vadd.f32 %v2024, %v2044
        %v2061 = vadd.f32 %v2025, %v2045
        %v2063 = vlaneseq
        %v2064 = vshrl.u32 %v2063, 7
        %v2065 = vsub.s32 0, %v2064
        %v2066 = vrot.slane %v1677, %v2065
        %v2068 = vadd.f32 %v2046, %v2066
        %v2069 = vadd.f32 %v2047, %v2066
        %v2070 = vadd.f32 %v2048, %v2066
        %v2071 = vadd.f32 %v2049, %v2066
        %v2072 = vadd.f32 %v2050, %v2066
        %v2073 = vadd.f32 %v2051, %v2066
        %v2074 = vadd.f32 %v2052, %v2066
        %v2075 = vadd.f32 %v2053, %v2066
        %v2076 = vadd.f32 %v2054, %v2066
        %v2077 = vadd.f32 %v2055, %v2066
        %v2078 = vadd.f32 %v2056, %v2066
        %v2079 = vadd.f32 %v2057, %v2066
        %v2080 = vadd.f32 %v2058, %v2066
        %v2081 = vadd.f32 %v2059, %v2066
        %v2082 = vadd.f32 %v2060, %v2066
        %v2083 = vadd.f32 %v2061, %v2066
        %v2084 = vxor.u32 %v2068, 2147483648
        %v2085 = vxor.u32 %v2069, 2147483648
        %v2086 = vxor.u32 %v2070, 2147483648
        %v2087 = vxor.u32 %v2071, 2147483648
        %v2088 = vxor.u32 %v2072, 2147483648
        %v2089 = vxor.u32 %v2073, 2147483648
        %v2090 = vxor.u32 %v2074, 2147483648
        %v2091 = vxor.u32 %v2075, 2147483648
        %v2092 = vxor.u32 %v2076, 2147483648
        %v2093 = vxor.u32 %v2077, 2147483648
        %v2094 = vxor.u32 %v2078, 2147483648
        %v2095 = vxor.u32 %v2079, 2147483648
        %v2096 = vxor.u32 %v2080, 2147483648
        %v2097 = vxor.u32 %v2081, 2147483648
        %v2098 = vxor.u32 %v2082, 2147483648
        %v2099 = vxor.u32 %v2083, 2147483648
        %v2100 = vmul.f32 %v2084, 1.442695
        %v2101 = vpow.pop %v2100
        %v2102 = vmul.f32 %v2085, 1.442695
        %v2103 = vpow.pop %v2102
        %v2104 = vmul.f32 %v2086, 1.442695
        %v2105 = vpow.pop %v2104
        %v2106 = vmul.f32 %v2087, 1.442695
        %v2107 = vpow.pop %v2106
        %v2108 = vmul.f32 %v2088, 1.442695
        %v2109 = vpow.pop %v2108
        %v2110 = vmul.f32 %v2089, 1.442695
        %v2111 = vpow.pop %v2110
        %v2112 = vmul.f32 %v2090, 1.442695
        %v2113 = vpow.pop %v2112
        %v2114 = vmul.f32 %v2091, 1.442695
        %v2115 = vpow.pop %v2114
        %v2116 = vmul.f32 %v2092, 1.442695
        %v2117 = vpow.pop %v2116
        %v2118 = vmul.f32 %v2093, 1.442695
        %v2119 = vpow.pop %v2118
        %v2120 = vmul.f32 %v2094, 1.442695
        %v2121 = vpow.pop %v2120
        %v2122 = vmul.f32 %v2095, 1.442695
        %v2123 = vpow.pop %v2122
        %v2124 = vmul.f32 %v2096, 1.442695
        %v2125 = vpow.pop %v2124
        %v2126 = vmul.f32 %v2097, 1.442695
        %v2127 = vpow.pop %v2126
        %v2128 = vmul.f32 %v2098, 1.442695
        %v2129 = vpow.pop %v2128
        %v2130 = vmul.f32 %v2099, 1.442695
        %v2131 = vpow.pop %v2130
        %v2132 = vadd.f32 %v2101, 1.0
        %v2133 = vadd.f32 %v2103, 1.0
        %v2134 = vadd.f32 %v2105, 1.0
        %v2135 = vadd.f32 %v2107, 1.0
        %v2136 = vadd.f32 %v2109, 1.0
        %v2137 = vadd.f32 %v2111, 1.0
        %v2138 = vadd.f32 %v2113, 1.0
        %v2139 = vadd.f32 %v2115, 1.0
        %v2140 = vadd.f32 %v2117, 1.0
        %v2141 = vadd.f32 %v2119, 1.0
        %v2142 = vadd.f32 %v2121, 1.0
        %v2143 = vadd.f32 %v2123, 1.0
        %v2144 = vadd.f32 %v2125, 1.0
        %v2145 = vadd.f32 %v2127, 1.0
        %v2146 = vadd.f32 %v2129, 1.0
        %v2147 = vadd.f32 %v2131, 1.0
        %v2148 = vrcp.pop %v2132
        %v2149 = vmul.f32 1.0, %v2148
        %v2150 = vrcp.pop %v2133
        %v2151 = vmul.f32 1.0, %v2150
        %v2152 = vrcp.pop %v2134
        %v2153 = vmul.f32 1.0, %v2152
        %v2154 = vrcp.pop %v2135
        %v2155 = vmul.f32 1.0, %v2154
        %v2156 = vrcp.pop %v2136
        %v2157 = vmul.f32 1.0, %v2156
        %v2158 = vrcp.pop %v2137
        %v2159 = vmul.f32 1.0, %v2158
        %v2160 = vrcp.pop %v2138
        %v2161 = vmul.f32 1.0, %v2160
        %v2162 = vrcp.pop %v2139
        %v2163 = vmul.f32 1.0, %v2162
        %v2164 = vrcp.pop %v2140
        %v2165 = vmul.f32 1.0, %v2164
        %v2166 = vrcp.pop %v2141
        %v2167 = vmul.f32 1.0, %v2166
        %v2168 = vrcp.pop %v2142
        %v2169 = vmul.f32 1.0, %v2168
        %v2170 = vrcp.pop %v2143
        %v2171 = vmul.f32 1.0, %v2170
        %v2172 = vrcp.pop %v2144
        %v2173 = vmul.f32 1.0, %v2172
        %v2174 = vrcp.pop %v2145
        %v2175 = vmul.f32 1.0, %v2174
        %v2176 = vrcp.pop %v2146
        %v2177 = vmul.f32 1.0, %v2176
        %v2178 = vrcp.pop %v2147
        %v2179 = vmul.f32 1.0, %v2178
        %v2180 = vmul.f32 %v2068, %v2149
        %v2181 = vmul.f32 %v2069, %v2151
        %v2182 = vmul.f32 %v2070, %v2153
        %v2183 = vmul.f32 %v2071, %v2155
        %v2184 = vmul.f32 %v2072, %v2157
        %v2185 = vmul.f32 %v2073, %v2159
        %v2186 = vmul.f32 %v2074, %v2161
        %v2187 = vmul.f32 %v2075, %v2163
        %v2188 = vmul.f32 %v2076, %v2165
        %v2189 = vmul.f32 %v2077, %v2167
        %v2190 = vmul.f32 %v2078, %v2169
        %v2191 = vmul.f32 %v2079, %v2171
        %v2192 = vmul.f32 %v2080, %v2173
        %v2193 = vmul.f32 %v2081, %v2175
        %v2194 = vmul.f32 %v2082, %v2177
        %v2195 = vmul.f32 %v2083, %v2179
        %v2196 = vpack.c.bf16 %v2181, %v2180
        %v2197 = vpack.c.bf16 %v2183, %v2182
        %v2198 = vpack.c.bf16 %v2185, %v2184
        %v2199 = vpack.c.bf16 %v2187, %v2186
        %v2200 = vpack.c.bf16 %v2189, %v2188
        %v2201 = vpack.c.bf16 %v2191, %v2190
        %v2202 = vpack.c.bf16 %v2193, %v2192
        %v2203 = vpack.c.bf16 %v2195, %v2194
        %2204 = vst [vmem:[#allocation3] sm:$0xff] %v2196
        %2205 = vst [vmem:[#allocation3 + $0x8] sm:$0xff] %v2197
        %2206 = vst [vmem:[#allocation3 + $0x10] sm:$0xff] %v2198
        %2207 = vst [vmem:[#allocation3 + $0x18] sm:$0xff] %v2199
        %2208 = vst [vmem:[#allocation3 + $0x20] sm:$0xff] %v2200
        %2209 = vst [vmem:[#allocation3 + $0x28] sm:$0xff] %v2201
        %2210 = vst [vmem:[#allocation3 + $0x30] sm:$0xff] %v2202
        %2211 = vst [vmem:[#allocation3 + $0x38] sm:$0xff] %v2203
        %v2212 = vadd.f32 %v2180, %v2181
        %v2213 = vadd.f32 %v2212, %v2182
        %v2214 = vadd.f32 %v2213, %v2183
        %v2215 = vadd.f32 %v2214, %v2184
        %v2216 = vadd.f32 %v2215, %v2185
        %v2217 = vadd.f32 %v2216, %v2186
        %v2218 = vadd.f32 %v2217, %v2187
        %v2219 = vadd.f32 %v2218, %v2188
        %v2220 = vadd.f32 %v2219, %v2189
        %v2221 = vadd.f32 %v2220, %v2190
        %v2222 = vadd.f32 %v2221, %v2191
        %v2223 = vadd.f32 %v2222, %v2192
        %v2224 = vadd.f32 %v2223, %v2193
        %v2225 = vadd.f32 %v2224, %v2194
        %v2226 = vadd.f32 %v2225, %v2195
        %v2227 = vrot.slane %v2226, 4
        %v2228 = vadd.f32 %v2226, %v2227
        %v2229 = vrot.slane %v2228, 2
        %v2230 = vadd.f32 %v2228, %v2229
        %v2231 = vrot.slane %v2230, 1
        %v2232 = vadd.f32 %v2230, %v2231
        %v2233 = vadd.f32 %v2232, 0.0
        %s2234 = scalar_lea.vmem [#allocation2], 256
        %v2235 = vld [vmem:[%s2234 + $0x7] sm:$0xff]
        %v2236 = vld [vmem:[%s2234 + $0xf] sm:$0xff]
        %v2237 = vld [vmem:[%s2234 + $0x27] sm:$0xff]
        %v2238 = vld [vmem:[%s2234 + $0x2f] sm:$0xff]
        %v2239 = vld [vmem:[%s2234 + $0x47] sm:$0xff]
        %v2240 = vld [vmem:[%s2234 + $0x4f] sm:$0xff]
        %v2241 = vld [vmem:[%s2234 + $0x67] sm:$0xff]
        %v2242 = vld [vmem:[%s2234 + $0x6f] sm:$0xff]
        %v2243 = vld [vmem:[%s2234 + $0x87] sm:$0xff]
        %v2244 = vld [vmem:[%s2234 + $0x8f] sm:$0xff]
        %v2245 = vld [vmem:[%s2234 + $0xa7] sm:$0xff]
        %v2246 = vld [vmem:[%s2234 + $0xaf] sm:$0xff]
        %v2247 = vld [vmem:[%s2234 + $0xc7] sm:$0xff]
        %v2248 = vld [vmem:[%s2234 + $0xcf] sm:$0xff]
        %v2249 = vld [vmem:[%s2234 + $0xe7] sm:$0xff]
        %v2250 = vld [vmem:[%s2234 + $0xef] sm:$0xff]
        %v2251 = vld [vmem:[%s2234 + $0x107] sm:$0xff]
        %v2252 = vld [vmem:[%s2234 + $0x10f] sm:$0xff]
        %v2253 = vld [vmem:[%s2234 + $0x127] sm:$0xff]
        %v2254 = vld [vmem:[%s2234 + $0x12f] sm:$0xff]
        %v2255 = vmul.f32 %v2235, %v1701
        %v2256 = vmul.f32 %v2236, %v1701
        %v2257 = vmul.f32 %v2237, %v1701
        %v2258 = vmul.f32 %v2238, %v1701
        %v2259 = vmul.f32 %v2239, %v1701
        %v2260 = vmul.f32 %v2240, %v1701
        %v2261 = vmul.f32 %v2241, %v1701
        %v2262 = vmul.f32 %v2242, %v1701
        %v2263 = vmul.f32 %v2243, %v1701
        %v2264 = vmul.f32 %v2244, %v1701
        %v2265 = vmul.f32 %v2245, %v1701
        %v2266 = vmul.f32 %v2246, %v1701
        %v2267 = vmul.f32 %v2247, %v1701
        %v2268 = vmul.f32 %v2248, %v1701
        %v2269 = vmul.f32 %v2249, %v1701
        %v2270 = vmul.f32 %v2250, %v1701
        %v2271 = vadd.f32 %v2255, 0.0
        %v2272 = vadd.f32 %v2256, 0.0
        %v2273 = vadd.f32 %v2257, 0.0
        %v2274 = vadd.f32 %v2258, 0.0
        %v2275 = vadd.f32 %v2259, 0.0
        %v2276 = vadd.f32 %v2260, 0.0
        %v2277 = vadd.f32 %v2261, 0.0
        %v2278 = vadd.f32 %v2262, 0.0
        %v2279 = vadd.f32 %v2263, 0.0
        %v2280 = vadd.f32 %v2264, 0.0
        %v2281 = vadd.f32 %v2265, 0.0
        %v2282 = vadd.f32 %v2266, 0.0
        %v2283 = vadd.f32 %v2267, 0.0
        %v2284 = vadd.f32 %v2268, 0.0
        %v2285 = vadd.f32 %v2269, 0.0
        %v2286 = vadd.f32 %v2270, 0.0
        %v2287 = vmul.f32 %v2237, %v1737
        %v2288 = vmul.f32 %v2238, %v1737
        %v2289 = vmul.f32 %v2239, %v1737
        %v2290 = vmul.f32 %v2240, %v1737
        %v2291 = vmul.f32 %v2241, %v1737
        %v2292 = vmul.f32 %v2242, %v1737
        %v2293 = vmul.f32 %v2243, %v1737
        %v2294 = vmul.f32 %v2244, %v1737
        %v2295 = vmul.f32 %v2245, %v1737
        %v2296 = vmul.f32 %v2246, %v1737
        %v2297 = vmul.f32 %v2247, %v1737
        %v2298 = vmul.f32 %v2248, %v1737
        %v2299 = vmul.f32 %v2249, %v1737
        %v2300 = vmul.f32 %v2250, %v1737
        %v2301 = vmul.f32 %v2251, %v1737
        %v2302 = vmul.f32 %v2252, %v1737
        %v2303 = vadd.f32 %v2271, %v2287
        %v2304 = vadd.f32 %v2272, %v2288
        %v2305 = vadd.f32 %v2273, %v2289
        %v2306 = vadd.f32 %v2274, %v2290
        %v2307 = vadd.f32 %v2275, %v2291
        %v2308 = vadd.f32 %v2276, %v2292
        %v2309 = vadd.f32 %v2277, %v2293
        %v2310 = vadd.f32 %v2278, %v2294
        %v2311 = vadd.f32 %v2279, %v2295
        %v2312 = vadd.f32 %v2280, %v2296
        %v2313 = vadd.f32 %v2281, %v2297
        %v2314 = vadd.f32 %v2282, %v2298
        %v2315 = vadd.f32 %v2283, %v2299
        %v2316 = vadd.f32 %v2284, %v2300
        %v2317 = vadd.f32 %v2285, %v2301
        %v2318 = vadd.f32 %v2286, %v2302
        %v2319 = vmul.f32 %v2239, %v1773
        %v2320 = vmul.f32 %v2240, %v1773
        %v2321 = vmul.f32 %v2241, %v1773
        %v2322 = vmul.f32 %v2242, %v1773
        %v2323 = vmul.f32 %v2243, %v1773
        %v2324 = vmul.f32 %v2244, %v1773
        %v2325 = vmul.f32 %v2245, %v1773
        %v2326 = vmul.f32 %v2246, %v1773
        %v2327 = vmul.f32 %v2247, %v1773
        %v2328 = vmul.f32 %v2248, %v1773
        %v2329 = vmul.f32 %v2249, %v1773
        %v2330 = vmul.f32 %v2250, %v1773
        %v2331 = vmul.f32 %v2251, %v1773
        %v2332 = vmul.f32 %v2252, %v1773
        %v2333 = vmul.f32 %v2253, %v1773
        %v2334 = vmul.f32 %v2254, %v1773
        %v2335 = vadd.f32 %v2303, %v2319
        %v2336 = vadd.f32 %v2304, %v2320
        %v2337 = vadd.f32 %v2305, %v2321
        %v2338 = vadd.f32 %v2306, %v2322
        %v2339 = vadd.f32 %v2307, %v2323
        %v2340 = vadd.f32 %v2308, %v2324
        %v2341 = vadd.f32 %v2309, %v2325
        %v2342 = vadd.f32 %v2310, %v2326
        %v2343 = vadd.f32 %v2311, %v2327
        %v2344 = vadd.f32 %v2312, %v2328
        %v2345 = vadd.f32 %v2313, %v2329
        %v2346 = vadd.f32 %v2314, %v2330
        %v2347 = vadd.f32 %v2315, %v2331
        %v2348 = vadd.f32 %v2316, %v2332
        %v2349 = vadd.f32 %v2317, %v2333
        %v2350 = vadd.f32 %v2318, %v2334
        %v2351 = vld [vmem:[%s2234 + $0x8] sm:$0xff]
        %v2352 = vld [vmem:[%s2234 + $0x10] sm:$0xff]
        %v2353 = vld [vmem:[%s2234 + $0x28] sm:$0xff]
        %v2354 = vld [vmem:[%s2234 + $0x30] sm:$0xff]
        %v2355 = vld [vmem:[%s2234 + $0x48] sm:$0xff]
        %v2356 = vld [vmem:[%s2234 + $0x50] sm:$0xff]
        %v2357 = vld [vmem:[%s2234 + $0x68] sm:$0xff]
        %v2358 = vld [vmem:[%s2234 + $0x70] sm:$0xff]
        %v2359 = vld [vmem:[%s2234 + $0x88] sm:$0xff]
        %v2360 = vld [vmem:[%s2234 + $0x90] sm:$0xff]
        %v2361 = vld [vmem:[%s2234 + $0xa8] sm:$0xff]
        %v2362 = vld [vmem:[%s2234 + $0xb0] sm:$0xff]
        %v2363 = vld [vmem:[%s2234 + $0xc8] sm:$0xff]
        %v2364 = vld [vmem:[%s2234 + $0xd0] sm:$0xff]
        %v2365 = vld [vmem:[%s2234 + $0xe8] sm:$0xff]
        %v2366 = vld [vmem:[%s2234 + $0xf0] sm:$0xff]
        %v2367 = vld [vmem:[%s2234 + $0x108] sm:$0xff]
        %v2368 = vld [vmem:[%s2234 + $0x110] sm:$0xff]
        %v2369 = vld [vmem:[%s2234 + $0x128] sm:$0xff]
        %v2370 = vld [vmem:[%s2234 + $0x130] sm:$0xff]
        %v2371 = vmul.f32 %v2351, %v1829
        %v2372 = vmul.f32 %v2352, %v1829
        %v2373 = vmul.f32 %v2353, %v1829
        %v2374 = vmul.f32 %v2354, %v1829
        %v2375 = vmul.f32 %v2355, %v1829
        %v2376 = vmul.f32 %v2356, %v1829
        %v2377 = vmul.f32 %v2357, %v1829
        %v2378 = vmul.f32 %v2358, %v1829
        %v2379 = vmul.f32 %v2359, %v1829
        %v2380 = vmul.f32 %v2360, %v1829
        %v2381 = vmul.f32 %v2361, %v1829
        %v2382 = vmul.f32 %v2362, %v1829
        %v2383 = vmul.f32 %v2363, %v1829
        %v2384 = vmul.f32 %v2364, %v1829
        %v2385 = vmul.f32 %v2365, %v1829
        %v2386 = vmul.f32 %v2366, %v1829
        %v2387 = vadd.f32 %v2335, %v2371
        %v2388 = vadd.f32 %v2336, %v2372
        %v2389 = vadd.f32 %v2337, %v2373
        %v2390 = vadd.f32 %v2338, %v2374
        %v2391 = vadd.f32 %v2339, %v2375
        %v2392 = vadd.f32 %v2340, %v2376
        %v2393 = vadd.f32 %v2341, %v2377
        %v2394 = vadd.f32 %v2342, %v2378
        %v2395 = vadd.f32 %v2343, %v2379
        %v2396 = vadd.f32 %v2344, %v2380
        %v2397 = vadd.f32 %v2345, %v2381
        %v2398 = vadd.f32 %v2346, %v2382
        %v2399 = vadd.f32 %v2347, %v2383
        %v2400 = vadd.f32 %v2348, %v2384
        %v2401 = vadd.f32 %v2349, %v2385
        %v2402 = vadd.f32 %v2350, %v2386
        %v2403 = vmul.f32 %v2353, %v1865
        %v2404 = vmul.f32 %v2354, %v1865
        %v2405 = vmul.f32 %v2355, %v1865
        %v2406 = vmul.f32 %v2356, %v1865
        %v2407 = vmul.f32 %v2357, %v1865
        %v2408 = vmul.f32 %v2358, %v1865
        %v2409 = vmul.f32 %v2359, %v1865
        %v2410 = vmul.f32 %v2360, %v1865
        %v2411 = vmul.f32 %v2361, %v1865
        %v2412 = vmul.f32 %v2362, %v1865
        %v2413 = vmul.f32 %v2363, %v1865
        %v2414 = vmul.f32 %v2364, %v1865
        %v2415 = vmul.f32 %v2365, %v1865
        %v2416 = vmul.f32 %v2366, %v1865
        %v2417 = vmul.f32 %v2367, %v1865
        %v2418 = vmul.f32 %v2368, %v1865
        %v2419 = vadd.f32 %v2387, %v2403
        %v2420 = vadd.f32 %v2388, %v2404
        %v2421 = vadd.f32 %v2389, %v2405
        %v2422 = vadd.f32 %v2390, %v2406
        %v2423 = vadd.f32 %v2391, %v2407
        %v2424 = vadd.f32 %v2392, %v2408
        %v2425 = vadd.f32 %v2393, %v2409
        %v2426 = vadd.f32 %v2394, %v2410
        %v2427 = vadd.f32 %v2395, %v2411
        %v2428 = vadd.f32 %v2396, %v2412
        %v2429 = vadd.f32 %v2397, %v2413
        %v2430 = vadd.f32 %v2398, %v2414
        %v2431 = vadd.f32 %v2399, %v2415
        %v2432 = vadd.f32 %v2400, %v2416
        %v2433 = vadd.f32 %v2401, %v2417
        %v2434 = vadd.f32 %v2402, %v2418
        %v2435 = vmul.f32 %v2355, %v1901
        %v2436 = vmul.f32 %v2356, %v1901
        %v2437 = vmul.f32 %v2357, %v1901
        %v2438 = vmul.f32 %v2358, %v1901
        %v2439 = vmul.f32 %v2359, %v1901
        %v2440 = vmul.f32 %v2360, %v1901
        %v2441 = vmul.f32 %v2361, %v1901
        %v2442 = vmul.f32 %v2362, %v1901
        %v2443 = vmul.f32 %v2363, %v1901
        %v2444 = vmul.f32 %v2364, %v1901
        %v2445 = vmul.f32 %v2365, %v1901
        %v2446 = vmul.f32 %v2366, %v1901
        %v2447 = vmul.f32 %v2367, %v1901
        %v2448 = vmul.f32 %v2368, %v1901
        %v2449 = vmul.f32 %v2369, %v1901
        %v2450 = vmul.f32 %v2370, %v1901
        %v2451 = vadd.f32 %v2419, %v2435
        %v2452 = vadd.f32 %v2420, %v2436
        %v2453 = vadd.f32 %v2421, %v2437
        %v2454 = vadd.f32 %v2422, %v2438
        %v2455 = vadd.f32 %v2423, %v2439
        %v2456 = vadd.f32 %v2424, %v2440
        %v2457 = vadd.f32 %v2425, %v2441
        %v2458 = vadd.f32 %v2426, %v2442
        %v2459 = vadd.f32 %v2427, %v2443
        %v2460 = vadd.f32 %v2428, %v2444
        %v2461 = vadd.f32 %v2429, %v2445
        %v2462 = vadd.f32 %v2430, %v2446
        %v2463 = vadd.f32 %v2431, %v2447
        %v2464 = vadd.f32 %v2432, %v2448
        %v2465 = vadd.f32 %v2433, %v2449
        %v2466 = vadd.f32 %v2434, %v2450
        %v2467 = vld [vmem:[%s2234 + $0x9] sm:$0xff]
        %v2468 = vld [vmem:[%s2234 + $0x11] sm:$0xff]
        %v2469 = vld [vmem:[%s2234 + $0x29] sm:$0xff]
        %v2470 = vld [vmem:[%s2234 + $0x31] sm:$0xff]
        %v2471 = vld [vmem:[%s2234 + $0x49] sm:$0xff]
        %v2472 = vld [vmem:[%s2234 + $0x51] sm:$0xff]
        %v2473 = vld [vmem:[%s2234 + $0x69] sm:$0xff]
        %v2474 = vld [vmem:[%s2234 + $0x71] sm:$0xff]
        %v2475 = vld [vmem:[%s2234 + $0x89] sm:$0xff]
        %v2476 = vld [vmem:[%s2234 + $0x91] sm:$0xff]
        %v2477 = vld [vmem:[%s2234 + $0xa9] sm:$0xff]
        %v2478 = vld [vmem:[%s2234 + $0xb1] sm:$0xff]
        %v2479 = vld [vmem:[%s2234 + $0xc9] sm:$0xff]
        %v2480 = vld [vmem:[%s2234 + $0xd1] sm:$0xff]
        %v2481 = vld [vmem:[%s2234 + $0xe9] sm:$0xff]
        %v2482 = vld [vmem:[%s2234 + $0xf1] sm:$0xff]
        %v2483 = vld [vmem:[%s2234 + $0x109] sm:$0xff]
        %v2484 = vld [vmem:[%s2234 + $0x111] sm:$0xff]
        %v2485 = vld [vmem:[%s2234 + $0x129] sm:$0xff]
        %v2486 = vld [vmem:[%s2234 + $0x131] sm:$0xff]
        %v2487 = vmul.f32 %v2467, %v1957
        %v2488 = vmul.f32 %v2468, %v1957
        %v2489 = vmul.f32 %v2469, %v1957
        %v2490 = vmul.f32 %v2470, %v1957
        %v2491 = vmul.f32 %v2471, %v1957
        %v2492 = vmul.f32 %v2472, %v1957
        %v2493 = vmul.f32 %v2473, %v1957
        %v2494 = vmul.f32 %v2474, %v1957
        %v2495 = vmul.f32 %v2475, %v1957
        %v2496 = vmul.f32 %v2476, %v1957
        %v2497 = vmul.f32 %v2477, %v1957
        %v2498 = vmul.f32 %v2478, %v1957
        %v2499 = vmul.f32 %v2479, %v1957
        %v2500 = vmul.f32 %v2480, %v1957
        %v2501 = vmul.f32 %v2481, %v1957
        %v2502 = vmul.f32 %v2482, %v1957
        %v2503 = vadd.f32 %v2451, %v2487
        %v2504 = vadd.f32 %v2452, %v2488
        %v2505 = vadd.f32 %v2453, %v2489
        %v2506 = vadd.f32 %v2454, %v2490
        %v2507 = vadd.f32 %v2455, %v2491
        %v2508 = vadd.f32 %v2456, %v2492
        %v2509 = vadd.f32 %v2457, %v2493
        %v2510 = vadd.f32 %v2458, %v2494
        %v2511 = vadd.f32 %v2459, %v2495
        %v2512 = vadd.f32 %v2460, %v2496
        %v2513 = vadd.f32 %v2461, %v2497
        %v2514 = vadd.f32 %v2462, %v2498
        %v2515 = vadd.f32 %v2463, %v2499
        %v2516 = vadd.f32 %v2464, %v2500
        %v2517 = vadd.f32 %v2465, %v2501
        %v2518 = vadd.f32 %v2466, %v2502
        %v2519 = vmul.f32 %v2469, %v1993
        %v2520 = vmul.f32 %v2470, %v1993
        %v2521 = vmul.f32 %v2471, %v1993
        %v2522 = vmul.f32 %v2472, %v1993
        %v2523 = vmul.f32 %v2473, %v1993
        %v2524 = vmul.f32 %v2474, %v1993
        %v2525 = vmul.f32 %v2475, %v1993
        %v2526 = vmul.f32 %v2476, %v1993
        %v2527 = vmul.f32 %v2477, %v1993
        %v2528 = vmul.f32 %v2478, %v1993
        %v2529 = vmul.f32 %v2479, %v1993
        %v2530 = vmul.f32 %v2480, %v1993
        %v2531 = vmul.f32 %v2481, %v1993
        %v2532 = vmul.f32 %v2482, %v1993
        %v2533 = vmul.f32 %v2483, %v1993
        %v2534 = vmul.f32 %v2484, %v1993
        %v2535 = vadd.f32 %v2503, %v2519
        %v2536 = vadd.f32 %v2504, %v2520
        %v2537 = vadd.f32 %v2505, %v2521
        %v2538 = vadd.f32 %v2506, %v2522
        %v2539 = vadd.f32 %v2507, %v2523
        %v2540 = vadd.f32 %v2508, %v2524
        %v2541 = vadd.f32 %v2509, %v2525
        %v2542 = vadd.f32 %v2510, %v2526
        %v2543 = vadd.f32 %v2511, %v2527
        %v2544 = vadd.f32 %v2512, %v2528
        %v2545 = vadd.f32 %v2513, %v2529
        %v2546 = vadd.f32 %v2514, %v2530
        %v2547 = vadd.f32 %v2515, %v2531
        %v2548 = vadd.f32 %v2516, %v2532
        %v2549 = vadd.f32 %v2517, %v2533
        %v2550 = vadd.f32 %v2518, %v2534
        %v2551 = vmul.f32 %v2471, %v2029
        %v2552 = vmul.f32 %v2472, %v2029
        %v2553 = vmul.f32 %v2473, %v2029
        %v2554 = vmul.f32 %v2474, %v2029
        %v2555 = vmul.f32 %v2475, %v2029
        %v2556 = vmul.f32 %v2476, %v2029
        %v2557 = vmul.f32 %v2477, %v2029
        %v2558 = vmul.f32 %v2478, %v2029
        %v2559 = vmul.f32 %v2479, %v2029
        %v2560 = vmul.f32 %v2480, %v2029
        %v2561 = vmul.f32 %v2481, %v2029
        %v2562 = vmul.f32 %v2482, %v2029
        %v2563 = vmul.f32 %v2483, %v2029
        %v2564 = vmul.f32 %v2484, %v2029
        %v2565 = vmul.f32 %v2485, %v2029
        %v2566 = vmul.f32 %v2486, %v2029
        %v2567 = vadd.f32 %v2535, %v2551
        %v2568 = vadd.f32 %v2536, %v2552
        %v2569 = vadd.f32 %v2537, %v2553
        %v2570 = vadd.f32 %v2538, %v2554
        %v2571 = vadd.f32 %v2539, %v2555
        %v2572 = vadd.f32 %v2540, %v2556
        %v2573 = vadd.f32 %v2541, %v2557
        %v2574 = vadd.f32 %v2542, %v2558
        %v2575 = vadd.f32 %v2543, %v2559
        %v2576 = vadd.f32 %v2544, %v2560
        %v2577 = vadd.f32 %v2545, %v2561
        %v2578 = vadd.f32 %v2546, %v2562
        %v2579 = vadd.f32 %v2547, %v2563
        %v2580 = vadd.f32 %v2548, %v2564
        %v2581 = vadd.f32 %v2549, %v2565
        %v2582 = vadd.f32 %v2550, %v2566
        %v2583 = vadd.f32 %v2567, %v2066
        %v2584 = vadd.f32 %v2568, %v2066
        %v2585 = vadd.f32 %v2569, %v2066
        %v2586 = vadd.f32 %v2570, %v2066
        %v2587 = vadd.f32 %v2571, %v2066
        %v2588 = vadd.f32 %v2572, %v2066
        %v2589 = vadd.f32 %v2573, %v2066
        %v2590 = vadd.f32 %v2574, %v2066
        %v2591 = vadd.f32 %v2575, %v2066
        %v2592 = vadd.f32 %v2576, %v2066
        %v2593 = vadd.f32 %v2577, %v2066
        %v2594 = vadd.f32 %v2578, %v2066
        %v2595 = vadd.f32 %v2579, %v2066
        %v2596 = vadd.f32 %v2580, %v2066
        %v2597 = vadd.f32 %v2581, %v2066
        %v2598 = vadd.f32 %v2582, %v2066
        %v2599 = vxor.u32 %v2583, 2147483648
        %v2600 = vxor.u32 %v2584, 2147483648
        %v2601 = vxor.u32 %v2585, 2147483648
        %v2602 = vxor.u32 %v2586, 2147483648
        %v2603 = vxor.u32 %v2587, 2147483648
        %v2604 = vxor.u32 %v2588, 2147483648
        %v2605 = vxor.u32 %v2589, 2147483648
        %v2606 = vxor.u32 %v2590, 2147483648
        %v2607 = vxor.u32 %v2591, 2147483648
        %v2608 = vxor.u32 %v2592, 2147483648
        %v2609 = vxor.u32 %v2593, 2147483648
        %v2610 = vxor.u32 %v2594, 2147483648
        %v2611 = vxor.u32 %v2595, 2147483648
        %v2612 = vxor.u32 %v2596, 2147483648
        %v2613 = vxor.u32 %v2597, 2147483648
        %v2614 = vxor.u32 %v2598, 2147483648
        %v2615 = vmul.f32 %v2599, 1.442695
        %v2616 = vpow.pop %v2615
        %v2617 = vmul.f32 %v2600, 1.442695
        %v2618 = vpow.pop %v2617
        %v2619 = vmul.f32 %v2601, 1.442695
        %v2620 = vpow.pop %v2619
        %v2621 = vmul.f32 %v2602, 1.442695
        %v2622 = vpow.pop %v2621
        %v2623 = vmul.f32 %v2603, 1.442695
        %v2624 = vpow.pop %v2623
        %v2625 = vmul.f32 %v2604, 1.442695
        %v2626 = vpow.pop %v2625
        %v2627 = vmul.f32 %v2605, 1.442695
        %v2628 = vpow.pop %v2627
        %v2629 = vmul.f32 %v2606, 1.442695
        %v2630 = vpow.pop %v2629
        %v2631 = vmul.f32 %v2607, 1.442695
        %v2632 = vpow.pop %v2631
        %v2633 = vmul.f32 %v2608, 1.442695
        %v2634 = vpow.pop %v2633
        %v2635 = vmul.f32 %v2609, 1.442695
        %v2636 = vpow.pop %v2635
        %v2637 = vmul.f32 %v2610, 1.442695
        %v2638 = vpow.pop %v2637
        %v2639 = vmul.f32 %v2611, 1.442695
        %v2640 = vpow.pop %v2639
        %v2641 = vmul.f32 %v2612, 1.442695
        %v2642 = vpow.pop %v2641
        %v2643 = vmul.f32 %v2613, 1.442695
        %v2644 = vpow.pop %v2643
        %v2645 = vmul.f32 %v2614, 1.442695
        %v2646 = vpow.pop %v2645
        %v2647 = vadd.f32 %v2616, 1.0
        %v2648 = vadd.f32 %v2618, 1.0
        %v2649 = vadd.f32 %v2620, 1.0
        %v2650 = vadd.f32 %v2622, 1.0
        %v2651 = vadd.f32 %v2624, 1.0
        %v2652 = vadd.f32 %v2626, 1.0
        %v2653 = vadd.f32 %v2628, 1.0
        %v2654 = vadd.f32 %v2630, 1.0
        %v2655 = vadd.f32 %v2632, 1.0
        %v2656 = vadd.f32 %v2634, 1.0
        %v2657 = vadd.f32 %v2636, 1.0
        %v2658 = vadd.f32 %v2638, 1.0
        %v2659 = vadd.f32 %v2640, 1.0
        %v2660 = vadd.f32 %v2642, 1.0
        %v2661 = vadd.f32 %v2644, 1.0
        %v2662 = vadd.f32 %v2646, 1.0
        %v2663 = vrcp.pop %v2647
        %v2664 = vmul.f32 1.0, %v2663
        %v2665 = vrcp.pop %v2648
        %v2666 = vmul.f32 1.0, %v2665
        %v2667 = vrcp.pop %v2649
        %v2668 = vmul.f32 1.0, %v2667
        %v2669 = vrcp.pop %v2650
        %v2670 = vmul.f32 1.0, %v2669
        %v2671 = vrcp.pop %v2651
        %v2672 = vmul.f32 1.0, %v2671
        %v2673 = vrcp.pop %v2652
        %v2674 = vmul.f32 1.0, %v2673
        %v2675 = vrcp.pop %v2653
        %v2676 = vmul.f32 1.0, %v2675
        %v2677 = vrcp.pop %v2654
        %v2678 = vmul.f32 1.0, %v2677
        %v2679 = vrcp.pop %v2655
        %v2680 = vmul.f32 1.0, %v2679
        %v2681 = vrcp.pop %v2656
        %v2682 = vmul.f32 1.0, %v2681
        %v2683 = vrcp.pop %v2657
        %v2684 = vmul.f32 1.0, %v2683
        %v2685 = vrcp.pop %v2658
        %v2686 = vmul.f32 1.0, %v2685
        %v2687 = vrcp.pop %v2659
        %v2688 = vmul.f32 1.0, %v2687
        %v2689 = vrcp.pop %v2660
        %v2690 = vmul.f32 1.0, %v2689
        %v2691 = vrcp.pop %v2661
        %v2692 = vmul.f32 1.0, %v2691
        %v2693 = vrcp.pop %v2662
        %v2694 = vmul.f32 1.0, %v2693
        %v2695 = vmul.f32 %v2583, %v2664
        %v2696 = vmul.f32 %v2584, %v2666
        %v2697 = vmul.f32 %v2585, %v2668
        %v2698 = vmul.f32 %v2586, %v2670
        %v2699 = vmul.f32 %v2587, %v2672
        %v2700 = vmul.f32 %v2588, %v2674
        %v2701 = vmul.f32 %v2589, %v2676
        %v2702 = vmul.f32 %v2590, %v2678
        %v2703 = vmul.f32 %v2591, %v2680
        %v2704 = vmul.f32 %v2592, %v2682
        %v2705 = vmul.f32 %v2593, %v2684
        %v2706 = vmul.f32 %v2594, %v2686
        %v2707 = vmul.f32 %v2595, %v2688
        %v2708 = vmul.f32 %v2596, %v2690
        %v2709 = vmul.f32 %v2597, %v2692
        %v2710 = vmul.f32 %v2598, %v2694
        %v2711 = vpack.c.bf16 %v2696, %v2695
        %v2712 = vpack.c.bf16 %v2698, %v2697
        %v2713 = vpack.c.bf16 %v2700, %v2699
        %v2714 = vpack.c.bf16 %v2702, %v2701
        %v2715 = vpack.c.bf16 %v2704, %v2703
        %v2716 = vpack.c.bf16 %v2706, %v2705
        %v2717 = vpack.c.bf16 %v2708, %v2707
        %v2718 = vpack.c.bf16 %v2710, %v2709
        %s2719 = scalar_lea.vmem [#allocation3], 64
        %2720 = vst [vmem:[%s2719] sm:$0xff] %v2711
        %2721 = vst [vmem:[%s2719 + $0x8] sm:$0xff] %v2712
        %2722 = vst [vmem:[%s2719 + $0x10] sm:$0xff] %v2713
        %2723 = vst [vmem:[%s2719 + $0x18] sm:$0xff] %v2714
        %2724 = vst [vmem:[%s2719 + $0x20] sm:$0xff] %v2715
        %2725 = vst [vmem:[%s2719 + $0x28] sm:$0xff] %v2716
        %2726 = vst [vmem:[%s2719 + $0x30] sm:$0xff] %v2717
        %2727 = vst [vmem:[%s2719 + $0x38] sm:$0xff] %v2718
        %v2728 = vadd.f32 %v2695, %v2696
        %v2729 = vadd.f32 %v2728, %v2697
        %v2730 = vadd.f32 %v2729, %v2698
        %v2731 = vadd.f32 %v2730, %v2699
        %v2732 = vadd.f32 %v2731, %v2700
        %v2733 = vadd.f32 %v2732, %v2701
        %v2734 = vadd.f32 %v2733, %v2702
        %v2735 = vadd.f32 %v2734, %v2703
        %v2736 = vadd.f32 %v2735, %v2704
        %v2737 = vadd.f32 %v2736, %v2705
        %v2738 = vadd.f32 %v2737, %v2706
        %v2739 = vadd.f32 %v2738, %v2707
        %v2740 = vadd.f32 %v2739, %v2708
        %v2741 = vadd.f32 %v2740, %v2709
        %v2742 = vadd.f32 %v2741, %v2710
        %v2743 = vrot.slane %v2742, 4
        %v2744 = vadd.f32 %v2742, %v2743
        %v2745 = vrot.slane %v2744, 2
        %v2746 = vadd.f32 %v2744, %v2745
        %v2747 = vrot.slane %v2746, 1
        %v2748 = vadd.f32 %v2746, %v2747
        %v2749 = vadd.f32 %v2233, %v2748
        %v2750 = vmul.f32 %v2749, 0.00390625
        %v2751 = vpack.c.bf16 %v2750, %v2750
        %v2752 = vld [vmem:[%s7] sm:$0xf]
        %v2753 = vld [vmem:[%s7 + $0x4] sm:$0xf]
        %v2754 = vld [vmem:[%s7 + $0x8] sm:$0xf]
        %v2755 = vld [vmem:[%s7 + $0xc] sm:$0xf]
        %v2756 = vld [vmem:[%s7 + $0x10] sm:$0xf]
        %v2757 = vld [vmem:[%s7 + $0x14] sm:$0xf]
        %v2758 = vld [vmem:[%s7 + $0x18] sm:$0xf]
        %v2759 = vld [vmem:[%s7 + $0x1c] sm:$0xf]
        %v2760 = vld [vmem:[%s7 + $0x20] sm:$0xf]
        %v2761 = vld [vmem:[%s7 + $0x24] sm:$0xf]
        %v2762 = vld [vmem:[%s7 + $0x28] sm:$0xf]
        %v2763 = vld [vmem:[%s7 + $0x2c] sm:$0xf]
        %v2764 = vld [vmem:[%s7 + $0x30] sm:$0xf]
        %v2765 = vld [vmem:[%s7 + $0x34] sm:$0xf]
        %v2766 = vld [vmem:[%s7 + $0x38] sm:$0xf]
        %v2767 = vld [vmem:[%s7 + $0x3c] sm:$0xf]
        %v2768 = vld [vmem:[%s8] sm:$0x1]
        %v2785 = vunpack.c.l.b16 %v2752
        %v2786 = vunpack.c.l.b16 %v2753
        %v2787 = vunpack.c.l.b16 %v2754
        %v2788 = vunpack.c.l.b16 %v2755
        %v2789 = vunpack.c.l.b16 %v2756
        %v2790 = vunpack.c.l.b16 %v2757
        %v2791 = vunpack.c.l.b16 %v2758
        %v2792 = vunpack.c.l.b16 %v2759
        %v2793 = vunpack.c.l.b16 %v2760
        %v2794 = vunpack.c.l.b16 %v2761
        %v2795 = vunpack.c.l.b16 %v2762
        %v2796 = vunpack.c.l.b16 %v2763
        %v2797 = vunpack.c.l.b16 %v2764
        %v2798 = vunpack.c.l.b16 %v2765
        %v2799 = vunpack.c.l.b16 %v2766
        %v2800 = vunpack.c.l.b16 %v2767
        %v2801 = vpack.c.b16 %v2786, %v2785
        %v2802 = vpack.c.b16 %v2788, %v2787
        %v2803 = vpack.c.b16 %v2790, %v2789
        %v2804 = vpack.c.b16 %v2792, %v2791
        %v2805 = vpack.c.b16 %v2794, %v2793
        %v2806 = vpack.c.b16 %v2796, %v2795
        %v2807 = vpack.c.b16 %v2798, %v2797
        %v2808 = vpack.c.b16 %v2800, %v2799
        %2817 = vmatprep.subr.bf16.mxu0 0
        %2818 = vmatpush1.bf16.msra.mxu0 %v2801
        %2819 = vmatprep.subr.bf16.mxu0 0
        %2820 = vmatpush1.bf16.msra.mxu0 %v2802
        %2821 = vmatprep.subr.bf16.mxu0 0
        %2822 = vmatpush1.bf16.msra.mxu0 %v2803
        %2823 = vmatprep.subr.bf16.mxu0 0
        %2824 = vmatpush1.bf16.msra.mxu0 %v2804
        %2825 = vmatprep.subr.bf16.mxu0 0
        %2826 = vmatpush1.bf16.msra.mxu0 %v2805
        %2827 = vmatprep.subr.bf16.mxu0 0
        %2828 = vmatpush1.bf16.msra.mxu0 %v2806
        %2829 = vmatprep.subr.bf16.mxu0 0
        %2830 = vmatpush1.bf16.msra.mxu0 %v2807
        %2831 = vmatprep.subr.bf16.mxu0 0
        %2832 = vmatpush1.bf16.msra.mxu0 %v2808
        %2833 = vmatprep.subr.bf16.mxu0 0
        %2834 = vmatpush1.bf16.msra.mxu0 0
        %2835 = vmatprep.subr.bf16.mxu0 0
        %2836 = vmatpush1.bf16.msra.mxu0 0
        %2837 = vmatprep.subr.bf16.mxu0 0
        %2838 = vmatpush1.bf16.msra.mxu0 0
        %2839 = vmatprep.subr.bf16.mxu0 0
        %2840 = vmatpush1.bf16.msra.mxu0 0
        %2841 = vmatprep.subr.bf16.mxu0 0
        %2842 = vmatpush1.bf16.msra.mxu0 0
        %2843 = vmatprep.subr.bf16.mxu0 0
        %2844 = vmatpush1.bf16.msra.mxu0 0
        %2845 = vmatprep.subr.bf16.mxu0 0
        %2846 = vmatpush1.bf16.msra.mxu0 0
        %2847 = vmatprep.subr.bf16.mxu0 0
        %2848 = vmatpush1.bf16.msra.mxu0 0
        %2849 = vmatprep.mubr.bf16.mxu0 0
        %2850 = vmatmul.mubr.bf16.gmra.mrb[0].mxu0 %v2751
        %v2851 = vpop.f32.mrb[0].mxu0
        %v2852 = vadd.f32 %v2768, %v2851
        %v2853 = vpop.f32.mrb[0].mxu0
        %v2854 = vpop.f32.mrb[0].mxu0
        %v2855 = vpop.f32.mrb[0].mxu0
        %2856 = vdwg.mxu0
        %v2857 = vxor.u32 %v2852, 2147483648
        %v2858 = vmul.f32 %v2857, 1.442695
        %v2859 = vpow.pop %v2858
        %v2860 = vadd.f32 %v2859, 1.0
        %v2861 = vrcp.pop %v2860
        %v2862 = vmul.f32 1.0, %v2861
        %v2863 = vmul.f32 %v2852, %v2862
        %v2864 = vpack.c.bf16 %v2863, %v2863
        %v2865 = vld [vmem:[%s9] sm:$0xf]
        %v2866 = vld [vmem:[%s10] sm:$0x1]
        %vm2867 = vcmask 64512
        %v2869 = vsel %vm2867, %v2864, 0
        %vm2871 = vcmask 1043456
        %v2873 = vsel %vm2871, %v2865, 0
        %2875 = vmatprep.subr.bf16.mxu0 0
        %2876 = vmatpush1.bf16.msra.mxu0 %v2873
        %2877 = vmatprep.subr.bf16.mxu0 0
        %2878 = vmatpush1.bf16.msra.mxu0 0
        %2879 = vmatprep.subr.bf16.mxu0 0
        %2880 = vmatpush1.bf16.msra.mxu0 0
        %2881 = vmatprep.subr.bf16.mxu0 0
        %2882 = vmatpush1.bf16.msra.mxu0 0
        %2883 = vmatprep.subr.bf16.mxu0 0
        %2884 = vmatpush1.bf16.msra.mxu0 0
        %2885 = vmatprep.subr.bf16.mxu0 0
        %2886 = vmatpush1.bf16.msra.mxu0 0
        %2887 = vmatprep.subr.bf16.mxu0 0
        %2888 = vmatpush1.bf16.msra.mxu0 0
        %2889 = vmatprep.subr.bf16.mxu0 0
        %2890 = vmatpush1.bf16.msra.mxu0 0
        %2891 = vmatprep.subr.bf16.mxu0 0
        %2892 = vmatpush1.bf16.msra.mxu0 0
        %2893 = vmatprep.subr.bf16.mxu0 0
        %2894 = vmatpush1.bf16.msra.mxu0 0
        %2895 = vmatprep.subr.bf16.mxu0 0
        %2896 = vmatpush1.bf16.msra.mxu0 0
        %2897 = vmatprep.subr.bf16.mxu0 0
        %2898 = vmatpush1.bf16.msra.mxu0 0
        %2899 = vmatprep.subr.bf16.mxu0 0
        %2900 = vmatpush1.bf16.msra.mxu0 0
        %2901 = vmatprep.subr.bf16.mxu0 0
        %2902 = vmatpush1.bf16.msra.mxu0 0
        %2903 = vmatprep.subr.bf16.mxu0 0
        %2904 = vmatpush1.bf16.msra.mxu0 0
        %2905 = vmatprep.subr.bf16.mxu0 0
        %2906 = vmatpush1.bf16.msra.mxu0 0
        %2907 = vmatprep.mubr.bf16.mxu0 0
        %2908 = vmatmul.mubr.bf16.gmra.mrb[0].mxu0 %v2869
        %v2909 = vpop.f32.mrb[0].mxu0
        %v2910 = vadd.f32 %v2866, %v2909
        %v2911 = vpop.f32.mrb[0].mxu0
        %v2912 = vpop.f32.mrb[0].mxu0
        %v2913 = vpop.f32.mrb[0].mxu0
        %2914 = vdwg.mxu0
        %v2915 = vxor.u32 %v2910, 2147483648
        %v2916 = vmul.f32 %v2915, 1.442695
        %v2917 = vpow.pop %v2916
        %v2918 = vadd.f32 %v2917, 1.0
        %v2919 = vrcp.pop %v2918
        %v2920 = vmul.f32 1.0, %v2919
        %v2921 = vld [vmem:[#allocation3] sm:$0xff]
        %v2922 = vld [vmem:[#allocation3 + $0x8] sm:$0xff]
        %v2923 = vld [vmem:[#allocation3 + $0x10] sm:$0xff]
        %v2924 = vld [vmem:[#allocation3 + $0x18] sm:$0xff]
        %v2925 = vld [vmem:[#allocation3 + $0x20] sm:$0xff]
        %v2926 = vld [vmem:[#allocation3 + $0x28] sm:$0xff]
        %v2927 = vld [vmem:[#allocation3 + $0x30] sm:$0xff]
        %v2928 = vld [vmem:[#allocation3 + $0x38] sm:$0xff]
        %v2929 = vld [vmem:[#allocation3 + $0x40] sm:$0xff]
        %v2930 = vld [vmem:[#allocation3 + $0x48] sm:$0xff]
        %v2931 = vld [vmem:[#allocation3 + $0x50] sm:$0xff]
        %v2932 = vld [vmem:[#allocation3 + $0x58] sm:$0xff]
        %v2933 = vld [vmem:[#allocation3 + $0x60] sm:$0xff]
        %v2934 = vld [vmem:[#allocation3 + $0x68] sm:$0xff]
        %v2935 = vld [vmem:[#allocation3 + $0x70] sm:$0xff]
        %v2936 = vld [vmem:[#allocation3 + $0x78] sm:$0xff]
        %v2937 = vunpack.c.l.bf16 %v2921
        %v2938 = vunpack.c.h.bf16 %v2921
        %v2939 = vunpack.c.l.bf16 %v2922
        %v2940 = vunpack.c.h.bf16 %v2922
        %v2941 = vunpack.c.l.bf16 %v2923
        %v2942 = vunpack.c.h.bf16 %v2923
        %v2943 = vunpack.c.l.bf16 %v2924
        %v2944 = vunpack.c.h.bf16 %v2924
        %v2945 = vunpack.c.l.bf16 %v2925
        %v2946 = vunpack.c.h.bf16 %v2925
        %v2947 = vunpack.c.l.bf16 %v2926
        %v2948 = vunpack.c.h.bf16 %v2926
        %v2949 = vunpack.c.l.bf16 %v2927
        %v2950 = vunpack.c.h.bf16 %v2927
        %v2951 = vunpack.c.l.bf16 %v2928
        %v2952 = vunpack.c.h.bf16 %v2928
        %v2953 = vunpack.c.l.bf16 %v2929
        %v2954 = vunpack.c.h.bf16 %v2929
        %v2955 = vunpack.c.l.bf16 %v2930
        %v2956 = vunpack.c.h.bf16 %v2930
        %v2957 = vunpack.c.l.bf16 %v2931
        %v2958 = vunpack.c.h.bf16 %v2931
        %v2959 = vunpack.c.l.bf16 %v2932
        %v2960 = vunpack.c.h.bf16 %v2932
        %v2961 = vunpack.c.l.bf16 %v2933
        %v2962 = vunpack.c.h.bf16 %v2933
        %v2963 = vunpack.c.l.bf16 %v2934
        %v2964 = vunpack.c.h.bf16 %v2934
        %v2965 = vunpack.c.l.bf16 %v2935
        %v2966 = vunpack.c.h.bf16 %v2935
        %v2967 = vunpack.c.l.bf16 %v2936
        %v2968 = vunpack.c.h.bf16 %v2936
        %v2969 = vlaneseq
        %v2970 = vshrl.u32 %v2969, 7
        %v2971 = vsub.s32 0, %v2970
        %v2972 = vrot.slane %v2920, %v2971
        %v2973 = vmul.f32 %v2937, %v2972
        %v2974 = vmul.f32 %v2938, %v2972
        %v2975 = vmul.f32 %v2939, %v2972
        %v2976 = vmul.f32 %v2940, %v2972
        %v2977 = vmul.f32 %v2941, %v2972
        %v2978 = vmul.f32 %v2942, %v2972
        %v2979 = vmul.f32 %v2943, %v2972
        %v2980 = vmul.f32 %v2944, %v2972
        %v2981 = vmul.f32 %v2945, %v2972
        %v2982 = vmul.f32 %v2946, %v2972
        %v2983 = vmul.f32 %v2947, %v2972
        %v2984 = vmul.f32 %v2948, %v2972
        %v2985 = vmul.f32 %v2949, %v2972
        %v2986 = vmul.f32 %v2950, %v2972
        %v2987 = vmul.f32 %v2951, %v2972
        %v2988 = vmul.f32 %v2952, %v2972
        %v2989 = vmul.f32 %v2953, %v2972
        %v2990 = vmul.f32 %v2954, %v2972
        %v2991 = vmul.f32 %v2955, %v2972
        %v2992 = vmul.f32 %v2956, %v2972
        %v2993 = vmul.f32 %v2957, %v2972
        %v2994 = vmul.f32 %v2958, %v2972
        %v2995 = vmul.f32 %v2959, %v2972
        %v2996 = vmul.f32 %v2960, %v2972
        %v2997 = vmul.f32 %v2961, %v2972
        %v2998 = vmul.f32 %v2962, %v2972
        %v2999 = vmul.f32 %v2963, %v2972
        %v3000 = vmul.f32 %v2964, %v2972
        %v3001 = vmul.f32 %v2965, %v2972
        %v3002 = vmul.f32 %v2966, %v2972
        %v3003 = vmul.f32 %v2967, %v2972
        %v3004 = vmul.f32 %v2968, %v2972
        %v3005 = vpack.c.bf16 %v2974, %v2973
        %v3006 = vpack.c.bf16 %v2976, %v2975
        %v3007 = vpack.c.bf16 %v2978, %v2977
        %v3008 = vpack.c.bf16 %v2980, %v2979
        %v3009 = vpack.c.bf16 %v2982, %v2981
        %v3010 = vpack.c.bf16 %v2984, %v2983
        %v3011 = vpack.c.bf16 %v2986, %v2985
        %v3012 = vpack.c.bf16 %v2988, %v2987
        %v3013 = vpack.c.bf16 %v2990, %v2989
        %v3014 = vpack.c.bf16 %v2992, %v2991
        %v3015 = vpack.c.bf16 %v2994, %v2993
        %v3016 = vpack.c.bf16 %v2996, %v2995
        %v3017 = vpack.c.bf16 %v2998, %v2997
        %v3018 = vpack.c.bf16 %v3000, %v2999
        %v3019 = vpack.c.bf16 %v3002, %v3001
        %v3020 = vpack.c.bf16 %v3004, %v3003
        %v3021 = vld [vmem:[%s11] sm:$0xf]
        %v3022 = vld [vmem:[%s11 + $0x4] sm:$0xf]
        %v3023 = vld [vmem:[%s11 + $0x8] sm:$0xf]
        %v3024 = vld [vmem:[%s11 + $0xc] sm:$0xf]
        %v3025 = vld [vmem:[%s11 + $0x10] sm:$0xf]
        %v3026 = vld [vmem:[%s11 + $0x14] sm:$0xf]
        %v3027 = vld [vmem:[%s11 + $0x18] sm:$0xf]
        %v3028 = vld [vmem:[%s11 + $0x1c] sm:$0xf]
        %v3029 = vld [vmem:[%s11 + $0x20] sm:$0xf]
        %v3030 = vld [vmem:[%s11 + $0x24] sm:$0xf]
        %v3031 = vld [vmem:[%s11 + $0x28] sm:$0xf]
        %v3032 = vld [vmem:[%s11 + $0x2c] sm:$0xf]
        %v3033 = vld [vmem:[%s11 + $0x30] sm:$0xf]
        %v3034 = vld [vmem:[%s11 + $0x34] sm:$0xf]
        %v3035 = vld [vmem:[%s11 + $0x38] sm:$0xf]
        %v3036 = vld [vmem:[%s11 + $0x3c] sm:$0xf]
        %v3037 = vld [vmem:[%s12] sm:$0x1]
        %v3039 = vlaneseq
        %v3040 = vshrl.u32 %v3039, 7
        %v3041 = vsub.s32 0, %v3040
        %v3042 = vrot.slane %v3037, %v3041
        %v3060 = vunpack.c.l.b16 %v3021
        %v3061 = vunpack.c.l.b16 %v3022
        %v3062 = vunpack.c.l.b16 %v3023
        %v3063 = vunpack.c.l.b16 %v3024
        %v3064 = vunpack.c.l.b16 %v3025
        %v3065 = vunpack.c.l.b16 %v3026
        %v3066 = vunpack.c.l.b16 %v3027
        %v3067 = vunpack.c.l.b16 %v3028
        %v3068 = vunpack.c.l.b16 %v3029
        %v3069 = vunpack.c.l.b16 %v3030
        %v3070 = vunpack.c.l.b16 %v3031
        %v3071 = vunpack.c.l.b16 %v3032
        %v3072 = vunpack.c.l.b16 %v3033
        %v3073 = vunpack.c.l.b16 %v3034
        %v3074 = vunpack.c.l.b16 %v3035
        %v3075 = vunpack.c.l.b16 %v3036
        %v3076 = vpack.c.b16 %v3061, %v3060
        %v3077 = vpack.c.b16 %v3063, %v3062
        %v3078 = vpack.c.b16 %v3065, %v3064
        %v3079 = vpack.c.b16 %v3067, %v3066
        %v3080 = vpack.c.b16 %v3069, %v3068
        %v3081 = vpack.c.b16 %v3071, %v3070
        %v3082 = vpack.c.b16 %v3073, %v3072
        %v3083 = vpack.c.b16 %v3075, %v3074
        %3092 = vmatprep.subr.bf16.mxu0 0
        %3093 = vmatpush1.bf16.msra.mxu0 %v3076
        %3094 = vmatprep.subr.bf16.mxu0 0
        %3095 = vmatpush1.bf16.msra.mxu0 %v3077
        %3096 = vmatprep.subr.bf16.mxu0 0
        %3097 = vmatpush1.bf16.msra.mxu0 %v3078
        %3098 = vmatprep.subr.bf16.mxu0 0
        %3099 = vmatpush1.bf16.msra.mxu0 %v3079
        %3100 = vmatprep.subr.bf16.mxu0 0
        %3101 = vmatpush1.bf16.msra.mxu0 %v3080
        %3102 = vmatprep.subr.bf16.mxu0 0
        %3103 = vmatpush1.bf16.msra.mxu0 %v3081
        %3104 = vmatprep.subr.bf16.mxu0 0
        %3105 = vmatpush1.bf16.msra.mxu0 %v3082
        %3106 = vmatprep.subr.bf16.mxu0 0
        %3107 = vmatpush1.bf16.msra.mxu0 %v3083
        %3108 = vmatprep.subr.bf16.mxu0 0
        %3109 = vmatpush1.bf16.msra.mxu0 0
        %3110 = vmatprep.subr.bf16.mxu0 0
        %3111 = vmatpush1.bf16.msra.mxu0 0
        %3112 = vmatprep.subr.bf16.mxu0 0
        %3113 = vmatpush1.bf16.msra.mxu0 0
        %3114 = vmatprep.subr.bf16.mxu0 0
        %3115 = vmatpush1.bf16.msra.mxu0 0
        %3116 = vmatprep.subr.bf16.mxu0 0
        %3117 = vmatpush1.bf16.msra.mxu0 0
        %3118 = vmatprep.subr.bf16.mxu0 0
        %3119 = vmatpush1.bf16.msra.mxu0 0
        %3120 = vmatprep.subr.bf16.mxu0 0
        %3121 = vmatpush1.bf16.msra.mxu0 0
        %3122 = vmatprep.subr.bf16.mxu0 0
        %3123 = vmatpush1.bf16.msra.mxu0 0
        %3124 = vmatprep.mubr.bf16.mxu0 0
        %3125 = vmatmul.mubr.bf16.gmra.mrb[0].mxu0 %v3005
        %v3126 = vpop.f32.mrb[0].mxu0
        %v3127 = vadd.f32 %v3042, %v3126
        %v3128 = vpop.f32.mrb[0].mxu0
        %v3129 = vpop.f32.mrb[0].mxu0
        %v3130 = vadd.f32 %v3042, %v3129
        %v3131 = vpop.f32.mrb[0].mxu0
        %3132 = vmatprep.mubr.bf16.mxu0 0
        %3133 = vmatmul.mubr.bf16.gmra.mrb[0].mxu0 %v3006
        %v3134 = vpop.f32.mrb[0].mxu0
        %v3135 = vadd.f32 %v3042, %v3134
        %v3136 = vpop.f32.mrb[0].mxu0
        %v3137 = vpop.f32.mrb[0].mxu0
        %v3138 = vadd.f32 %v3042, %v3137
        %v3139 = vpop.f32.mrb[0].mxu0
        %3140 = vmatprep.mubr.bf16.mxu0 0
        %3141 = vmatmul.mubr.bf16.gmra.mrb[0].mxu0 %v3007
        %v3142 = vpop.f32.mrb[0].mxu0
        %v3143 = vadd.f32 %v3042, %v3142
        %v3144 = vpop.f32.mrb[0].mxu0
        %v3145 = vpop.f32.mrb[0].mxu0
        %v3146 = vadd.f32 %v3042, %v3145
        %v3147 = vpop.f32.mrb[0].mxu0
        %3148 = vmatprep.mubr.bf16.mxu0 0
        %3149 = vmatmul.mubr.bf16.gmra.mrb[0].mxu0 %v3008
        %v3150 = vpop.f32.mrb[0].mxu0
        %v3151 = vadd.f32 %v3042, %v3150
        %v3152 = vpop.f32.mrb[0].mxu0
        %v3153 = vpop.f32.mrb[0].mxu0
        %v3154 = vadd.f32 %v3042, %v3153
        %v3155 = vpop.f32.mrb[0].mxu0
        %3156 = vmatprep.mubr.bf16.mxu0 0
        %3157 = vmatmul.mubr.bf16.gmra.mrb[0].mxu0 %v3009
        %v3158 = vpop.f32.mrb[0].mxu0
        %v3159 = vadd.f32 %v3042, %v3158
        %v3160 = vpop.f32.mrb[0].mxu0
        %v3161 = vpop.f32.mrb[0].mxu0
        %v3162 = vadd.f32 %v3042, %v3161
        %v3163 = vpop.f32.mrb[0].mxu0
        %3164 = vmatprep.mubr.bf16.mxu0 0
        %3165 = vmatmul.mubr.bf16.gmra.mrb[0].mxu0 %v3010
        %v3166 = vpop.f32.mrb[0].mxu0
        %v3167 = vadd.f32 %v3042, %v3166
        %v3168 = vpop.f32.mrb[0].mxu0
        %v3169 = vpop.f32.mrb[0].mxu0
        %v3170 = vadd.f32 %v3042, %v3169
        %v3171 = vpop.f32.mrb[0].mxu0
        %3172 = vmatprep.mubr.bf16.mxu0 0
        %3173 = vmatmul.mubr.bf16.gmra.mrb[0].mxu0 %v3011
        %v3174 = vpop.f32.mrb[0].mxu0
        %v3175 = vadd.f32 %v3042, %v3174
        %v3176 = vpop.f32.mrb[0].mxu0
        %v3177 = vpop.f32.mrb[0].mxu0
        %v3178 = vadd.f32 %v3042, %v3177
        %v3179 = vpop.f32.mrb[0].mxu0
        %3180 = vmatprep.mubr.bf16.mxu0 0
        %3181 = vmatmul.mubr.bf16.gmra.mrb[0].mxu0 %v3012
        %v3182 = vpop.f32.mrb[0].mxu0
        %v3183 = vadd.f32 %v3042, %v3182
        %v3184 = vpop.f32.mrb[0].mxu0
        %v3185 = vpop.f32.mrb[0].mxu0
        %v3186 = vadd.f32 %v3042, %v3185
        %v3187 = vpop.f32.mrb[0].mxu0
        %3188 = vmatprep.mubr.bf16.mxu0 0
        %3189 = vmatmul.mubr.bf16.gmra.mrb[0].mxu0 %v3013
        %v3190 = vpop.f32.mrb[0].mxu0
        %v3191 = vadd.f32 %v3042, %v3190
        %v3192 = vpop.f32.mrb[0].mxu0
        %v3193 = vpop.f32.mrb[0].mxu0
        %v3194 = vadd.f32 %v3042, %v3193
        %v3195 = vpop.f32.mrb[0].mxu0
        %3196 = vmatprep.mubr.bf16.mxu0 0
        %3197 = vmatmul.mubr.bf16.gmra.mrb[0].mxu0 %v3014
        %v3198 = vpop.f32.mrb[0].mxu0
        %v3199 = vadd.f32 %v3042, %v3198
        %v3200 = vpop.f32.mrb[0].mxu0
        %v3201 = vpop.f32.mrb[0].mxu0
        %v3202 = vadd.f32 %v3042, %v3201
        %v3203 = vpop.f32.mrb[0].mxu0
        %3204 = vmatprep.mubr.bf16.mxu0 0
        %3205 = vmatmul.mubr.bf16.gmra.mrb[0].mxu0 %v3015
        %v3206 = vpop.f32.mrb[0].mxu0
        %v3207 = vadd.f32 %v3042, %v3206
        %v3208 = vpop.f32.mrb[0].mxu0
        %v3209 = vpop.f32.mrb[0].mxu0
        %v3210 = vadd.f32 %v3042, %v3209
        %v3211 = vpop.f32.mrb[0].mxu0
        %3212 = vmatprep.mubr.bf16.mxu0 0
        %3213 = vmatmul.mubr.bf16.gmra.mrb[0].mxu0 %v3016
        %v3214 = vpop.f32.mrb[0].mxu0
        %v3215 = vadd.f32 %v3042, %v3214
        %v3216 = vpop.f32.mrb[0].mxu0
        %v3217 = vpop.f32.mrb[0].mxu0
        %v3218 = vadd.f32 %v3042, %v3217
        %v3219 = vpop.f32.mrb[0].mxu0
        %3220 = vmatprep.mubr.bf16.mxu0 0
        %3221 = vmatmul.mubr.bf16.gmra.mrb[0].mxu0 %v3017
        %v3222 = vpop.f32.mrb[0].mxu0
        %v3223 = vadd.f32 %v3042, %v3222
        %v3224 = vpop.f32.mrb[0].mxu0
        %v3225 = vpop.f32.mrb[0].mxu0
        %v3226 = vadd.f32 %v3042, %v3225
        %v3227 = vpop.f32.mrb[0].mxu0
        %3228 = vmatprep.mubr.bf16.mxu0 0
        %3229 = vmatmul.mubr.bf16.gmra.mrb[0].mxu0 %v3018
        %v3230 = vpop.f32.mrb[0].mxu0
        %v3231 = vadd.f32 %v3042, %v3230
        %v3232 = vpop.f32.mrb[0].mxu0
        %v3233 = vpop.f32.mrb[0].mxu0
        %v3234 = vadd.f32 %v3042, %v3233
        %v3235 = vpop.f32.mrb[0].mxu0
        %3236 = vmatprep.mubr.bf16.mxu0 0
        %3237 = vmatmul.mubr.bf16.gmra.mrb[0].mxu0 %v3019
        %v3238 = vpop.f32.mrb[0].mxu0
        %v3239 = vadd.f32 %v3042, %v3238
        %v3240 = vpop.f32.mrb[0].mxu0
        %v3241 = vpop.f32.mrb[0].mxu0
        %v3242 = vadd.f32 %v3042, %v3241
        %v3243 = vpop.f32.mrb[0].mxu0
        %3244 = vmatprep.mubr.bf16.mxu0 0
        %3245 = vmatmul.mubr.bf16.gmra.mrb[0].mxu0 %v3020
        %v3246 = vpop.f32.mrb[0].mxu0
        %v3247 = vadd.f32 %v3042, %v3246
        %v3248 = vpop.f32.mrb[0].mxu0
        %v3249 = vpop.f32.mrb[0].mxu0
        %v3250 = vadd.f32 %v3042, %v3249
        %v3251 = vpop.f32.mrb[0].mxu0
        %3252 = vdwg.mxu0
        %v3253 = vadd.f32 %v3127, %v1092
        %v3254 = vadd.f32 %v3130, %v1093
        %v3255 = vadd.f32 %v3135, %v1094
        %v3256 = vadd.f32 %v3138, %v1095
        %v3257 = vadd.f32 %v3143, %v1096
        %v3258 = vadd.f32 %v3146, %v1097
        %v3259 = vadd.f32 %v3151, %v1098
        %v3260 = vadd.f32 %v3154, %v1099
        %v3261 = vadd.f32 %v3159, %v1100
        %v3262 = vadd.f32 %v3162, %v1101
        %v3263 = vadd.f32 %v3167, %v1102
        %v3264 = vadd.f32 %v3170, %v1103
        %v3265 = vadd.f32 %v3175, %v1104
        %v3266 = vadd.f32 %v3178, %v1105
        %v3267 = vadd.f32 %v3183, %v1106
        %v3268 = vadd.f32 %v3186, %v1107
        %v3269 = vadd.f32 %v3191, %v1108
        %v3270 = vadd.f32 %v3194, %v1109
        %v3271 = vadd.f32 %v3199, %v1110
        %v3272 = vadd.f32 %v3202, %v1111
        %v3273 = vadd.f32 %v3207, %v1112
        %v3274 = vadd.f32 %v3210, %v1113
        %v3275 = vadd.f32 %v3215, %v1114
        %v3276 = vadd.f32 %v3218, %v1115
        %v3277 = vadd.f32 %v3223, %v1116
        %v3278 = vadd.f32 %v3226, %v1117
        %v3279 = vadd.f32 %v3231, %v1118
        %v3280 = vadd.f32 %v3234, %v1119
        %v3281 = vadd.f32 %v3239, %v1120
        %v3282 = vadd.f32 %v3242, %v1121
        %v3283 = vadd.f32 %v3247, %v1122
        %v3284 = vadd.f32 %v3250, %v1123
        %v3285 = vpack.c.bf16 %v3254, %v3253
        %v3286 = vpack.c.bf16 %v3256, %v3255
        %v3287 = vpack.c.bf16 %v3258, %v3257
        %v3288 = vpack.c.bf16 %v3260, %v3259
        %v3289 = vpack.c.bf16 %v3262, %v3261
        %v3290 = vpack.c.bf16 %v3264, %v3263
        %v3291 = vpack.c.bf16 %v3266, %v3265
        %v3292 = vpack.c.bf16 %v3268, %v3267
        %v3293 = vpack.c.bf16 %v3270, %v3269
        %v3294 = vpack.c.bf16 %v3272, %v3271
        %v3295 = vpack.c.bf16 %v3274, %v3273
        %v3296 = vpack.c.bf16 %v3276, %v3275
        %v3297 = vpack.c.bf16 %v3278, %v3277
        %v3298 = vpack.c.bf16 %v3280, %v3279
        %v3299 = vpack.c.bf16 %v3282, %v3281
        %v3300 = vpack.c.bf16 %v3284, %v3283
        %v3301 = vld [vmem:[%s13] sm:$0xf]
        %v3302 = vld [vmem:[%s13 + $0x4] sm:$0xf]
        %v3303 = vld [vmem:[%s13 + $0x8] sm:$0xf]
        %v3304 = vld [vmem:[%s13 + $0xc] sm:$0xf]
        %v3305 = vld [vmem:[%s14] sm:$0x1]
        %v3307 = vlaneseq
        %v3308 = vshrl.u32 %v3307, 7
        %v3309 = vsub.s32 0, %v3308
        %v3310 = vrot.slane %v3305, %v3309
        %v3316 = vunpack.c.l.b16 %v3301
        %v3317 = vunpack.c.l.b16 %v3302
        %v3318 = vunpack.c.l.b16 %v3303
        %v3319 = vunpack.c.l.b16 %v3304
        %v3320 = vpack.c.b16 %v3317, %v3316
        %v3321 = vpack.c.b16 %v3319, %v3318
        %v3325 = vsel %vm1163, %v3285, 0
        %v3328 = vsel %vm1163, %v3286, 0
        %v3331 = vsel %vm1163, %v3287, 0
        %v3334 = vsel %vm1163, %v3288, 0
        %v3337 = vsel %vm1163, %v3289, 0
        %v3340 = vsel %vm1163, %v3290, 0
        %v3343 = vsel %vm1163, %v3291, 0
        %v3346 = vsel %vm1163, %v3292, 0
        %v3349 = vsel %vm1163, %v3293, 0
        %v3352 = vsel %vm1163, %v3294, 0
        %v3355 = vsel %vm1163, %v3295, 0
        %v3358 = vsel %vm1163, %v3296, 0
        %v3361 = vsel %vm1163, %v3297, 0
        %v3364 = vsel %vm1163, %v3298, 0
        %v3367 = vsel %vm1163, %v3299, 0
        %v3370 = vsel %vm1163, %v3300, 0
        %3372 = vmatprep.subr.bf16.mxu0 0
        %3373 = vmatpush1.bf16.msra.mxu0 %v3320
        %3374 = vmatprep.subr.bf16.mxu0 0
        %3375 = vmatpush1.bf16.msra.mxu0 %v3321
        %3376 = vmatprep.subr.bf16.mxu0 0
        %3377 = vmatpush1.bf16.msra.mxu0 0
        %3378 = vmatprep.subr.bf16.mxu0 0
        %3379 = vmatpush1.bf16.msra.mxu0 0
        %3380 = vmatprep.subr.bf16.mxu0 0
        %3381 = vmatpush1.bf16.msra.mxu0 0
        %3382 = vmatprep.subr.bf16.mxu0 0
        %3383 = vmatpush1.bf16.msra.mxu0 0
        %3384 = vmatprep.subr.bf16.mxu0 0
        %3385 = vmatpush1.bf16.msra.mxu0 0
        %3386 = vmatprep.subr.bf16.mxu0 0
        %3387 = vmatpush1.bf16.msra.mxu0 0
        %3388 = vmatprep.subr.bf16.mxu0 0
        %3389 = vmatpush1.bf16.msra.mxu0 0
        %3390 = vmatprep.subr.bf16.mxu0 0
        %3391 = vmatpush1.bf16.msra.mxu0 0
        %3392 = vmatprep.subr.bf16.mxu0 0
        %3393 = vmatpush1.bf16.msra.mxu0 0
        %3394 = vmatprep.subr.bf16.mxu0 0
        %3395 = vmatpush1.bf16.msra.mxu0 0
        %3396 = vmatprep.subr.bf16.mxu0 0
        %3397 = vmatpush1.bf16.msra.mxu0 0
        %3398 = vmatprep.subr.bf16.mxu0 0
        %3399 = vmatpush1.bf16.msra.mxu0 0
        %3400 = vmatprep.subr.bf16.mxu0 0
        %3401 = vmatpush1.bf16.msra.mxu0 0
        %3402 = vmatprep.subr.bf16.mxu0 0
        %3403 = vmatpush1.bf16.msra.mxu0 0
        %3404 = vmatprep.mubr.bf16.mxu0 0
        %3405 = vmatmul.mubr.bf16.gmra.mrb[0].mxu0 %v3325
        %v3406 = vpop.f32.mrb[0].mxu0
        %v3407 = vadd.f32 %v3310, %v3406
        %v3408 = vpop.f32.mrb[0].mxu0
        %v3409 = vpop.f32.mrb[0].mxu0
        %v3410 = vadd.f32 %v3310, %v3409
        %v3411 = vpop.f32.mrb[0].mxu0
        %3412 = vmatprep.mubr.bf16.mxu0 0
        %3413 = vmatmul.mubr.bf16.gmra.mrb[0].mxu0 %v3328
        %v3414 = vpop.f32.mrb[0].mxu0
        %v3415 = vadd.f32 %v3310, %v3414
        %v3416 = vpop.f32.mrb[0].mxu0
        %v3417 = vpop.f32.mrb[0].mxu0
        %v3418 = vadd.f32 %v3310, %v3417
        %v3419 = vpop.f32.mrb[0].mxu0
        %3420 = vmatprep.mubr.bf16.mxu0 0
        %3421 = vmatmul.mubr.bf16.gmra.mrb[0].mxu0 %v3331
        %v3422 = vpop.f32.mrb[0].mxu0
        %v3423 = vadd.f32 %v3310, %v3422
        %v3424 = vpop.f32.mrb[0].mxu0
        %v3425 = vpop.f32.mrb[0].mxu0
        %v3426 = vadd.f32 %v3310, %v3425
        %v3427 = vpop.f32.mrb[0].mxu0
        %3428 = vmatprep.mubr.bf16.mxu0 0
        %3429 = vmatmul.mubr.bf16.gmra.mrb[0].mxu0 %v3334
        %v3430 = vpop.f32.mrb[0].mxu0
        %v3431 = vadd.f32 %v3310, %v3430
        %v3432 = vpop.f32.mrb[0].mxu0
        %v3433 = vpop.f32.mrb[0].mxu0
        %v3434 = vadd.f32 %v3310, %v3433
        %v3435 = vpop.f32.mrb[0].mxu0
        %3436 = vmatprep.mubr.bf16.mxu0 0
        %3437 = vmatmul.mubr.bf16.gmra.mrb[0].mxu0 %v3337
        %v3438 = vpop.f32.mrb[0].mxu0
        %v3439 = vadd.f32 %v3310, %v3438
        %v3440 = vpop.f32.mrb[0].mxu0
        %v3441 = vpop.f32.mrb[0].mxu0
        %v3442 = vadd.f32 %v3310, %v3441
        %v3443 = vpop.f32.mrb[0].mxu0
        %3444 = vmatprep.mubr.bf16.mxu0 0
        %3445 = vmatmul.mubr.bf16.gmra.mrb[0].mxu0 %v3340
        %v3446 = vpop.f32.mrb[0].mxu0
        %v3447 = vadd.f32 %v3310, %v3446
        %v3448 = vpop.f32.mrb[0].mxu0
        %v3449 = vpop.f32.mrb[0].mxu0
        %v3450 = vadd.f32 %v3310, %v3449
        %v3451 = vpop.f32.mrb[0].mxu0
        %3452 = vmatprep.mubr.bf16.mxu0 0
        %3453 = vmatmul.mubr.bf16.gmra.mrb[0].mxu0 %v3343
        %v3454 = vpop.f32.mrb[0].mxu0
        %v3455 = vadd.f32 %v3310, %v3454
        %v3456 = vpop.f32.mrb[0].mxu0
        %v3457 = vpop.f32.mrb[0].mxu0
        %v3458 = vadd.f32 %v3310, %v3457
        %v3459 = vpop.f32.mrb[0].mxu0
        %3460 = vmatprep.mubr.bf16.mxu0 0
        %3461 = vmatmul.mubr.bf16.gmra.mrb[0].mxu0 %v3346
        %v3462 = vpop.f32.mrb[0].mxu0
        %v3463 = vadd.f32 %v3310, %v3462
        %v3464 = vpop.f32.mrb[0].mxu0
        %v3465 = vpop.f32.mrb[0].mxu0
        %v3466 = vadd.f32 %v3310, %v3465
        %v3467 = vpop.f32.mrb[0].mxu0
        %3468 = vmatprep.mubr.bf16.mxu0 0
        %3469 = vmatmul.mubr.bf16.gmra.mrb[0].mxu0 %v3349
        %v3470 = vpop.f32.mrb[0].mxu0
        %v3471 = vadd.f32 %v3310, %v3470
        %v3472 = vpop.f32.mrb[0].mxu0
        %v3473 = vpop.f32.mrb[0].mxu0
        %v3474 = vadd.f32 %v3310, %v3473
        %v3475 = vpop.f32.mrb[0].mxu0
        %3476 = vmatprep.mubr.bf16.mxu0 0
        %3477 = vmatmul.mubr.bf16.gmra.mrb[0].mxu0 %v3352
        %v3478 = vpop.f32.mrb[0].mxu0
        %v3479 = vadd.f32 %v3310, %v3478
        %v3480 = vpop.f32.mrb[0].mxu0
        %v3481 = vpop.f32.mrb[0].mxu0
        %v3482 = vadd.f32 %v3310, %v3481
        %v3483 = vpop.f32.mrb[0].mxu0
        %3484 = vmatprep.mubr.bf16.mxu0 0
        %3485 = vmatmul.mubr.bf16.gmra.mrb[0].mxu0 %v3355
        %v3486 = vpop.f32.mrb[0].mxu0
        %v3487 = vadd.f32 %v3310, %v3486
        %v3488 = vpop.f32.mrb[0].mxu0
        %v3489 = vpop.f32.mrb[0].mxu0
        %v3490 = vadd.f32 %v3310, %v3489
        %v3491 = vpop.f32.mrb[0].mxu0
        %3492 = vmatprep.mubr.bf16.mxu0 0
        %3493 = vmatmul.mubr.bf16.gmra.mrb[0].mxu0 %v3358
        %v3494 = vpop.f32.mrb[0].mxu0
        %v3495 = vadd.f32 %v3310, %v3494
        %v3496 = vpop.f32.mrb[0].mxu0
        %v3497 = vpop.f32.mrb[0].mxu0
        %v3498 = vadd.f32 %v3310, %v3497
        %v3499 = vpop.f32.mrb[0].mxu0
        %3500 = vmatprep.mubr.bf16.mxu0 0
        %3501 = vmatmul.mubr.bf16.gmra.mrb[0].mxu0 %v3361
        %v3502 = vpop.f32.mrb[0].mxu0
        %v3503 = vadd.f32 %v3310, %v3502
        %v3504 = vpop.f32.mrb[0].mxu0
        %v3505 = vpop.f32.mrb[0].mxu0
        %v3506 = vadd.f32 %v3310, %v3505
        %v3507 = vpop.f32.mrb[0].mxu0
        %3508 = vmatprep.mubr.bf16.mxu0 0
        %3509 = vmatmul.mubr.bf16.gmra.mrb[0].mxu0 %v3364
        %v3510 = vpop.f32.mrb[0].mxu0
        %v3511 = vadd.f32 %v3310, %v3510
        %v3512 = vpop.f32.mrb[0].mxu0
        %v3513 = vpop.f32.mrb[0].mxu0
        %v3514 = vadd.f32 %v3310, %v3513
        %v3515 = vpop.f32.mrb[0].mxu0
        %3516 = vmatprep.mubr.bf16.mxu0 0
        %3517 = vmatmul.mubr.bf16.gmra.mrb[0].mxu0 %v3367
        %v3518 = vpop.f32.mrb[0].mxu0
        %v3519 = vadd.f32 %v3310, %v3518
        %v3520 = vpop.f32.mrb[0].mxu0
        %v3521 = vpop.f32.mrb[0].mxu0
        %v3522 = vadd.f32 %v3310, %v3521
        %v3523 = vpop.f32.mrb[0].mxu0
        %3524 = vmatprep.mubr.bf16.mxu0 0
        %3525 = vmatmul.mubr.bf16.gmra.mrb[0].mxu0 %v3370
        %v3526 = vpop.f32.mrb[0].mxu0
        %v3527 = vadd.f32 %v3310, %v3526
        %v3528 = vpop.f32.mrb[0].mxu0
        %v3529 = vpop.f32.mrb[0].mxu0
        %v3530 = vadd.f32 %v3310, %v3529
        %v3531 = vpop.f32.mrb[0].mxu0
        %3532 = vdwg.mxu0
        %v3533 = vxor.u32 %v3407, 2147483648
        %v3534 = vxor.u32 %v3410, 2147483648
        %v3535 = vxor.u32 %v3415, 2147483648
        %v3536 = vxor.u32 %v3418, 2147483648
        %v3537 = vxor.u32 %v3423, 2147483648
        %v3538 = vxor.u32 %v3426, 2147483648
        %v3539 = vxor.u32 %v3431, 2147483648
        %v3540 = vxor.u32 %v3434, 2147483648
        %v3541 = vxor.u32 %v3439, 2147483648
        %v3542 = vxor.u32 %v3442, 2147483648
        %v3543 = vxor.u32 %v3447, 2147483648
        %v3544 = vxor.u32 %v3450, 2147483648
        %v3545 = vxor.u32 %v3455, 2147483648
        %v3546 = vxor.u32 %v3458, 2147483648
        %v3547 = vxor.u32 %v3463, 2147483648
        %v3548 = vxor.u32 %v3466, 2147483648
        %v3549 = vxor.u32 %v3471, 2147483648
        %v3550 = vxor.u32 %v3474, 2147483648
        %v3551 = vxor.u32 %v3479, 2147483648
        %v3552 = vxor.u32 %v3482, 2147483648
        %v3553 = vxor.u32 %v3487, 2147483648
        %v3554 = vxor.u32 %v3490, 2147483648
        %v3555 = vxor.u32 %v3495, 2147483648
        %v3556 = vxor.u32 %v3498, 2147483648
        %v3557 = vxor.u32 %v3503, 2147483648
        %v3558 = vxor.u32 %v3506, 2147483648
        %v3559 = vxor.u32 %v3511, 2147483648
        %v3560 = vxor.u32 %v3514, 2147483648
        %v3561 = vxor.u32 %v3519, 2147483648
        %v3562 = vxor.u32 %v3522, 2147483648
        %v3563 = vxor.u32 %v3527, 2147483648
        %v3564 = vxor.u32 %v3530, 2147483648
        %v3565 = vmul.f32 %v3533, 1.442695
        %v3566 = vpow.pop %v3565
        %v3567 = vmul.f32 %v3534, 1.442695
        %v3568 = vpow.pop %v3567
        %v3569 = vmul.f32 %v3535, 1.442695
        %v3570 = vpow.pop %v3569
        %v3571 = vmul.f32 %v3536, 1.442695
        %v3572 = vpow.pop %v3571
        %v3573 = vmul.f32 %v3537, 1.442695
        %v3574 = vpow.pop %v3573
        %v3575 = vmul.f32 %v3538, 1.442695
        %v3576 = vpow.pop %v3575
        %v3577 = vmul.f32 %v3539, 1.442695
        %v3578 = vpow.pop %v3577
        %v3579 = vmul.f32 %v3540, 1.442695
        %v3580 = vpow.pop %v3579
        %v3581 = vmul.f32 %v3541, 1.442695
        %v3582 = vpow.pop %v3581
        %v3583 = vmul.f32 %v3542, 1.442695
        %v3584 = vpow.pop %v3583
        %v3585 = vmul.f32 %v3543, 1.442695
        %v3586 = vpow.pop %v3585
        %v3587 = vmul.f32 %v3544, 1.442695
        %v3588 = vpow.pop %v3587
        %v3589 = vmul.f32 %v3545, 1.442695
        %v3590 = vpow.pop %v3589
        %v3591 = vmul.f32 %v3546, 1.442695
        %v3592 = vpow.pop %v3591
        %v3593 = vmul.f32 %v3547, 1.442695
        %v3594 = vpow.pop %v3593
        %v3595 = vmul.f32 %v3548, 1.442695
        %v3596 = vpow.pop %v3595
        %v3597 = vmul.f32 %v3549, 1.442695
        %v3598 = vpow.pop %v3597
        %v3599 = vmul.f32 %v3550, 1.442695
        %v3600 = vpow.pop %v3599
        %v3601 = vmul.f32 %v3551, 1.442695
        %v3602 = vpow.pop %v3601
        %v3603 = vmul.f32 %v3552, 1.442695
        %v3604 = vpow.pop %v3603
        %v3605 = vmul.f32 %v3553, 1.442695
        %v3606 = vpow.pop %v3605
        %v3607 = vmul.f32 %v3554, 1.442695
        %v3608 = vpow.pop %v3607
        %v3609 = vmul.f32 %v3555, 1.442695
        %v3610 = vpow.pop %v3609
        %v3611 = vmul.f32 %v3556, 1.442695
        %v3612 = vpow.pop %v3611
        %v3613 = vmul.f32 %v3557, 1.442695
        %v3614 = vpow.pop %v3613
        %v3615 = vmul.f32 %v3558, 1.442695
        %v3616 = vpow.pop %v3615
        %v3617 = vmul.f32 %v3559, 1.442695
        %v3618 = vpow.pop %v3617
        %v3619 = vmul.f32 %v3560, 1.442695
        %v3620 = vpow.pop %v3619
        %v3621 = vmul.f32 %v3561, 1.442695
        %v3622 = vpow.pop %v3621
        %v3623 = vmul.f32 %v3562, 1.442695
        %v3624 = vpow.pop %v3623
        %v3625 = vmul.f32 %v3563, 1.442695
        %v3626 = vpow.pop %v3625
        %v3627 = vmul.f32 %v3564, 1.442695
        %v3628 = vpow.pop %v3627
        %v3629 = vadd.f32 %v3566, 1.0
        %v3630 = vadd.f32 %v3568, 1.0
        %v3631 = vadd.f32 %v3570, 1.0
        %v3632 = vadd.f32 %v3572, 1.0
        %v3633 = vadd.f32 %v3574, 1.0
        %v3634 = vadd.f32 %v3576, 1.0
        %v3635 = vadd.f32 %v3578, 1.0
        %v3636 = vadd.f32 %v3580, 1.0
        %v3637 = vadd.f32 %v3582, 1.0
        %v3638 = vadd.f32 %v3584, 1.0
        %v3639 = vadd.f32 %v3586, 1.0
        %v3640 = vadd.f32 %v3588, 1.0
        %v3641 = vadd.f32 %v3590, 1.0
        %v3642 = vadd.f32 %v3592, 1.0
        %v3643 = vadd.f32 %v3594, 1.0
        %v3644 = vadd.f32 %v3596, 1.0
        %v3645 = vadd.f32 %v3598, 1.0
        %v3646 = vadd.f32 %v3600, 1.0
        %v3647 = vadd.f32 %v3602, 1.0
        %v3648 = vadd.f32 %v3604, 1.0
        %v3649 = vadd.f32 %v3606, 1.0
        %v3650 = vadd.f32 %v3608, 1.0
        %v3651 = vadd.f32 %v3610, 1.0
        %v3652 = vadd.f32 %v3612, 1.0
        %v3653 = vadd.f32 %v3614, 1.0
        %v3654 = vadd.f32 %v3616, 1.0
        %v3655 = vadd.f32 %v3618, 1.0
        %v3656 = vadd.f32 %v3620, 1.0
        %v3657 = vadd.f32 %v3622, 1.0
        %v3658 = vadd.f32 %v3624, 1.0
        %v3659 = vadd.f32 %v3626, 1.0
        %v3660 = vadd.f32 %v3628, 1.0
        %v3661 = vrcp.pop %v3629
        %v3662 = vmul.f32 1.0, %v3661
        %v3663 = vrcp.pop %v3630
        %v3664 = vmul.f32 1.0, %v3663
        %v3665 = vrcp.pop %v3631
        %v3666 = vmul.f32 1.0, %v3665
        %v3667 = vrcp.pop %v3632
        %v3668 = vmul.f32 1.0, %v3667
        %v3669 = vrcp.pop %v3633
        %v3670 = vmul.f32 1.0, %v3669
        %v3671 = vrcp.pop %v3634
        %v3672 = vmul.f32 1.0, %v3671
        %v3673 = vrcp.pop %v3635
        %v3674 = vmul.f32 1.0, %v3673
        %v3675 = vrcp.pop %v3636
        %v3676 = vmul.f32 1.0, %v3675
        %v3677 = vrcp.pop %v3637
        %v3678 = vmul.f32 1.0, %v3677
        %v3679 = vrcp.pop %v3638
        %v3680 = vmul.f32 1.0, %v3679
        %v3681 = vrcp.pop %v3639
        %v3682 = vmul.f32 1.0, %v3681
        %v3683 = vrcp.pop %v3640
        %v3684 = vmul.f32 1.0, %v3683
        %v3685 = vrcp.pop %v3641
        %v3686 = vmul.f32 1.0, %v3685
        %v3687 = vrcp.pop %v3642
        %v3688 = vmul.f32 1.0, %v3687
        %v3689 = vrcp.pop %v3643
        %v3690 = vmul.f32 1.0, %v3689
        %v3691 = vrcp.pop %v3644
        %v3692 = vmul.f32 1.0, %v3691
        %v3693 = vrcp.pop %v3645
        %v3694 = vmul.f32 1.0, %v3693
        %v3695 = vrcp.pop %v3646
        %v3696 = vmul.f32 1.0, %v3695
        %v3697 = vrcp.pop %v3647
        %v3698 = vmul.f32 1.0, %v3697
        %v3699 = vrcp.pop %v3648
        %v3700 = vmul.f32 1.0, %v3699
        %v3701 = vrcp.pop %v3649
        %v3702 = vmul.f32 1.0, %v3701
        %v3703 = vrcp.pop %v3650
        %v3704 = vmul.f32 1.0, %v3703
        %v3705 = vrcp.pop %v3651
        %v3706 = vmul.f32 1.0, %v3705
        %v3707 = vrcp.pop %v3652
        %v3708 = vmul.f32 1.0, %v3707
        %v3709 = vrcp.pop %v3653
        %v3710 = vmul.f32 1.0, %v3709
        %v3711 = vrcp.pop %v3654
        %v3712 = vmul.f32 1.0, %v3711
        %v3713 = vrcp.pop %v3655
        %v3714 = vmul.f32 1.0, %v3713
        %v3715 = vrcp.pop %v3656
        %v3716 = vmul.f32 1.0, %v3715
        %v3717 = vrcp.pop %v3657
        %v3718 = vmul.f32 1.0, %v3717
        %v3719 = vrcp.pop %v3658
        %v3720 = vmul.f32 1.0, %v3719
        %v3721 = vrcp.pop %v3659
        %v3722 = vmul.f32 1.0, %v3721
        %v3723 = vrcp.pop %v3660
        %v3724 = vmul.f32 1.0, %v3723
        %v3725 = vmul.f32 %v3407, %v3662
        %v3726 = vmul.f32 %v3410, %v3664
        %v3727 = vmul.f32 %v3415, %v3666
        %v3728 = vmul.f32 %v3418, %v3668
        %v3729 = vmul.f32 %v3423, %v3670
        %v3730 = vmul.f32 %v3426, %v3672
        %v3731 = vmul.f32 %v3431, %v3674
        %v3732 = vmul.f32 %v3434, %v3676
        %v3733 = vmul.f32 %v3439, %v3678
        %v3734 = vmul.f32 %v3442, %v3680
        %v3735 = vmul.f32 %v3447, %v3682
        %v3736 = vmul.f32 %v3450, %v3684
        %v3737 = vmul.f32 %v3455, %v3686
        %v3738 = vmul.f32 %v3458, %v3688
        %v3739 = vmul.f32 %v3463, %v3690
        %v3740 = vmul.f32 %v3466, %v3692
        %v3741 = vmul.f32 %v3471, %v3694
        %v3742 = vmul.f32 %v3474, %v3696
        %v3743 = vmul.f32 %v3479, %v3698
        %v3744 = vmul.f32 %v3482, %v3700
        %v3745 = vmul.f32 %v3487, %v3702
        %v3746 = vmul.f32 %v3490, %v3704
        %v3747 = vmul.f32 %v3495, %v3706
        %v3748 = vmul.f32 %v3498, %v3708
        %v3749 = vmul.f32 %v3503, %v3710
        %v3750 = vmul.f32 %v3506, %v3712
        %v3751 = vmul.f32 %v3511, %v3714
        %v3752 = vmul.f32 %v3514, %v3716
        %v3753 = vmul.f32 %v3519, %v3718
        %v3754 = vmul.f32 %v3522, %v3720
        %v3755 = vmul.f32 %v3527, %v3722
        %v3756 = vmul.f32 %v3530, %v3724
        %vm3757 = vcmask 523264
        %v3758 = vsel %vm3757, %v3725, 0.0
        %v3759 = vsel %vm3757, %v3726, 0.0
        %v3760 = vadd.f32 %v3758, %v3759
        %v3761 = vsel %vm3757, %v3727, 0.0
        %v3762 = vadd.f32 %v3760, %v3761
        %v3763 = vsel %vm3757, %v3728, 0.0
        %v3764 = vadd.f32 %v3762, %v3763
        %v3765 = vsel %vm3757, %v3729, 0.0
        %v3766 = vadd.f32 %v3764, %v3765
        %v3767 = vsel %vm3757, %v3730, 0.0
        %v3768 = vadd.f32 %v3766, %v3767
        %v3769 = vsel %vm3757, %v3731, 0.0
        %v3770 = vadd.f32 %v3768, %v3769
        %v3771 = vsel %vm3757, %v3732, 0.0
        %v3772 = vadd.f32 %v3770, %v3771
        %v3773 = vsel %vm3757, %v3733, 0.0
        %v3774 = vadd.f32 %v3772, %v3773
        %v3775 = vsel %vm3757, %v3734, 0.0
        %v3776 = vadd.f32 %v3774, %v3775
        %v3777 = vsel %vm3757, %v3735, 0.0
        %v3778 = vadd.f32 %v3776, %v3777
        %v3779 = vsel %vm3757, %v3736, 0.0
        %v3780 = vadd.f32 %v3778, %v3779
        %v3781 = vsel %vm3757, %v3737, 0.0
        %v3782 = vadd.f32 %v3780, %v3781
        %v3783 = vsel %vm3757, %v3738, 0.0
        %v3784 = vadd.f32 %v3782, %v3783
        %v3785 = vsel %vm3757, %v3739, 0.0
        %v3786 = vadd.f32 %v3784, %v3785
        %v3787 = vsel %vm3757, %v3740, 0.0
        %v3788 = vadd.f32 %v3786, %v3787
        %v3789 = vsel %vm3757, %v3741, 0.0
        %v3790 = vadd.f32 %v3788, %v3789
        %v3791 = vsel %vm3757, %v3742, 0.0
        %v3792 = vadd.f32 %v3790, %v3791
        %v3793 = vsel %vm3757, %v3743, 0.0
        %v3794 = vadd.f32 %v3792, %v3793
        %v3795 = vsel %vm3757, %v3744, 0.0
        %v3796 = vadd.f32 %v3794, %v3795
        %v3797 = vsel %vm3757, %v3745, 0.0
        %v3798 = vadd.f32 %v3796, %v3797
        %v3799 = vsel %vm3757, %v3746, 0.0
        %v3800 = vadd.f32 %v3798, %v3799
        %v3801 = vsel %vm3757, %v3747, 0.0
        %v3802 = vadd.f32 %v3800, %v3801
        %v3803 = vsel %vm3757, %v3748, 0.0
        %v3804 = vadd.f32 %v3802, %v3803
        %v3805 = vsel %vm3757, %v3749, 0.0
        %v3806 = vadd.f32 %v3804, %v3805
        %v3807 = vsel %vm3757, %v3750, 0.0
        %v3808 = vadd.f32 %v3806, %v3807
        %v3809 = vsel %vm3757, %v3751, 0.0
        %v3810 = vadd.f32 %v3808, %v3809
        %v3811 = vsel %vm3757, %v3752, 0.0
        %v3812 = vadd.f32 %v3810, %v3811
        %v3813 = vsel %vm3757, %v3753, 0.0
        %v3814 = vadd.f32 %v3812, %v3813
        %v3815 = vsel %vm3757, %v3754, 0.0
        %v3816 = vadd.f32 %v3814, %v3815
        %v3817 = vsel %vm3757, %v3755, 0.0
        %v3818 = vadd.f32 %v3816, %v3817
        %v3819 = vsel %vm3757, %v3756, 0.0
        %v3820 = vadd.f32 %v3818, %v3819
        %v3821 = vrot.slane %v3820, 4
        %v3822 = vadd.f32 %v3820, %v3821
        %v3823 = vrot.slane %v3822, 2
        %v3824 = vadd.f32 %v3822, %v3823
        %v3825 = vrot.slane %v3824, 1
        %v3826 = vadd.f32 %v3824, %v3825
        %v3827 = vmul.f32 %v3826, 0.00390625
        %v3828 = vpack.c.bf16 %v3827, %v3827
        %v3829 = vld [vmem:[%s15] sm:$0xf]
        %v3830 = vld [vmem:[%s15 + $0x4] sm:$0xf]
        %v3831 = vld [vmem:[%s15 + $0x8] sm:$0xf]
        %v3832 = vld [vmem:[%s15 + $0xc] sm:$0xf]
        %v3833 = vld [vmem:[%s15 + $0x10] sm:$0xf]
        %v3834 = vld [vmem:[%s15 + $0x14] sm:$0xf]
        %v3835 = vld [vmem:[%s15 + $0x18] sm:$0xf]
        %v3836 = vld [vmem:[%s15 + $0x1c] sm:$0xf]
        %v3837 = vld [vmem:[%s16] sm:$0x1]
        %v3846 = vunpack.c.l.b16 %v3829
        %v3847 = vunpack.c.l.b16 %v3830
        %v3848 = vunpack.c.l.b16 %v3831
        %v3849 = vunpack.c.l.b16 %v3832
        %v3850 = vunpack.c.l.b16 %v3833
        %v3851 = vunpack.c.l.b16 %v3834
        %v3852 = vunpack.c.l.b16 %v3835
        %v3853 = vunpack.c.l.b16 %v3836
        %v3854 = vpack.c.b16 %v3847, %v3846
        %v3855 = vpack.c.b16 %v3849, %v3848
        %v3856 = vpack.c.b16 %v3851, %v3850
        %v3857 = vpack.c.b16 %v3853, %v3852
        %v3863 = vsel %vm3757, %v3828, 0
        %3865 = vmatprep.subr.bf16.mxu0 0
        %3866 = vmatpush1.bf16.msra.mxu0 %v3854
        %3867 = vmatprep.subr.bf16.mxu0 0
        %3868 = vmatpush1.bf16.msra.mxu0 %v3855
        %3869 = vmatprep.subr.bf16.mxu0 0
        %3870 = vmatpush1.bf16.msra.mxu0 %v3856
        %3871 = vmatprep.subr.bf16.mxu0 0
        %3872 = vmatpush1.bf16.msra.mxu0 %v3857
        %3873 = vmatprep.subr.bf16.mxu0 0
        %3874 = vmatpush1.bf16.msra.mxu0 0
        %3875 = vmatprep.subr.bf16.mxu0 0
        %3876 = vmatpush1.bf16.msra.mxu0 0
        %3877 = vmatprep.subr.bf16.mxu0 0
        %3878 = vmatpush1.bf16.msra.mxu0 0
        %3879 = vmatprep.subr.bf16.mxu0 0
        %3880 = vmatpush1.bf16.msra.mxu0 0
        %3881 = vmatprep.subr.bf16.mxu0 0
        %3882 = vmatpush1.bf16.msra.mxu0 0
        %3883 = vmatprep.subr.bf16.mxu0 0
        %3884 = vmatpush1.bf16.msra.mxu0 0
        %3885 = vmatprep.subr.bf16.mxu0 0
        %3886 = vmatpush1.bf16.msra.mxu0 0
        %3887 = vmatprep.subr.bf16.mxu0 0
        %3888 = vmatpush1.bf16.msra.mxu0 0
        %3889 = vmatprep.subr.bf16.mxu0 0
        %3890 = vmatpush1.bf16.msra.mxu0 0
        %3891 = vmatprep.subr.bf16.mxu0 0
        %3892 = vmatpush1.bf16.msra.mxu0 0
        %3893 = vmatprep.subr.bf16.mxu0 0
        %3894 = vmatpush1.bf16.msra.mxu0 0
        %3895 = vmatprep.subr.bf16.mxu0 0
        %3896 = vmatpush1.bf16.msra.mxu0 0
        %3897 = vmatprep.mubr.bf16.mxu0 0
        %3898 = vmatmul.mubr.bf16.gmra.mrb[0].mxu0 %v3863
        %v3899 = vpop.f32.mrb[0].mxu0
        %v3900 = vadd.f32 %v3837, %v3899
        %v3901 = vpop.f32.mrb[0].mxu0
        %v3902 = vpop.f32.mrb[0].mxu0
        %v3903 = vpop.f32.mrb[0].mxu0
        %3904 = vdwg.mxu0
        %v3905 = vxor.u32 %v3900, 2147483648
        %v3906 = vmul.f32 %v3905, 1.442695
        %v3907 = vpow.pop %v3906
        %v3908 = vadd.f32 %v3907, 1.0
        %v3909 = vrcp.pop %v3908
        %v3910 = vmul.f32 1.0, %v3909
        %3911 = vst [vmem:[%s540] sm:$0x1] %v3910
        %s3912 = sand.u32 %s401, 1
        %s3913 = scalar_lea.sflag [#allocation5], %s3912
        %s3914 = sand.u32 %s401, 1
        %s3915 = scalar_lea.vmem [#allocation4], %s3914
        // Predicated region
        $region89: #{efficientnet_forward.1} parent=87 // pred_check
          %p3916 = pneg %p411
        $region90: #{efficientnet_forward.1} parent=87 // pred_check_branch
          %3918 = sbr.rel (%p3916) target = $region92
        $region91: #{efficientnet_forward.1} parent=87 // pred_region
          %s3920 = ssub.s32 16, 16
          %3921 = vsyncadd %s3913, %s3920
          %s3922 = smul.addr %s31, 16
          %s3923 = scalar_lea.hbm %s17, %s3922
          %s3925 = sshll.u32 %s3915, 4
          %s3926 = int_to_ptr.vmem [resolvable:$true] %s3925
          %3928 = dma.vmem_to_hbm [thread:$0]  %s3926, 16, %s3923, %s3913
        $region92: #{efficientnet_forward.1} parent=87 // pred_fallthru
          _
      $region88: #{efficientnet_forward.1} parent=5 // pred_fallthru
        _
      %p3929 = scmp.le.s32.totalorder 2, %s26
      // Predicated region
      $region93: #{efficientnet_forward.1} parent=5 // pred_check
        %p3930 = pneg %p3929
      $region94: #{efficientnet_forward.1} parent=5 // pred_check_branch
        %3932 = sbr.rel (%p3930) target = $region96
      $region95: #{efficientnet_forward.1} parent=5 // pred_region
        %s3933 = ssub.s32 %s26, 2
        // Predicated region
        $region97: #{efficientnet_forward.1} parent=95 // pred_check
          %p3934 = pneg %p417
        $region98: #{efficientnet_forward.1} parent=95 // pred_check_branch
          %3936 = sbr.rel (%p3934) target = $region100
        $region99: #{efficientnet_forward.1} parent=95 // pred_region
          %s3937 = sand.u32 %s402, 1
          %s3938 = scalar_lea.sflag [#allocation5], %s3937
          %s3939 = sand.u32 %s402, 1
          %s3940 = scalar_lea.vmem [#allocation4], %s3939
          %3941 = dma.done %s3938, 16
        $region100: #{efficientnet_forward.1} parent=95 // pred_fallthru
          _
      $region96: #{efficientnet_forward.1} parent=5 // pred_fallthru
        _
    $region6: #{efficientnet_forward.1} parent=1 // loop_footer
      %s30 = sadd.s32 1, %s26
    $region7: #{efficientnet_forward.1} parent=1 // loop_footer_branch
      %25 = sbr.rel target = $region3
    $region8: #{efficientnet_forward.1} parent=1 // loop_exit
      _
    %3942 = vsyncpa [#allocation5], 1
    %s3943 = scalar_lea.sflag [#allocation5], 1
    %3944 = vsyncpa %s3943, 1

</llo_original>
